<compile_context>
chip_gen: v6e
topology: v6e:2x2x1
jax: 0.10.0
libtpu: 0.0.40
codegen_flags: <defaults>
</compile_context>

<pallas_src>
import math
import jax
import jax.numpy as jnp
from jax import lax
from jax.experimental import pallas as pl
from jax.experimental.pallas import tpu as pltpu

D_MODEL = 39        # raw input feature dim
D_PAD = 128         # lane-padded input feature dim
HID = 128           # hid_dim
NHEAD = 8
HEAD_DIM = HID // NHEAD
FF = 1024           # dim_feedforward
OUT = 10
OUT_PAD = 128       # lane-padded decoder output
EPS = 1e-5          # torch LayerNorm default


def _layernorm(x, g, b):
    mu = jnp.mean(x, axis=-1, keepdims=True)
    var = jnp.mean((x - mu) ** 2, axis=-1, keepdims=True)    # biased, like torch
    return (x - mu) * lax.rsqrt(var + EPS) * g + b


def transformer_kernel(x_ref, pe_ref,
                       w1_ref, w2_ref, wqkv_ref, bqkv_ref, wo_ref,
                       wf1_ref, bf1_ref, wf2_ref, wd1_ref, wd2_ref,
                       vec_ref, o_ref):
    bf = jnp.bfloat16
    x = x_ref[0]                                   # (S, 128) f32, cols >= 39 are zero
    vecs = vec_ref[...]                            # (10, 128) f32 packed bias/LN slab
    # rows: 0=b1 1=b2 2=bo 3=g1 4=be1 5=bf2 6=g2 7=be2 8=bd1 9=bd2(padded)
    S = x.shape[0]

    # ---- pre_encoder: Linear(39,128) -> ReLU -> Linear(128,128) ----
    h = jnp.dot(x.astype(bf), w1_ref[...], preferred_element_type=jnp.float32) + vecs[0]
    h = jnp.maximum(h, 0.0)
    h = jnp.dot(h.astype(bf), w2_ref[...], preferred_element_type=jnp.float32) + vecs[1]

    # ---- positional encoding (module quirk: pe indexed by BATCH index,
    #      broadcast over the sequence) ----
    h = h + pe_ref[...]                            # (S,128) + (1,128)
    # TODO(synk): train-mode dropout (p=0.1) is stochastic; treated as identity.

    # ---- TransformerEncoderLayer (post-norm, ReLU FFN) ----
    # fused QKV projection: one (S,128) @ (128,384) matmul
    qkv = jnp.dot(h.astype(bf), wqkv_ref[...],
                  preferred_element_type=jnp.float32) + bqkv_ref[...]
    q_last = qkv[S - 1:S, 0:HID]                   # only the last query row matters
    k = qkv[:, HID:2 * HID]
    v = qkv[:, 2 * HID:3 * HID]
    wo = wo_ref[...]                               # (128,128) bf16

    scale = 1.0 / math.sqrt(HEAD_DIM)
    attn = jnp.zeros((1, HID), jnp.float32)        # accumulated output projection
    for hd in range(NHEAD):                        # static unroll over heads
        sl = slice(hd * HEAD_DIM, (hd + 1) * HEAD_DIM)
        qh = q_last[:, sl].astype(bf)              # (1,16)
        kh = k[:, sl].astype(bf)                   # (S,16)
        vh = v[:, sl].astype(bf)                   # (S,16)
        # scores = qh @ kh^T without materializing the transpose
        s = lax.dot_general(qh, kh, (((1,), (1,)), ((), ())),
                            preferred_element_type=jnp.float32) * scale   # (1,S)
        s = s - jnp.max(s, axis=-1, keepdims=True)
        p = jnp.exp(s)
        p = p / jnp.sum(p, axis=-1, keepdims=True)
        oh = jnp.dot(p.astype(bf), vh, preferred_element_type=jnp.float32)  # (1,16)
        # fold the output projection per head instead of concatenating heads
        attn = attn + jnp.dot(oh.astype(bf), wo[sl, :],
                              preferred_element_type=jnp.float32)
    attn = attn + vecs[2]                          # bo

    hl = _layernorm(h[S - 1:S, :] + attn, vecs[3], vecs[4])   # norm1, last row only

    ff = jnp.dot(hl.astype(bf), wf1_ref[...],
                 preferred_element_type=jnp.float32) + bf1_ref[...]
    ff = jnp.maximum(ff, 0.0)
    ff = jnp.dot(ff.astype(bf), wf2_ref[...],
                 preferred_element_type=jnp.float32) + vecs[5]

    hl = _layernorm(hl + ff, vecs[6], vecs[7])     # norm2

    # ---- decoder: Linear(128,128) -> ReLU -> Linear(128,10) (padded to 128) ----
    d = jnp.dot(hl.astype(bf), wd1_ref[...], preferred_element_type=jnp.float32) + vecs[8]
    d = jnp.maximum(d, 0.0)
    d = jnp.dot(d.astype(bf), wd2_ref[...], preferred_element_type=jnp.float32) + vecs[9]

    o_ref[...] = d                                 # (1, 128) lane-dense store


def make_positional_encoding(n_pos, d):
    position = jnp.arange(n_pos, dtype=jnp.float32)[:, None]
    div_term = jnp.exp(jnp.arange(0, d, 2, dtype=jnp.float32) * (-math.log(10000.0) / d))
    pe = jnp.zeros((n_pos, d), jnp.float32)
    pe = pe.at[:, 0::2].set(jnp.sin(position * div_term))
    pe = pe.at[:, 1::2].set(jnp.cos(position * div_term))
    return pe                                      # (n_pos, d)


def init_params(key):
    def xavier(key, shape):
        fan_in, fan_out = shape
        lim = math.sqrt(6.0 / (fan_in + fan_out))
        return jax.random.uniform(key, shape, jnp.float32, -lim, lim)

    ks = jax.random.split(key, 16)
    p = {}
    # pre_encoder
    p["w1"] = xavier(ks[0], (D_MODEL, HID)); p["b1"] = jnp.full((1, HID), 0.01, jnp.float32)
    p["w2"] = xavier(ks[1], (HID, HID));     p["b2"] = jnp.full((1, HID), 0.01, jnp.float32)
    # self-attention (in_proj split into q/k/v, out_proj)
    p["wq"] = xavier(ks[2], (HID, HID)); p["bq"] = jnp.zeros((1, HID), jnp.float32)
    p["wk"] = xavier(ks[3], (HID, HID)); p["bk"] = jnp.zeros((1, HID), jnp.float32)
    p["wv"] = xavier(ks[4], (HID, HID)); p["bv"] = jnp.zeros((1, HID), jnp.float32)
    p["wo"] = xavier(ks[5], (HID, HID)); p["bo"] = jnp.zeros((1, HID), jnp.float32)
    # layer norms
    p["g1"] = jnp.ones((1, HID), jnp.float32); p["be1"] = jnp.zeros((1, HID), jnp.float32)
    p["g2"] = jnp.ones((1, HID), jnp.float32); p["be2"] = jnp.zeros((1, HID), jnp.float32)
    # feed-forward
    p["wf1"] = xavier(ks[6], (HID, FF)); p["bf1"] = jnp.zeros((1, FF), jnp.float32)
    p["wf2"] = xavier(ks[7], (FF, HID)); p["bf2"] = jnp.zeros((1, HID), jnp.float32)
    # decoder
    p["wd1"] = xavier(ks[8], (HID, HID)); p["bd1"] = jnp.zeros((1, HID), jnp.float32)
    p["wd2"] = xavier(ks[9], (HID, OUT)); p["bd2"] = jnp.zeros((1, OUT), jnp.float32)
    return p


def my_transformer_forward(x, params):
    """x: (B, S, D_MODEL) float32 -> (OUT,) float32 (== X[-1, -1, :])."""
    B, S, _ = x.shape
    bf = jnp.bfloat16

    # Only the last batch element contributes to X[-1, -1, :]; drop the rest.
    x_last = x[B - 1:B]                                              # (1, S, D_MODEL)
    x_pad = jnp.pad(x_last, ((0, 0), (0, 0), (0, D_PAD - D_MODEL)))  # (1, S, 128)

    # PE quirk: the module adds pe[batch_index] broadcast over the sequence.
    pe_row = make_positional_encoding(B, HID)[B - 1:B]               # (1, HID)

    # --- pack / pad / cast weights once in the wrapper ---
    w1 = jnp.pad(params["w1"], ((0, D_PAD - D_MODEL), (0, 0))).astype(bf)   # (128,128)
    w2 = params["w2"].astype(bf)
    wqkv = jnp.concatenate([params["wq"], params["wk"], params["wv"]], axis=1).astype(bf)
    bqkv = jnp.concatenate([params["bq"], params["bk"], params["bv"]], axis=1)  # (1,384) f32
    wo = params["wo"].astype(bf)
    wf1 = params["wf1"].astype(bf)
    bf1 = params["bf1"]                                                      # (1,1024) f32
    wf2 = params["wf2"].astype(bf)
    wd1 = params["wd1"].astype(bf)
    wd2 = jnp.pad(params["wd2"], ((0, 0), (0, OUT_PAD - OUT))).astype(bf)    # (128,128)

    def pad_lane(v):
        v = v.reshape(-1)
        return jnp.pad(v, (0, HID - v.shape[0]))

    vecs = jnp.stack([pad_lane(params[n]) for n in
                      ["b1", "b2", "bo", "g1", "be1", "bf2",
                       "g2", "be2", "bd1", "bd2"]])                          # (10,128) f32

    weights = [w1, w2, wqkv, bqkv, wo, wf1, bf1, wf2, wd1, wd2, vecs]

    in_specs = [
        pl.BlockSpec((1, S, D_PAD), lambda i: (0, 0, 0)),   # x: last batch row only
        pl.BlockSpec((1, HID), lambda i: (0, 0)),           # pe row for batch B-1
    ] + [pl.BlockSpec(w.shape, lambda i: (0, 0)) for w in weights]

    out = pl.pallas_call(
        transformer_kernel,
        out_shape=jax.ShapeDtypeStruct((1, OUT_PAD), jnp.float32),
        grid=(1,),
        in_specs=in_specs,
        out_specs=pl.BlockSpec((1, OUT_PAD), lambda i: (0, 0)),
        compiler_params=pltpu.CompilerParams(
            dimension_semantics=("arbitrary",)),
    )(x_pad, pe_row, *weights)
    return out[0, :OUT]


if __name__ == "__main__":
    key = jax.random.PRNGKey(0)
    k_param, k_x = jax.random.split(key)
    params = init_params(k_param)

    B, S = 2, 8
    x = jax.random.normal(k_x, (B, S, D_MODEL), jnp.float32)

    y = my_transformer_forward(x, params)
    jax.block_until_ready(y)
    assert y.shape == (OUT,) and y.dtype == jnp.float32
    assert bool(jnp.all(jnp.isfinite(y)))
    print("KERNEL_OK")
</pallas_src>

<mosaic_0001>
module attributes {stable_mosaic.version = 11 : i64} {
  func.func @transformer_kernel(%arg0: i32, %arg1: memref<1x8x128xf32, #tpu.memory_space<vmem>>, %arg2: memref<1x128xf32, #tpu.memory_space<vmem>>, %arg3: memref<128x128xbf16, #tpu.memory_space<vmem>>, %arg4: memref<128x128xbf16, #tpu.memory_space<vmem>>, %arg5: memref<128x384xbf16, #tpu.memory_space<vmem>>, %arg6: memref<1x384xf32, #tpu.memory_space<vmem>>, %arg7: memref<128x128xbf16, #tpu.memory_space<vmem>>, %arg8: memref<128x1024xbf16, #tpu.memory_space<vmem>>, %arg9: memref<1x1024xf32, #tpu.memory_space<vmem>>, %arg10: memref<1024x128xbf16, #tpu.memory_space<vmem>>, %arg11: memref<128x128xbf16, #tpu.memory_space<vmem>>, %arg12: memref<128x128xbf16, #tpu.memory_space<vmem>>, %arg13: memref<10x128xf32, #tpu.memory_space<vmem>>, %arg14: memref<1x128xf32, #tpu.memory_space<vmem>>) attributes {dimension_semantics = [#tpu.dimension_semantics<arbitrary>], iteration_bounds = array<i64: 1>, scalar_prefetch = 0 : i64, scratch_operands = 0 : i64, tpu.core_type = #tpu.core_type<tc>, window_params = [{pipeline_mode = #tpu.pipeline_mode<synchronous>, transform_indices = @transform_0, window_bounds = array<i64: 1, 8, 128>}, {pipeline_mode = #tpu.pipeline_mode<synchronous>, transform_indices = @transform_1, window_bounds = array<i64: 1, 128>}, {pipeline_mode = #tpu.pipeline_mode<synchronous>, transform_indices = @transform_2, window_bounds = array<i64: 128, 128>}, {pipeline_mode = #tpu.pipeline_mode<synchronous>, transform_indices = @transform_3, window_bounds = array<i64: 128, 128>}, {pipeline_mode = #tpu.pipeline_mode<synchronous>, transform_indices = @transform_4, window_bounds = array<i64: 128, 384>}, {pipeline_mode = #tpu.pipeline_mode<synchronous>, transform_indices = @transform_5, window_bounds = array<i64: 1, 384>}, {pipeline_mode = #tpu.pipeline_mode<synchronous>, transform_indices = @transform_6, window_bounds = array<i64: 128, 128>}, {pipeline_mode = #tpu.pipeline_mode<synchronous>, transform_indices = @transform_7, window_bounds = array<i64: 128, 1024>}, {pipeline_mode = #tpu.pipeline_mode<synchronous>, transform_indices = @transform_8, window_bounds = array<i64: 1, 1024>}, {pipeline_mode = #tpu.pipeline_mode<synchronous>, transform_indices = @transform_9, window_bounds = array<i64: 1024, 128>}, {pipeline_mode = #tpu.pipeline_mode<synchronous>, transform_indices = @transform_10, window_bounds = array<i64: 128, 128>}, {pipeline_mode = #tpu.pipeline_mode<synchronous>, transform_indices = @transform_11, window_bounds = array<i64: 128, 128>}, {pipeline_mode = #tpu.pipeline_mode<synchronous>, transform_indices = @transform_12, window_bounds = array<i64: 10, 128>}, {pipeline_mode = #tpu.pipeline_mode<synchronous>, transform_indices = @transform_13, window_bounds = array<i64: 1, 128>}]} {
    %c0 = arith.constant 0 : index
    %c0_0 = arith.constant 0 : index
    %c0_1 = arith.constant 0 : index
    %0 = vector.load %arg1[%c0, %c0_0, %c0_1] : memref<1x8x128xf32, #tpu.memory_space<vmem>>, vector<1x8x128xf32>
    %1 = vector.shape_cast %0 : vector<1x8x128xf32> to vector<8x128xf32>
    %c0_2 = arith.constant 0 : index
    %c0_3 = arith.constant 0 : index
    %2 = vector.load %arg13[%c0_2, %c0_3] : memref<10x128xf32, #tpu.memory_space<vmem>>, vector<10x128xf32>
    %3 = arith.truncf %1 : vector<8x128xf32> to vector<8x128xbf16>
    %c0_4 = arith.constant 0 : index
    %c0_5 = arith.constant 0 : index
    %4 = vector.load %arg3[%c0_4, %c0_5] : memref<128x128xbf16, #tpu.memory_space<vmem>>, vector<128x128xbf16>
    %cst = arith.constant dense<0.000000e+00> : vector<8x128xf32>
    %5 = tpu.matmul %3, %4, %cst {dimension_numbers = #tpu.dot_dimension_numbers<[1], [0], [0], [1], [0, 0, 1, 1], [], []>} : vector<8x128xbf16>, vector<128x128xbf16>, vector<8x128xf32> -> vector<8x128xf32>
    %6 = vector.extract_strided_slice %2 {offsets = [0, 0], sizes = [1, 128], strides = [1, 1]} : vector<10x128xf32> to vector<1x128xf32>
    %7 = vector.shape_cast %6 : vector<1x128xf32> to vector<128xf32>
    %8 = vector.shape_cast %7 : vector<128xf32> to vector<1x128xf32>
    %9 = vector.broadcast %8 : vector<1x128xf32> to vector<8x128xf32>
    %10 = arith.addf %5, %9 : vector<8x128xf32>
    %cst_6 = arith.constant 0.000000e+00 : f32
    %11 = vector.broadcast %cst_6 : f32 to vector<8x128xf32>
    %12 = arith.maximumf %10, %11 : vector<8x128xf32>
    %13 = arith.truncf %12 : vector<8x128xf32> to vector<8x128xbf16>
    %c0_7 = arith.constant 0 : index
    %c0_8 = arith.constant 0 : index
    %14 = vector.load %arg4[%c0_7, %c0_8] : memref<128x128xbf16, #tpu.memory_space<vmem>>, vector<128x128xbf16>
    %cst_9 = arith.constant dense<0.000000e+00> : vector<8x128xf32>
    %15 = tpu.matmul %13, %14, %cst_9 {dimension_numbers = #tpu.dot_dimension_numbers<[1], [0], [0], [1], [0, 0, 1, 1], [], []>} : vector<8x128xbf16>, vector<128x128xbf16>, vector<8x128xf32> -> vector<8x128xf32>
    %16 = vector.extract_strided_slice %2 {offsets = [1, 0], sizes = [1, 128], strides = [1, 1]} : vector<10x128xf32> to vector<1x128xf32>
    %17 = vector.shape_cast %16 : vector<1x128xf32> to vector<128xf32>
    %18 = vector.shape_cast %17 : vector<128xf32> to vector<1x128xf32>
    %19 = vector.broadcast %18 : vector<1x128xf32> to vector<8x128xf32>
    %20 = arith.addf %15, %19 : vector<8x128xf32>
    %c0_10 = arith.constant 0 : index
    %c0_11 = arith.constant 0 : index
    %21 = vector.load %arg2[%c0_10, %c0_11] : memref<1x128xf32, #tpu.memory_space<vmem>>, vector<1x128xf32>
    %22 = vector.broadcast %21 : vector<1x128xf32> to vector<8x128xf32>
    %23 = arith.addf %20, %22 : vector<8x128xf32>
    %24 = arith.truncf %23 : vector<8x128xf32> to vector<8x128xbf16>
    %c0_12 = arith.constant 0 : index
    %c0_13 = arith.constant 0 : index
    %25 = vector.load %arg5[%c0_12, %c0_13] : memref<128x384xbf16, #tpu.memory_space<vmem>>, vector<128x384xbf16>
    %cst_14 = arith.constant dense<0.000000e+00> : vector<8x384xf32>
    %26 = tpu.matmul %24, %25, %cst_14 {dimension_numbers = #tpu.dot_dimension_numbers<[1], [0], [0], [1], [0, 0, 1, 1], [], []>} : vector<8x128xbf16>, vector<128x384xbf16>, vector<8x384xf32> -> vector<8x384xf32>
    %c0_15 = arith.constant 0 : index
    %c0_16 = arith.constant 0 : index
    %27 = vector.load %arg6[%c0_15, %c0_16] : memref<1x384xf32, #tpu.memory_space<vmem>>, vector<1x384xf32>
    %28 = vector.broadcast %27 : vector<1x384xf32> to vector<8x384xf32>
    %29 = arith.addf %26, %28 : vector<8x384xf32>
    %30 = vector.extract_strided_slice %29 {offsets = [7, 0], sizes = [1, 128], strides = [1, 1]} : vector<8x384xf32> to vector<1x128xf32>
    %31 = vector.extract_strided_slice %29 {offsets = [0, 128], sizes = [8, 128], strides = [1, 1]} : vector<8x384xf32> to vector<8x128xf32>
    %32 = vector.extract_strided_slice %29 {offsets = [0, 256], sizes = [8, 128], strides = [1, 1]} : vector<8x384xf32> to vector<8x128xf32>
    %c0_17 = arith.constant 0 : index
    %c0_18 = arith.constant 0 : index
    %33 = vector.load %arg7[%c0_17, %c0_18] : memref<128x128xbf16, #tpu.memory_space<vmem>>, vector<128x128xbf16>
    %cst_19 = arith.constant 0.000000e+00 : f32
    %34 = vector.broadcast %cst_19 : f32 to vector<1x128xf32>
    %35 = vector.extract_strided_slice %30 {offsets = [0, 0], sizes = [1, 16], strides = [1, 1]} : vector<1x128xf32> to vector<1x16xf32>
    %36 = arith.truncf %35 : vector<1x16xf32> to vector<1x16xbf16>
    %37 = vector.extract_strided_slice %31 {offsets = [0, 0], sizes = [8, 16], strides = [1, 1]} : vector<8x128xf32> to vector<8x16xf32>
    %38 = arith.truncf %37 : vector<8x16xf32> to vector<8x16xbf16>
    %39 = vector.extract_strided_slice %32 {offsets = [0, 0], sizes = [8, 16], strides = [1, 1]} : vector<8x128xf32> to vector<8x16xf32>
    %40 = arith.truncf %39 : vector<8x16xf32> to vector<8x16xbf16>
    %cst_20 = arith.constant dense<0.000000e+00> : vector<1x8xf32>
    %41 = tpu.matmul %36, %38, %cst_20 {dimension_numbers = #tpu.dot_dimension_numbers<[1], [1], [0], [0], [0, 0, 1, 0], [], []>} : vector<1x16xbf16>, vector<8x16xbf16>, vector<1x8xf32> -> vector<1x8xf32>
    %cst_21 = arith.constant 2.500000e-01 : f32
    %42 = vector.broadcast %cst_21 : f32 to vector<1x8xf32>
    %43 = arith.mulf %41, %42 : vector<1x8xf32>
    %cst_22 = arith.constant dense<0xFF800000> : vector<1xf32>
    %44 = vector.multi_reduction <maximumf>, %43, %cst_22 [1] : vector<1x8xf32> to vector<1xf32>
    %45 = vector.shape_cast %44 : vector<1xf32> to vector<1x1xf32>
    %46 = vector.broadcast %45 : vector<1x1xf32> to vector<1x8xf32>
    %47 = arith.subf %43, %46 : vector<1x8xf32>
    %48 = math.exp %47 : vector<1x8xf32>
    %cst_23 = arith.constant dense<0.000000e+00> : vector<1xf32>
    %49 = vector.multi_reduction <add>, %48, %cst_23 [1] : vector<1x8xf32> to vector<1xf32>
    %50 = vector.shape_cast %49 : vector<1xf32> to vector<1x1xf32>
    %51 = vector.broadcast %50 : vector<1x1xf32> to vector<1x8xf32>
    %52 = arith.divf %48, %51 : vector<1x8xf32>
    %53 = arith.truncf %52 : vector<1x8xf32> to vector<1x8xbf16>
    %cst_24 = arith.constant dense<0.000000e+00> : vector<1x16xf32>
    %54 = tpu.matmul %53, %40, %cst_24 {dimension_numbers = #tpu.dot_dimension_numbers<[1], [0], [0], [1], [0, 0, 1, 1], [], []>} : vector<1x8xbf16>, vector<8x16xbf16>, vector<1x16xf32> -> vector<1x16xf32>
    %55 = arith.truncf %54 : vector<1x16xf32> to vector<1x16xbf16>
    %56 = vector.extract_strided_slice %33 {offsets = [0, 0], sizes = [16, 128], strides = [1, 1]} : vector<128x128xbf16> to vector<16x128xbf16>
    %cst_25 = arith.constant dense<0.000000e+00> : vector<1x128xf32>
    %57 = tpu.matmul %55, %56, %cst_25 {dimension_numbers = #tpu.dot_dimension_numbers<[1], [0], [0], [1], [0, 0, 1, 1], [], []>} : vector<1x16xbf16>, vector<16x128xbf16>, vector<1x128xf32> -> vector<1x128xf32>
    %58 = arith.addf %34, %57 : vector<1x128xf32>
    %59 = vector.extract_strided_slice %30 {offsets = [0, 16], sizes = [1, 16], strides = [1, 1]} : vector<1x128xf32> to vector<1x16xf32>
    %60 = arith.truncf %59 : vector<1x16xf32> to vector<1x16xbf16>
    %61 = vector.extract_strided_slice %31 {offsets = [0, 16], sizes = [8, 16], strides = [1, 1]} : vector<8x128xf32> to vector<8x16xf32>
    %62 = arith.truncf %61 : vector<8x16xf32> to vector<8x16xbf16>
    %63 = vector.extract_strided_slice %32 {offsets = [0, 16], sizes = [8, 16], strides = [1, 1]} : vector<8x128xf32> to vector<8x16xf32>
    %64 = arith.truncf %63 : vector<8x16xf32> to vector<8x16xbf16>
    %cst_26 = arith.constant dense<0.000000e+00> : vector<1x8xf32>
    %65 = tpu.matmul %60, %62, %cst_26 {dimension_numbers = #tpu.dot_dimension_numbers<[1], [1], [0], [0], [0, 0, 1, 0], [], []>} : vector<1x16xbf16>, vector<8x16xbf16>, vector<1x8xf32> -> vector<1x8xf32>
    %cst_27 = arith.constant 2.500000e-01 : f32
    %66 = vector.broadcast %cst_27 : f32 to vector<1x8xf32>
    %67 = arith.mulf %65, %66 : vector<1x8xf32>
    %cst_28 = arith.constant dense<0xFF800000> : vector<1xf32>
    %68 = vector.multi_reduction <maximumf>, %67, %cst_28 [1] : vector<1x8xf32> to vector<1xf32>
    %69 = vector.shape_cast %68 : vector<1xf32> to vector<1x1xf32>
    %70 = vector.broadcast %69 : vector<1x1xf32> to vector<1x8xf32>
    %71 = arith.subf %67, %70 : vector<1x8xf32>
    %72 = math.exp %71 : vector<1x8xf32>
    %cst_29 = arith.constant dense<0.000000e+00> : vector<1xf32>
    %73 = vector.multi_reduction <add>, %72, %cst_29 [1] : vector<1x8xf32> to vector<1xf32>
    %74 = vector.shape_cast %73 : vector<1xf32> to vector<1x1xf32>
    %75 = vector.broadcast %74 : vector<1x1xf32> to vector<1x8xf32>
    %76 = arith.divf %72, %75 : vector<1x8xf32>
    %77 = arith.truncf %76 : vector<1x8xf32> to vector<1x8xbf16>
    %cst_30 = arith.constant dense<0.000000e+00> : vector<1x16xf32>
    %78 = tpu.matmul %77, %64, %cst_30 {dimension_numbers = #tpu.dot_dimension_numbers<[1], [0], [0], [1], [0, 0, 1, 1], [], []>} : vector<1x8xbf16>, vector<8x16xbf16>, vector<1x16xf32> -> vector<1x16xf32>
    %79 = arith.truncf %78 : vector<1x16xf32> to vector<1x16xbf16>
    %80 = vector.extract_strided_slice %33 {offsets = [16, 0], sizes = [16, 128], strides = [1, 1]} : vector<128x128xbf16> to vector<16x128xbf16>
    %cst_31 = arith.constant dense<0.000000e+00> : vector<1x128xf32>
    %81 = tpu.matmul %79, %80, %cst_31 {dimension_numbers = #tpu.dot_dimension_numbers<[1], [0], [0], [1], [0, 0, 1, 1], [], []>} : vector<1x16xbf16>, vector<16x128xbf16>, vector<1x128xf32> -> vector<1x128xf32>
    %82 = arith.addf %58, %81 : vector<1x128xf32>
    %83 = vector.extract_strided_slice %30 {offsets = [0, 32], sizes = [1, 16], strides = [1, 1]} : vector<1x128xf32> to vector<1x16xf32>
    %84 = arith.truncf %83 : vector<1x16xf32> to vector<1x16xbf16>
    %85 = vector.extract_strided_slice %31 {offsets = [0, 32], sizes = [8, 16], strides = [1, 1]} : vector<8x128xf32> to vector<8x16xf32>
    %86 = arith.truncf %85 : vector<8x16xf32> to vector<8x16xbf16>
    %87 = vector.extract_strided_slice %32 {offsets = [0, 32], sizes = [8, 16], strides = [1, 1]} : vector<8x128xf32> to vector<8x16xf32>
    %88 = arith.truncf %87 : vector<8x16xf32> to vector<8x16xbf16>
    %cst_32 = arith.constant dense<0.000000e+00> : vector<1x8xf32>
    %89 = tpu.matmul %84, %86, %cst_32 {dimension_numbers = #tpu.dot_dimension_numbers<[1], [1], [0], [0], [0, 0, 1, 0], [], []>} : vector<1x16xbf16>, vector<8x16xbf16>, vector<1x8xf32> -> vector<1x8xf32>
    %cst_33 = arith.constant 2.500000e-01 : f32
    %90 = vector.broadcast %cst_33 : f32 to vector<1x8xf32>
    %91 = arith.mulf %89, %90 : vector<1x8xf32>
    %cst_34 = arith.constant dense<0xFF800000> : vector<1xf32>
    %92 = vector.multi_reduction <maximumf>, %91, %cst_34 [1] : vector<1x8xf32> to vector<1xf32>
    %93 = vector.shape_cast %92 : vector<1xf32> to vector<1x1xf32>
    %94 = vector.broadcast %93 : vector<1x1xf32> to vector<1x8xf32>
    %95 = arith.subf %91, %94 : vector<1x8xf32>
    %96 = math.exp %95 : vector<1x8xf32>
    %cst_35 = arith.constant dense<0.000000e+00> : vector<1xf32>
    %97 = vector.multi_reduction <add>, %96, %cst_35 [1] : vector<1x8xf32> to vector<1xf32>
    %98 = vector.shape_cast %97 : vector<1xf32> to vector<1x1xf32>
    %99 = vector.broadcast %98 : vector<1x1xf32> to vector<1x8xf32>
    %100 = arith.divf %96, %99 : vector<1x8xf32>
    %101 = arith.truncf %100 : vector<1x8xf32> to vector<1x8xbf16>
    %cst_36 = arith.constant dense<0.000000e+00> : vector<1x16xf32>
    %102 = tpu.matmul %101, %88, %cst_36 {dimension_numbers = #tpu.dot_dimension_numbers<[1], [0], [0], [1], [0, 0, 1, 1], [], []>} : vector<1x8xbf16>, vector<8x16xbf16>, vector<1x16xf32> -> vector<1x16xf32>
    %103 = arith.truncf %102 : vector<1x16xf32> to vector<1x16xbf16>
    %104 = vector.extract_strided_slice %33 {offsets = [32, 0], sizes = [16, 128], strides = [1, 1]} : vector<128x128xbf16> to vector<16x128xbf16>
    %cst_37 = arith.constant dense<0.000000e+00> : vector<1x128xf32>
    %105 = tpu.matmul %103, %104, %cst_37 {dimension_numbers = #tpu.dot_dimension_numbers<[1], [0], [0], [1], [0, 0, 1, 1], [], []>} : vector<1x16xbf16>, vector<16x128xbf16>, vector<1x128xf32> -> vector<1x128xf32>
    %106 = arith.addf %82, %105 : vector<1x128xf32>
    %107 = vector.extract_strided_slice %30 {offsets = [0, 48], sizes = [1, 16], strides = [1, 1]} : vector<1x128xf32> to vector<1x16xf32>
    %108 = arith.truncf %107 : vector<1x16xf32> to vector<1x16xbf16>
    %109 = vector.extract_strided_slice %31 {offsets = [0, 48], sizes = [8, 16], strides = [1, 1]} : vector<8x128xf32> to vector<8x16xf32>
    %110 = arith.truncf %109 : vector<8x16xf32> to vector<8x16xbf16>
    %111 = vector.extract_strided_slice %32 {offsets = [0, 48], sizes = [8, 16], strides = [1, 1]} : vector<8x128xf32> to vector<8x16xf32>
    %112 = arith.truncf %111 : vector<8x16xf32> to vector<8x16xbf16>
    %cst_38 = arith.constant dense<0.000000e+00> : vector<1x8xf32>
    %113 = tpu.matmul %108, %110, %cst_38 {dimension_numbers = #tpu.dot_dimension_numbers<[1], [1], [0], [0], [0, 0, 1, 0], [], []>} : vector<1x16xbf16>, vector<8x16xbf16>, vector<1x8xf32> -> vector<1x8xf32>
    %cst_39 = arith.constant 2.500000e-01 : f32
    %114 = vector.broadcast %cst_39 : f32 to vector<1x8xf32>
    %115 = arith.mulf %113, %114 : vector<1x8xf32>
    %cst_40 = arith.constant dense<0xFF800000> : vector<1xf32>
    %116 = vector.multi_reduction <maximumf>, %115, %cst_40 [1] : vector<1x8xf32> to vector<1xf32>
    %117 = vector.shape_cast %116 : vector<1xf32> to vector<1x1xf32>
    %118 = vector.broadcast %117 : vector<1x1xf32> to vector<1x8xf32>
    %119 = arith.subf %115, %118 : vector<1x8xf32>
    %120 = math.exp %119 : vector<1x8xf32>
    %cst_41 = arith.constant dense<0.000000e+00> : vector<1xf32>
    %121 = vector.multi_reduction <add>, %120, %cst_41 [1] : vector<1x8xf32> to vector<1xf32>
    %122 = vector.shape_cast %121 : vector<1xf32> to vector<1x1xf32>
    %123 = vector.broadcast %122 : vector<1x1xf32> to vector<1x8xf32>
    %124 = arith.divf %120, %123 : vector<1x8xf32>
    %125 = arith.truncf %124 : vector<1x8xf32> to vector<1x8xbf16>
    %cst_42 = arith.constant dense<0.000000e+00> : vector<1x16xf32>
    %126 = tpu.matmul %125, %112, %cst_42 {dimension_numbers = #tpu.dot_dimension_numbers<[1], [0], [0], [1], [0, 0, 1, 1], [], []>} : vector<1x8xbf16>, vector<8x16xbf16>, vector<1x16xf32> -> vector<1x16xf32>
    %127 = arith.truncf %126 : vector<1x16xf32> to vector<1x16xbf16>
    %128 = vector.extract_strided_slice %33 {offsets = [48, 0], sizes = [16, 128], strides = [1, 1]} : vector<128x128xbf16> to vector<16x128xbf16>
    %cst_43 = arith.constant dense<0.000000e+00> : vector<1x128xf32>
    %129 = tpu.matmul %127, %128, %cst_43 {dimension_numbers = #tpu.dot_dimension_numbers<[1], [0], [0], [1], [0, 0, 1, 1], [], []>} : vector<1x16xbf16>, vector<16x128xbf16>, vector<1x128xf32> -> vector<1x128xf32>
    %130 = arith.addf %106, %129 : vector<1x128xf32>
    %131 = vector.extract_strided_slice %30 {offsets = [0, 64], sizes = [1, 16], strides = [1, 1]} : vector<1x128xf32> to vector<1x16xf32>
    %132 = arith.truncf %131 : vector<1x16xf32> to vector<1x16xbf16>
    %133 = vector.extract_strided_slice %31 {offsets = [0, 64], sizes = [8, 16], strides = [1, 1]} : vector<8x128xf32> to vector<8x16xf32>
    %134 = arith.truncf %133 : vector<8x16xf32> to vector<8x16xbf16>
    %135 = vector.extract_strided_slice %32 {offsets = [0, 64], sizes = [8, 16], strides = [1, 1]} : vector<8x128xf32> to vector<8x16xf32>
    %136 = arith.truncf %135 : vector<8x16xf32> to vector<8x16xbf16>
    %cst_44 = arith.constant dense<0.000000e+00> : vector<1x8xf32>
    %137 = tpu.matmul %132, %134, %cst_44 {dimension_numbers = #tpu.dot_dimension_numbers<[1], [1], [0], [0], [0, 0, 1, 0], [], []>} : vector<1x16xbf16>, vector<8x16xbf16>, vector<1x8xf32> -> vector<1x8xf32>
    %cst_45 = arith.constant 2.500000e-01 : f32
    %138 = vector.broadcast %cst_45 : f32 to vector<1x8xf32>
    %139 = arith.mulf %137, %138 : vector<1x8xf32>
    %cst_46 = arith.constant dense<0xFF800000> : vector<1xf32>
    %140 = vector.multi_reduction <maximumf>, %139, %cst_46 [1] : vector<1x8xf32> to vector<1xf32>
    %141 = vector.shape_cast %140 : vector<1xf32> to vector<1x1xf32>
    %142 = vector.broadcast %141 : vector<1x1xf32> to vector<1x8xf32>
    %143 = arith.subf %139, %142 : vector<1x8xf32>
    %144 = math.exp %143 : vector<1x8xf32>
    %cst_47 = arith.constant dense<0.000000e+00> : vector<1xf32>
    %145 = vector.multi_reduction <add>, %144, %cst_47 [1] : vector<1x8xf32> to vector<1xf32>
    %146 = vector.shape_cast %145 : vector<1xf32> to vector<1x1xf32>
    %147 = vector.broadcast %146 : vector<1x1xf32> to vector<1x8xf32>
    %148 = arith.divf %144, %147 : vector<1x8xf32>
    %149 = arith.truncf %148 : vector<1x8xf32> to vector<1x8xbf16>
    %cst_48 = arith.constant dense<0.000000e+00> : vector<1x16xf32>
    %150 = tpu.matmul %149, %136, %cst_48 {dimension_numbers = #tpu.dot_dimension_numbers<[1], [0], [0], [1], [0, 0, 1, 1], [], []>} : vector<1x8xbf16>, vector<8x16xbf16>, vector<1x16xf32> -> vector<1x16xf32>
    %151 = arith.truncf %150 : vector<1x16xf32> to vector<1x16xbf16>
    %152 = vector.extract_strided_slice %33 {offsets = [64, 0], sizes = [16, 128], strides = [1, 1]} : vector<128x128xbf16> to vector<16x128xbf16>
    %cst_49 = arith.constant dense<0.000000e+00> : vector<1x128xf32>
    %153 = tpu.matmul %151, %152, %cst_49 {dimension_numbers = #tpu.dot_dimension_numbers<[1], [0], [0], [1], [0, 0, 1, 1], [], []>} : vector<1x16xbf16>, vector<16x128xbf16>, vector<1x128xf32> -> vector<1x128xf32>
    %154 = arith.addf %130, %153 : vector<1x128xf32>
    %155 = vector.extract_strided_slice %30 {offsets = [0, 80], sizes = [1, 16], strides = [1, 1]} : vector<1x128xf32> to vector<1x16xf32>
    %156 = arith.truncf %155 : vector<1x16xf32> to vector<1x16xbf16>
    %157 = vector.extract_strided_slice %31 {offsets = [0, 80], sizes = [8, 16], strides = [1, 1]} : vector<8x128xf32> to vector<8x16xf32>
    %158 = arith.truncf %157 : vector<8x16xf32> to vector<8x16xbf16>
    %159 = vector.extract_strided_slice %32 {offsets = [0, 80], sizes = [8, 16], strides = [1, 1]} : vector<8x128xf32> to vector<8x16xf32>
    %160 = arith.truncf %159 : vector<8x16xf32> to vector<8x16xbf16>
    %cst_50 = arith.constant dense<0.000000e+00> : vector<1x8xf32>
    %161 = tpu.matmul %156, %158, %cst_50 {dimension_numbers = #tpu.dot_dimension_numbers<[1], [1], [0], [0], [0, 0, 1, 0], [], []>} : vector<1x16xbf16>, vector<8x16xbf16>, vector<1x8xf32> -> vector<1x8xf32>
    %cst_51 = arith.constant 2.500000e-01 : f32
    %162 = vector.broadcast %cst_51 : f32 to vector<1x8xf32>
    %163 = arith.mulf %161, %162 : vector<1x8xf32>
    %cst_52 = arith.constant dense<0xFF800000> : vector<1xf32>
    %164 = vector.multi_reduction <maximumf>, %163, %cst_52 [1] : vector<1x8xf32> to vector<1xf32>
    %165 = vector.shape_cast %164 : vector<1xf32> to vector<1x1xf32>
    %166 = vector.broadcast %165 : vector<1x1xf32> to vector<1x8xf32>
    %167 = arith.subf %163, %166 : vector<1x8xf32>
    %168 = math.exp %167 : vector<1x8xf32>
    %cst_53 = arith.constant dense<0.000000e+00> : vector<1xf32>
    %169 = vector.multi_reduction <add>, %168, %cst_53 [1] : vector<1x8xf32> to vector<1xf32>
    %170 = vector.shape_cast %169 : vector<1xf32> to vector<1x1xf32>
    %171 = vector.broadcast %170 : vector<1x1xf32> to vector<1x8xf32>
    %172 = arith.divf %168, %171 : vector<1x8xf32>
    %173 = arith.truncf %172 : vector<1x8xf32> to vector<1x8xbf16>
    %cst_54 = arith.constant dense<0.000000e+00> : vector<1x16xf32>
    %174 = tpu.matmul %173, %160, %cst_54 {dimension_numbers = #tpu.dot_dimension_numbers<[1], [0], [0], [1], [0, 0, 1, 1], [], []>} : vector<1x8xbf16>, vector<8x16xbf16>, vector<1x16xf32> -> vector<1x16xf32>
    %175 = arith.truncf %174 : vector<1x16xf32> to vector<1x16xbf16>
    %176 = vector.extract_strided_slice %33 {offsets = [80, 0], sizes = [16, 128], strides = [1, 1]} : vector<128x128xbf16> to vector<16x128xbf16>
    %cst_55 = arith.constant dense<0.000000e+00> : vector<1x128xf32>
    %177 = tpu.matmul %175, %176, %cst_55 {dimension_numbers = #tpu.dot_dimension_numbers<[1], [0], [0], [1], [0, 0, 1, 1], [], []>} : vector<1x16xbf16>, vector<16x128xbf16>, vector<1x128xf32> -> vector<1x128xf32>
    %178 = arith.addf %154, %177 : vector<1x128xf32>
    %179 = vector.extract_strided_slice %30 {offsets = [0, 96], sizes = [1, 16], strides = [1, 1]} : vector<1x128xf32> to vector<1x16xf32>
    %180 = arith.truncf %179 : vector<1x16xf32> to vector<1x16xbf16>
    %181 = vector.extract_strided_slice %31 {offsets = [0, 96], sizes = [8, 16], strides = [1, 1]} : vector<8x128xf32> to vector<8x16xf32>
    %182 = arith.truncf %181 : vector<8x16xf32> to vector<8x16xbf16>
    %183 = vector.extract_strided_slice %32 {offsets = [0, 96], sizes = [8, 16], strides = [1, 1]} : vector<8x128xf32> to vector<8x16xf32>
    %184 = arith.truncf %183 : vector<8x16xf32> to vector<8x16xbf16>
    %cst_56 = arith.constant dense<0.000000e+00> : vector<1x8xf32>
    %185 = tpu.matmul %180, %182, %cst_56 {dimension_numbers = #tpu.dot_dimension_numbers<[1], [1], [0], [0], [0, 0, 1, 0], [], []>} : vector<1x16xbf16>, vector<8x16xbf16>, vector<1x8xf32> -> vector<1x8xf32>
    %cst_57 = arith.constant 2.500000e-01 : f32
    %186 = vector.broadcast %cst_57 : f32 to vector<1x8xf32>
    %187 = arith.mulf %185, %186 : vector<1x8xf32>
    %cst_58 = arith.constant dense<0xFF800000> : vector<1xf32>
    %188 = vector.multi_reduction <maximumf>, %187, %cst_58 [1] : vector<1x8xf32> to vector<1xf32>
    %189 = vector.shape_cast %188 : vector<1xf32> to vector<1x1xf32>
    %190 = vector.broadcast %189 : vector<1x1xf32> to vector<1x8xf32>
    %191 = arith.subf %187, %190 : vector<1x8xf32>
    %192 = math.exp %191 : vector<1x8xf32>
    %cst_59 = arith.constant dense<0.000000e+00> : vector<1xf32>
    %193 = vector.multi_reduction <add>, %192, %cst_59 [1] : vector<1x8xf32> to vector<1xf32>
    %194 = vector.shape_cast %193 : vector<1xf32> to vector<1x1xf32>
    %195 = vector.broadcast %194 : vector<1x1xf32> to vector<1x8xf32>
    %196 = arith.divf %192, %195 : vector<1x8xf32>
    %197 = arith.truncf %196 : vector<1x8xf32> to vector<1x8xbf16>
    %cst_60 = arith.constant dense<0.000000e+00> : vector<1x16xf32>
    %198 = tpu.matmul %197, %184, %cst_60 {dimension_numbers = #tpu.dot_dimension_numbers<[1], [0], [0], [1], [0, 0, 1, 1], [], []>} : vector<1x8xbf16>, vector<8x16xbf16>, vector<1x16xf32> -> vector<1x16xf32>
    %199 = arith.truncf %198 : vector<1x16xf32> to vector<1x16xbf16>
    %200 = vector.extract_strided_slice %33 {offsets = [96, 0], sizes = [16, 128], strides = [1, 1]} : vector<128x128xbf16> to vector<16x128xbf16>
    %cst_61 = arith.constant dense<0.000000e+00> : vector<1x128xf32>
    %201 = tpu.matmul %199, %200, %cst_61 {dimension_numbers = #tpu.dot_dimension_numbers<[1], [0], [0], [1], [0, 0, 1, 1], [], []>} : vector<1x16xbf16>, vector<16x128xbf16>, vector<1x128xf32> -> vector<1x128xf32>
    %202 = arith.addf %178, %201 : vector<1x128xf32>
    %203 = vector.extract_strided_slice %30 {offsets = [0, 112], sizes = [1, 16], strides = [1, 1]} : vector<1x128xf32> to vector<1x16xf32>
    %204 = arith.truncf %203 : vector<1x16xf32> to vector<1x16xbf16>
    %205 = vector.extract_strided_slice %31 {offsets = [0, 112], sizes = [8, 16], strides = [1, 1]} : vector<8x128xf32> to vector<8x16xf32>
    %206 = arith.truncf %205 : vector<8x16xf32> to vector<8x16xbf16>
    %207 = vector.extract_strided_slice %32 {offsets = [0, 112], sizes = [8, 16], strides = [1, 1]} : vector<8x128xf32> to vector<8x16xf32>
    %208 = arith.truncf %207 : vector<8x16xf32> to vector<8x16xbf16>
    %cst_62 = arith.constant dense<0.000000e+00> : vector<1x8xf32>
    %209 = tpu.matmul %204, %206, %cst_62 {dimension_numbers = #tpu.dot_dimension_numbers<[1], [1], [0], [0], [0, 0, 1, 0], [], []>} : vector<1x16xbf16>, vector<8x16xbf16>, vector<1x8xf32> -> vector<1x8xf32>
    %cst_63 = arith.constant 2.500000e-01 : f32
    %210 = vector.broadcast %cst_63 : f32 to vector<1x8xf32>
    %211 = arith.mulf %209, %210 : vector<1x8xf32>
    %cst_64 = arith.constant dense<0xFF800000> : vector<1xf32>
    %212 = vector.multi_reduction <maximumf>, %211, %cst_64 [1] : vector<1x8xf32> to vector<1xf32>
    %213 = vector.shape_cast %212 : vector<1xf32> to vector<1x1xf32>
    %214 = vector.broadcast %213 : vector<1x1xf32> to vector<1x8xf32>
    %215 = arith.subf %211, %214 : vector<1x8xf32>
    %216 = math.exp %215 : vector<1x8xf32>
    %cst_65 = arith.constant dense<0.000000e+00> : vector<1xf32>
    %217 = vector.multi_reduction <add>, %216, %cst_65 [1] : vector<1x8xf32> to vector<1xf32>
    %218 = vector.shape_cast %217 : vector<1xf32> to vector<1x1xf32>
    %219 = vector.broadcast %218 : vector<1x1xf32> to vector<1x8xf32>
    %220 = arith.divf %216, %219 : vector<1x8xf32>
    %221 = arith.truncf %220 : vector<1x8xf32> to vector<1x8xbf16>
    %cst_66 = arith.constant dense<0.000000e+00> : vector<1x16xf32>
    %222 = tpu.matmul %221, %208, %cst_66 {dimension_numbers = #tpu.dot_dimension_numbers<[1], [0], [0], [1], [0, 0, 1, 1], [], []>} : vector<1x8xbf16>, vector<8x16xbf16>, vector<1x16xf32> -> vector<1x16xf32>
    %223 = arith.truncf %222 : vector<1x16xf32> to vector<1x16xbf16>
    %224 = vector.extract_strided_slice %33 {offsets = [112, 0], sizes = [16, 128], strides = [1, 1]} : vector<128x128xbf16> to vector<16x128xbf16>
    %cst_67 = arith.constant dense<0.000000e+00> : vector<1x128xf32>
    %225 = tpu.matmul %223, %224, %cst_67 {dimension_numbers = #tpu.dot_dimension_numbers<[1], [0], [0], [1], [0, 0, 1, 1], [], []>} : vector<1x16xbf16>, vector<16x128xbf16>, vector<1x128xf32> -> vector<1x128xf32>
    %226 = arith.addf %202, %225 : vector<1x128xf32>
    %227 = vector.extract_strided_slice %2 {offsets = [2, 0], sizes = [1, 128], strides = [1, 1]} : vector<10x128xf32> to vector<1x128xf32>
    %228 = vector.shape_cast %227 : vector<1x128xf32> to vector<128xf32>
    %229 = vector.shape_cast %228 : vector<128xf32> to vector<1x128xf32>
    %230 = arith.addf %226, %229 : vector<1x128xf32>
    %231 = vector.extract_strided_slice %23 {offsets = [7, 0], sizes = [1, 128], strides = [1, 1]} : vector<8x128xf32> to vector<1x128xf32>
    %232 = arith.addf %231, %230 : vector<1x128xf32>
    %233 = vector.extract_strided_slice %2 {offsets = [3, 0], sizes = [1, 128], strides = [1, 1]} : vector<10x128xf32> to vector<1x128xf32>
    %234 = vector.shape_cast %233 : vector<1x128xf32> to vector<128xf32>
    %235 = vector.extract_strided_slice %2 {offsets = [4, 0], sizes = [1, 128], strides = [1, 1]} : vector<10x128xf32> to vector<1x128xf32>
    %236 = vector.shape_cast %235 : vector<1x128xf32> to vector<128xf32>
    %cst_68 = arith.constant dense<0.000000e+00> : vector<1xf32>
    %237 = vector.multi_reduction <add>, %232, %cst_68 [1] : vector<1x128xf32> to vector<1xf32>
    %238 = vector.shape_cast %237 : vector<1xf32> to vector<1x1xf32>
    %cst_69 = arith.constant 1.280000e+02 : f32
    %239 = vector.broadcast %cst_69 : f32 to vector<1x1xf32>
    %240 = arith.divf %238, %239 : vector<1x1xf32>
    %241 = vector.broadcast %240 : vector<1x1xf32> to vector<1x128xf32>
    %242 = arith.subf %232, %241 : vector<1x128xf32>
    %243 = arith.mulf %242, %242 : vector<1x128xf32>
    %cst_70 = arith.constant dense<0.000000e+00> : vector<1xf32>
    %244 = vector.multi_reduction <add>, %243, %cst_70 [1] : vector<1x128xf32> to vector<1xf32>
    %245 = vector.shape_cast %244 : vector<1xf32> to vector<1x1xf32>
    %cst_71 = arith.constant 1.280000e+02 : f32
    %246 = vector.broadcast %cst_71 : f32 to vector<1x1xf32>
    %247 = arith.divf %245, %246 : vector<1x1xf32>
    %248 = vector.broadcast %240 : vector<1x1xf32> to vector<1x128xf32>
    %249 = arith.subf %232, %248 : vector<1x128xf32>
    %cst_72 = arith.constant 9.99999974E-6 : f32
    %250 = vector.broadcast %cst_72 : f32 to vector<1x1xf32>
    %251 = arith.addf %247, %250 : vector<1x1xf32>
    %252 = math.rsqrt %251 : vector<1x1xf32>
    %253 = vector.broadcast %252 : vector<1x1xf32> to vector<1x128xf32>
    %254 = arith.mulf %249, %253 : vector<1x128xf32>
    %255 = vector.shape_cast %234 : vector<128xf32> to vector<1x128xf32>
    %256 = arith.mulf %254, %255 : vector<1x128xf32>
    %257 = vector.shape_cast %236 : vector<128xf32> to vector<1x128xf32>
    %258 = arith.addf %256, %257 : vector<1x128xf32>
    %259 = arith.truncf %258 : vector<1x128xf32> to vector<1x128xbf16>
    %c0_73 = arith.constant 0 : index
    %c0_74 = arith.constant 0 : index
    %260 = vector.load %arg8[%c0_73, %c0_74] : memref<128x1024xbf16, #tpu.memory_space<vmem>>, vector<128x1024xbf16>
    %cst_75 = arith.constant dense<0.000000e+00> : vector<1x1024xf32>
    %261 = tpu.matmul %259, %260, %cst_75 {dimension_numbers = #tpu.dot_dimension_numbers<[1], [0], [0], [1], [0, 0, 1, 1], [], []>} : vector<1x128xbf16>, vector<128x1024xbf16>, vector<1x1024xf32> -> vector<1x1024xf32>
    %c0_76 = arith.constant 0 : index
    %c0_77 = arith.constant 0 : index
    %262 = vector.load %arg9[%c0_76, %c0_77] : memref<1x1024xf32, #tpu.memory_space<vmem>>, vector<1x1024xf32>
    %263 = arith.addf %261, %262 : vector<1x1024xf32>
    %cst_78 = arith.constant 0.000000e+00 : f32
    %264 = vector.broadcast %cst_78 : f32 to vector<1x1024xf32>
    %265 = arith.maximumf %263, %264 : vector<1x1024xf32>
    %266 = arith.truncf %265 : vector<1x1024xf32> to vector<1x1024xbf16>
    %c0_79 = arith.constant 0 : index
    %c0_80 = arith.constant 0 : index
    %267 = vector.load %arg10[%c0_79, %c0_80] : memref<1024x128xbf16, #tpu.memory_space<vmem>>, vector<1024x128xbf16>
    %cst_81 = arith.constant dense<0.000000e+00> : vector<1x128xf32>
    %268 = tpu.matmul %266, %267, %cst_81 {dimension_numbers = #tpu.dot_dimension_numbers<[1], [0], [0], [1], [0, 0, 1, 1], [], []>} : vector<1x1024xbf16>, vector<1024x128xbf16>, vector<1x128xf32> -> vector<1x128xf32>
    %269 = vector.extract_strided_slice %2 {offsets = [5, 0], sizes = [1, 128], strides = [1, 1]} : vector<10x128xf32> to vector<1x128xf32>
    %270 = vector.shape_cast %269 : vector<1x128xf32> to vector<128xf32>
    %271 = vector.shape_cast %270 : vector<128xf32> to vector<1x128xf32>
    %272 = arith.addf %268, %271 : vector<1x128xf32>
    %273 = arith.addf %258, %272 : vector<1x128xf32>
    %274 = vector.extract_strided_slice %2 {offsets = [6, 0], sizes = [1, 128], strides = [1, 1]} : vector<10x128xf32> to vector<1x128xf32>
    %275 = vector.shape_cast %274 : vector<1x128xf32> to vector<128xf32>
    %276 = vector.extract_strided_slice %2 {offsets = [7, 0], sizes = [1, 128], strides = [1, 1]} : vector<10x128xf32> to vector<1x128xf32>
    %277 = vector.shape_cast %276 : vector<1x128xf32> to vector<128xf32>
    %cst_82 = arith.constant dense<0.000000e+00> : vector<1xf32>
    %278 = vector.multi_reduction <add>, %273, %cst_82 [1] : vector<1x128xf32> to vector<1xf32>
    %279 = vector.shape_cast %278 : vector<1xf32> to vector<1x1xf32>
    %cst_83 = arith.constant 1.280000e+02 : f32
    %280 = vector.broadcast %cst_83 : f32 to vector<1x1xf32>
    %281 = arith.divf %279, %280 : vector<1x1xf32>
    %282 = vector.broadcast %281 : vector<1x1xf32> to vector<1x128xf32>
    %283 = arith.subf %273, %282 : vector<1x128xf32>
    %284 = arith.mulf %283, %283 : vector<1x128xf32>
    %cst_84 = arith.constant dense<0.000000e+00> : vector<1xf32>
    %285 = vector.multi_reduction <add>, %284, %cst_84 [1] : vector<1x128xf32> to vector<1xf32>
    %286 = vector.shape_cast %285 : vector<1xf32> to vector<1x1xf32>
    %cst_85 = arith.constant 1.280000e+02 : f32
    %287 = vector.broadcast %cst_85 : f32 to vector<1x1xf32>
    %288 = arith.divf %286, %287 : vector<1x1xf32>
    %289 = vector.broadcast %281 : vector<1x1xf32> to vector<1x128xf32>
    %290 = arith.subf %273, %289 : vector<1x128xf32>
    %cst_86 = arith.constant 9.99999974E-6 : f32
    %291 = vector.broadcast %cst_86 : f32 to vector<1x1xf32>
    %292 = arith.addf %288, %291 : vector<1x1xf32>
    %293 = math.rsqrt %292 : vector<1x1xf32>
    %294 = vector.broadcast %293 : vector<1x1xf32> to vector<1x128xf32>
    %295 = arith.mulf %290, %294 : vector<1x128xf32>
    %296 = vector.shape_cast %275 : vector<128xf32> to vector<1x128xf32>
    %297 = arith.mulf %295, %296 : vector<1x128xf32>
    %298 = vector.shape_cast %277 : vector<128xf32> to vector<1x128xf32>
    %299 = arith.addf %297, %298 : vector<1x128xf32>
    %300 = arith.truncf %299 : vector<1x128xf32> to vector<1x128xbf16>
    %c0_87 = arith.constant 0 : index
    %c0_88 = arith.constant 0 : index
    %301 = vector.load %arg11[%c0_87, %c0_88] : memref<128x128xbf16, #tpu.memory_space<vmem>>, vector<128x128xbf16>
    %cst_89 = arith.constant dense<0.000000e+00> : vector<1x128xf32>
    %302 = tpu.matmul %300, %301, %cst_89 {dimension_numbers = #tpu.dot_dimension_numbers<[1], [0], [0], [1], [0, 0, 1, 1], [], []>} : vector<1x128xbf16>, vector<128x128xbf16>, vector<1x128xf32> -> vector<1x128xf32>
    %303 = vector.extract_strided_slice %2 {offsets = [8, 0], sizes = [1, 128], strides = [1, 1]} : vector<10x128xf32> to vector<1x128xf32>
    %304 = vector.shape_cast %303 : vector<1x128xf32> to vector<128xf32>
    %305 = vector.shape_cast %304 : vector<128xf32> to vector<1x128xf32>
    %306 = arith.addf %302, %305 : vector<1x128xf32>
    %cst_90 = arith.constant 0.000000e+00 : f32
    %307 = vector.broadcast %cst_90 : f32 to vector<1x128xf32>
    %308 = arith.maximumf %306, %307 : vector<1x128xf32>
    %309 = arith.truncf %308 : vector<1x128xf32> to vector<1x128xbf16>
    %c0_91 = arith.constant 0 : index
    %c0_92 = arith.constant 0 : index
    %310 = vector.load %arg12[%c0_91, %c0_92] : memref<128x128xbf16, #tpu.memory_space<vmem>>, vector<128x128xbf16>
    %cst_93 = arith.constant dense<0.000000e+00> : vector<1x128xf32>
    %311 = tpu.matmul %309, %310, %cst_93 {dimension_numbers = #tpu.dot_dimension_numbers<[1], [0], [0], [1], [0, 0, 1, 1], [], []>} : vector<1x128xbf16>, vector<128x128xbf16>, vector<1x128xf32> -> vector<1x128xf32>
    %312 = vector.extract_strided_slice %2 {offsets = [9, 0], sizes = [1, 128], strides = [1, 1]} : vector<10x128xf32> to vector<1x128xf32>
    %313 = vector.shape_cast %312 : vector<1x128xf32> to vector<128xf32>
    %314 = vector.shape_cast %313 : vector<128xf32> to vector<1x128xf32>
    %315 = arith.addf %311, %314 : vector<1x128xf32>
    %c0_94 = arith.constant 0 : index
    %c0_95 = arith.constant 0 : index
    %316 = vector.load %arg14[%c0_94, %c0_95] : memref<1x128xf32, #tpu.memory_space<vmem>>, vector<1x128xf32>
    tpu.vector_store %arg14[%c0_94, %c0_95], %315 {strides = array<i32>} : memref<1x128xf32, #tpu.memory_space<vmem>>, vector<1x128xf32>,
    return
  }
  func.func @transform_0(%arg0: i32) -> (i32, i32, i32) {
    %c0_i32 = arith.constant 0 : i32
    %c0_i32_0 = arith.constant 0 : i32
    %c0_i32_1 = arith.constant 0 : i32
    %c0_i32_2 = arith.constant 0 : i32
    return %c0_i32, %c0_i32_0, %c0_i32_1 : i32, i32, i32
  }
  func.func @transform_1(%arg0: i32) -> (i32, i32) {
    %c0_i32 = arith.constant 0 : i32
    %c0_i32_0 = arith.constant 0 : i32
    %c0_i32_1 = arith.constant 0 : i32
    return %c0_i32, %c0_i32_0 : i32, i32
  }
  func.func @transform_2(%arg0: i32) -> (i32, i32) {
    %c0_i32 = arith.constant 0 : i32
    %c0_i32_0 = arith.constant 0 : i32
    %c0_i32_1 = arith.constant 0 : i32
    return %c0_i32, %c0_i32_0 : i32, i32
  }
  func.func @transform_3(%arg0: i32) -> (i32, i32) {
    %c0_i32 = arith.constant 0 : i32
    %c0_i32_0 = arith.constant 0 : i32
    %c0_i32_1 = arith.constant 0 : i32
    return %c0_i32, %c0_i32_0 : i32, i32
  }
  func.func @transform_4(%arg0: i32) -> (i32, i32) {
    %c0_i32 = arith.constant 0 : i32
    %c0_i32_0 = arith.constant 0 : i32
    %c0_i32_1 = arith.constant 0 : i32
    return %c0_i32, %c0_i32_0 : i32, i32
  }
  func.func @transform_5(%arg0: i32) -> (i32, i32) {
    %c0_i32 = arith.constant 0 : i32
    %c0_i32_0 = arith.constant 0 : i32
    %c0_i32_1 = arith.constant 0 : i32
    return %c0_i32, %c0_i32_0 : i32, i32
  }
  func.func @transform_6(%arg0: i32) -> (i32, i32) {
    %c0_i32 = arith.constant 0 : i32
    %c0_i32_0 = arith.constant 0 : i32
    %c0_i32_1 = arith.constant 0 : i32
    return %c0_i32, %c0_i32_0 : i32, i32
  }
  func.func @transform_7(%arg0: i32) -> (i32, i32) {
    %c0_i32 = arith.constant 0 : i32
    %c0_i32_0 = arith.constant 0 : i32
    %c0_i32_1 = arith.constant 0 : i32
    return %c0_i32, %c0_i32_0 : i32, i32
  }
  func.func @transform_8(%arg0: i32) -> (i32, i32) {
    %c0_i32 = arith.constant 0 : i32
    %c0_i32_0 = arith.constant 0 : i32
    %c0_i32_1 = arith.constant 0 : i32
    return %c0_i32, %c0_i32_0 : i32, i32
  }
  func.func @transform_9(%arg0: i32) -> (i32, i32) {
    %c0_i32 = arith.constant 0 : i32
    %c0_i32_0 = arith.constant 0 : i32
    %c0_i32_1 = arith.constant 0 : i32
    return %c0_i32, %c0_i32_0 : i32, i32
  }
  func.func @transform_10(%arg0: i32) -> (i32, i32) {
    %c0_i32 = arith.constant 0 : i32
    %c0_i32_0 = arith.constant 0 : i32
    %c0_i32_1 = arith.constant 0 : i32
    return %c0_i32, %c0_i32_0 : i32, i32
  }
  func.func @transform_11(%arg0: i32) -> (i32, i32) {
    %c0_i32 = arith.constant 0 : i32
    %c0_i32_0 = arith.constant 0 : i32
    %c0_i32_1 = arith.constant 0 : i32
    return %c0_i32, %c0_i32_0 : i32, i32
  }
  func.func @transform_12(%arg0: i32) -> (i32, i32) {
    %c0_i32 = arith.constant 0 : i32
    %c0_i32_0 = arith.constant 0 : i32
    %c0_i32_1 = arith.constant 0 : i32
    return %c0_i32, %c0_i32_0 : i32, i32
  }
  func.func @transform_13(%arg0: i32) -> (i32, i32) {
    %c0_i32 = arith.constant 0 : i32
    %c0_i32_0 = arith.constant 0 : i32
    %c0_i32_1 = arith.constant 0 : i32
    return %c0_i32, %c0_i32_0 : i32, i32
  }
}

</mosaic_0001>

<llo_original>
// kernel: tpu_custom_call.1
$region0: #{tpu_custom_call.1}
  #allocation0 [shape = 'u32[]', space=smem, size = 0x4, offset = 0x4, fixed_abs, tag = 'smem constant byte address 0x4 - core index']
  #allocation1 [shape = 'u32[144,128]{1,0:T(1,128)}', space=vmem, size = 0x12000, scoped, tag = 'internal scratch']
  %s0 = inlined_call_operand.hbm [shape: f32[1,8,128], index: 0, kind: input, shape index: {}]
  %s1 = inlined_call_operand.vmem [shape: f32[1,128], index: 1, kind: input, shape index: {}]
  %s2 = inlined_call_operand.hbm [shape: bf16[128,128], index: 2, kind: input, shape index: {}]
  %s3 = inlined_call_operand.hbm [shape: bf16[128,128], index: 3, kind: input, shape index: {}]
  %s4 = inlined_call_operand.hbm [shape: bf16[128,384], index: 4, kind: input, shape index: {}]
  %s5 = inlined_call_operand.vmem [shape: f32[1,384], index: 5, kind: input, shape index: {}]
  %s6 = inlined_call_operand.hbm [shape: bf16[128,128], index: 6, kind: input, shape index: {}]
  %s7 = inlined_call_operand.hbm [shape: bf16[128,1024], index: 7, kind: input, shape index: {}]
  %s8 = inlined_call_operand.hbm [shape: f32[1,1024], index: 8, kind: input, shape index: {}]
  %s9 = inlined_call_operand.hbm [shape: bf16[1024,128], index: 9, kind: input, shape index: {}]
  %s10 = inlined_call_operand.hbm [shape: bf16[128,128], index: 10, kind: input, shape index: {}]
  %s11 = inlined_call_operand.hbm [shape: bf16[128,128], index: 11, kind: input, shape index: {}]
  %s12 = inlined_call_operand.vmem [shape: f32[10,128], index: 12, kind: input, shape index: {}]
  %s13 = inlined_call_operand.hbm [shape: f32[1,128], index: 13, kind: output, shape index: {}]
  %s14 = sld [smem:[#allocation0]]
  $region102: #{tpu_custom_call.1} parent=0
    _
  %s16 = ssub.s32 1, %s14
  %s17 = scalar_select 0, %s16, %s14
  $region1: #{tpu_custom_call.1} parent=0
    #allocation2 [shape = 'u8[4096]{0}', space=vmem, size = 0x1000, scoped, tag = 'input window, operand 0, single buffered']
    #allocation3 [shape = 's32[1]{0}', space=sflag, size = 0x4, scoped, tag = 'scoped memory for tpu_custom_call.1']
    #allocation4 [shape = 's32[1]{0}', space=sflag, size = 0x4, scoped, tag = 'scoped memory for tpu_custom_call.1']
    #allocation5 [shape = 'u8[32768]{0}', space=vmem, size = 0x8000, scoped, tag = 'input window, operand 2, single buffered']
    #allocation6 [shape = 's32[1]{0}', space=sflag, size = 0x4, scoped, tag = 'scoped memory for tpu_custom_call.1']
    #allocation7 [shape = 'u8[32768]{0}', space=vmem, size = 0x8000, scoped, tag = 'input window, operand 3, single buffered']
    #allocation8 [shape = 'u8[98304]{0}', space=vmem, size = 0x18000, scoped, tag = 'input window, operand 4, single buffered']
    #allocation9 [shape = 's32[1]{0}', space=sflag, size = 0x4, scoped, tag = 'scoped memory for tpu_custom_call.1']
    #allocation10 [shape = 'u8[32768]{0}', space=vmem, size = 0x8000, scoped, tag = 'input window, operand 6, single buffered']
    #allocation11 [shape = 'u8[262144]{0}', space=vmem, size = 0x40000, scoped, tag = 'input window, operand 7, single buffered']
    #allocation12 [shape = 's32[1]{0}', space=sflag, size = 0x4, scoped, tag = 'scoped memory for tpu_custom_call.1']
    #allocation13 [shape = 'u8[4096]{0}', space=vmem, size = 0x1000, scoped, tag = 'input window, operand 8, single buffered']
    #allocation14 [shape = 'u8[262144]{0}', space=vmem, size = 0x40000, scoped, tag = 'input window, operand 9, single buffered']
    #allocation15 [shape = 's32[1]{0}', space=sflag, size = 0x4, scoped, tag = 'scoped memory for tpu_custom_call.1']
    #allocation16 [shape = 'u8[32768]{0}', space=vmem, size = 0x8000, scoped, tag = 'input window, operand 10, single buffered']
    #allocation17 [shape = 'u8[32768]{0}', space=vmem, size = 0x8000, scoped, tag = 'input window, operand 11, single buffered']
    #allocation18 [shape = 's32[1]{0}', space=sflag, size = 0x4, scoped, tag = 'scoped memory for tpu_custom_call.1']
    #allocation19 [shape = 'u8[512]{0}', space=vmem, size = 0x400, scoped, tag = 'output window, operand 0, single buffered']
    %18 = vsyncpa [#allocation3], 0
    %19 = vsyncpa [#allocation6], 0
    %20 = vsyncpa [#allocation9], 0
    %21 = vsyncpa [#allocation12], 0
    %22 = vsyncpa [#allocation15], 0
    %23 = vsyncpa [#allocation18], 0
    %24 = vsyncpa [#allocation4], 0
    // Predicated region
    $region2: #{tpu_custom_call.1} parent=1 // pred_check
      _
    $region3: #{tpu_custom_call.1} parent=1 // pred_check_branch
      %26 = sbr.rel (0) target = $region5
    $region4: #{tpu_custom_call.1} parent=1 // pred_region
      %s28 = ssub.s32 128, 128
      %29 = vsyncadd [#allocation3], %s28
      %s31 = sshll.u32 [#allocation2], 4
      %s32 = int_to_ptr.vmem [resolvable:$true] %s31
      %34 = dma.hbm_to_vmem [thread:$0]  %s0, 128, %s32, [#allocation3]
    $region5: #{tpu_custom_call.1} parent=1 // pred_fallthru
      _
    // Predicated region
    $region6: #{tpu_custom_call.1} parent=1 // pred_check
      _
    $region7: #{tpu_custom_call.1} parent=1 // pred_check_branch
      %36 = sbr.rel (0) target = $region9
    $region8: #{tpu_custom_call.1} parent=1 // pred_region
      _
    $region9: #{tpu_custom_call.1} parent=1 // pred_fallthru
      _
    // Predicated region
    $region10: #{tpu_custom_call.1} parent=1 // pred_check
      _
    $region11: #{tpu_custom_call.1} parent=1 // pred_check_branch
      %38 = sbr.rel (0) target = $region13
    $region12: #{tpu_custom_call.1} parent=1 // pred_region
      %s40 = ssub.s32 1024, 1024
      %41 = vsyncadd [#allocation6], %s40
      %s42 = sshll.u32 [#allocation5], 4
      %s43 = int_to_ptr.vmem [resolvable:$true] %s42
      %48 = dma.hbm_to_vmem [thread:$0]  %s2, 1024, %s43, [#allocation6], 64, 64, 4
    $region13: #{tpu_custom_call.1} parent=1 // pred_fallthru
      _
    // Predicated region
    $region14: #{tpu_custom_call.1} parent=1 // pred_check
      _
    $region15: #{tpu_custom_call.1} parent=1 // pred_check_branch
      %50 = sbr.rel (0) target = $region17
    $region16: #{tpu_custom_call.1} parent=1 // pred_region
      %s52 = ssub.s32 1024, 1024
      %53 = vsyncadd [#allocation6], %s52
      %s54 = sshll.u32 [#allocation7], 4
      %s55 = int_to_ptr.vmem [resolvable:$true] %s54
      %60 = dma.hbm_to_vmem [thread:$0]  %s3, 1024, %s55, [#allocation6], 64, 64, 4
    $region17: #{tpu_custom_call.1} parent=1 // pred_fallthru
      _
    // Predicated region
    $region18: #{tpu_custom_call.1} parent=1 // pred_check
      _
    $region19: #{tpu_custom_call.1} parent=1 // pred_check_branch
      %62 = sbr.rel (0) target = $region21
    $region20: #{tpu_custom_call.1} parent=1 // pred_region
      %s64 = ssub.s32 3072, 3072
      %65 = vsyncadd [#allocation9], %s64
      %s66 = sshll.u32 [#allocation8], 4
      %s67 = int_to_ptr.vmem [resolvable:$true] %s66
      %72 = dma.hbm_to_vmem [thread:$0]  %s4, 3072, %s67, [#allocation9], 192, 192, 12
    $region21: #{tpu_custom_call.1} parent=1 // pred_fallthru
      _
    // Predicated region
    $region22: #{tpu_custom_call.1} parent=1 // pred_check
      _
    $region23: #{tpu_custom_call.1} parent=1 // pred_check_branch
      %74 = sbr.rel (0) target = $region25
    $region24: #{tpu_custom_call.1} parent=1 // pred_region
      _
    $region25: #{tpu_custom_call.1} parent=1 // pred_fallthru
      _
    // Predicated region
    $region26: #{tpu_custom_call.1} parent=1 // pred_check
      _
    $region27: #{tpu_custom_call.1} parent=1 // pred_check_branch
      %76 = sbr.rel (0) target = $region29
    $region28: #{tpu_custom_call.1} parent=1 // pred_region
      %s78 = ssub.s32 1024, 1024
      %79 = vsyncadd [#allocation9], %s78
      %s80 = sshll.u32 [#allocation10], 4
      %s81 = int_to_ptr.vmem [resolvable:$true] %s80
      %86 = dma.hbm_to_vmem [thread:$0]  %s6, 1024, %s81, [#allocation9], 64, 64, 4
    $region29: #{tpu_custom_call.1} parent=1 // pred_fallthru
      _
    // Predicated region
    $region30: #{tpu_custom_call.1} parent=1 // pred_check
      _
    $region31: #{tpu_custom_call.1} parent=1 // pred_check_branch
      %88 = sbr.rel (0) target = $region33
    $region32: #{tpu_custom_call.1} parent=1 // pred_region
      %s90 = ssub.s32 8192, 8192
      %91 = vsyncadd [#allocation12], %s90
      %s92 = sshll.u32 [#allocation11], 4
      %s93 = int_to_ptr.vmem [resolvable:$true] %s92
      %98 = dma.hbm_to_vmem [thread:$0]  %s7, 8192, %s93, [#allocation12], 512, 512, 32
    $region33: #{tpu_custom_call.1} parent=1 // pred_fallthru
      _
    // Predicated region
    $region34: #{tpu_custom_call.1} parent=1 // pred_check
      _
    $region35: #{tpu_custom_call.1} parent=1 // pred_check_branch
      %100 = sbr.rel (0) target = $region37
    $region36: #{tpu_custom_call.1} parent=1 // pred_region
      %s102 = ssub.s32 128, 128
      %103 = vsyncadd [#allocation12], %s102
      %s105 = sshll.u32 [#allocation13], 4
      %s106 = int_to_ptr.vmem [resolvable:$true] %s105
      %108 = dma.hbm_to_vmem [thread:$0]  %s8, 128, %s106, [#allocation12]
    $region37: #{tpu_custom_call.1} parent=1 // pred_fallthru
      _
    // Predicated region
    $region38: #{tpu_custom_call.1} parent=1 // pred_check
      _
    $region39: #{tpu_custom_call.1} parent=1 // pred_check_branch
      %110 = sbr.rel (0) target = $region41
    $region40: #{tpu_custom_call.1} parent=1 // pred_region
      %s112 = ssub.s32 8192, 8192
      %113 = vsyncadd [#allocation15], %s112
      %s114 = sshll.u32 [#allocation14], 4
      %s115 = int_to_ptr.vmem [resolvable:$true] %s114
      %120 = dma.hbm_to_vmem [thread:$0]  %s9, 8192, %s115, [#allocation15], 64, 64, 4
    $region41: #{tpu_custom_call.1} parent=1 // pred_fallthru
      _
    // Predicated region
    $region42: #{tpu_custom_call.1} parent=1 // pred_check
      _
    $region43: #{tpu_custom_call.1} parent=1 // pred_check_branch
      %122 = sbr.rel (0) target = $region45
    $region44: #{tpu_custom_call.1} parent=1 // pred_region
      %s124 = ssub.s32 1024, 1024
      %125 = vsyncadd [#allocation15], %s124
      %s126 = sshll.u32 [#allocation16], 4
      %s127 = int_to_ptr.vmem [resolvable:$true] %s126
      %132 = dma.hbm_to_vmem [thread:$0]  %s10, 1024, %s127, [#allocation15], 64, 64, 4
    $region45: #{tpu_custom_call.1} parent=1 // pred_fallthru
      _
    // Predicated region
    $region46: #{tpu_custom_call.1} parent=1 // pred_check
      _
    $region47: #{tpu_custom_call.1} parent=1 // pred_check_branch
      %134 = sbr.rel (0) target = $region49
    $region48: #{tpu_custom_call.1} parent=1 // pred_region
      %s136 = ssub.s32 1024, 1024
      %137 = vsyncadd [#allocation18], %s136
      %s138 = sshll.u32 [#allocation17], 4
      %s139 = int_to_ptr.vmem [resolvable:$true] %s138
      %144 = dma.hbm_to_vmem [thread:$0]  %s11, 1024, %s139, [#allocation18], 64, 64, 4
    $region49: #{tpu_custom_call.1} parent=1 // pred_fallthru
      _
    // Predicated region
    $region50: #{tpu_custom_call.1} parent=1 // pred_check
      _
    $region51: #{tpu_custom_call.1} parent=1 // pred_check_branch
      %146 = sbr.rel (0) target = $region53
    $region52: #{tpu_custom_call.1} parent=1 // pred_region
      _
    $region53: #{tpu_custom_call.1} parent=1 // pred_fallthru
      _
    // Predicated region
    $region54: #{tpu_custom_call.1} parent=1 // pred_check
      _
    $region55: #{tpu_custom_call.1} parent=1 // pred_check_branch
      %148 = sbr.rel (0) target = $region57
    $region56: #{tpu_custom_call.1} parent=1 // pred_region
      %149 = dma.done [#allocation3], 128
    $region57: #{tpu_custom_call.1} parent=1 // pred_fallthru
      _
    // Predicated region
    $region58: #{tpu_custom_call.1} parent=1 // pred_check
      _
    $region59: #{tpu_custom_call.1} parent=1 // pred_check_branch
      %151 = sbr.rel (0) target = $region61
    $region60: #{tpu_custom_call.1} parent=1 // pred_region
      %152 = dma.done [#allocation6], 1024
    $region61: #{tpu_custom_call.1} parent=1 // pred_fallthru
      _
    // Predicated region
    $region62: #{tpu_custom_call.1} parent=1 // pred_check
      _
    $region63: #{tpu_custom_call.1} parent=1 // pred_check_branch
      %154 = sbr.rel (0) target = $region65
    $region64: #{tpu_custom_call.1} parent=1 // pred_region
      %155 = dma.done [#allocation6], 1024
    $region65: #{tpu_custom_call.1} parent=1 // pred_fallthru
      _
    // Predicated region
    $region66: #{tpu_custom_call.1} parent=1 // pred_check
      _
    $region67: #{tpu_custom_call.1} parent=1 // pred_check_branch
      %157 = sbr.rel (0) target = $region69
    $region68: #{tpu_custom_call.1} parent=1 // pred_region
      %158 = dma.done [#allocation9], 3072
    $region69: #{tpu_custom_call.1} parent=1 // pred_fallthru
      _
    // Predicated region
    $region70: #{tpu_custom_call.1} parent=1 // pred_check
      _
    $region71: #{tpu_custom_call.1} parent=1 // pred_check_branch
      %160 = sbr.rel (0) target = $region73
    $region72: #{tpu_custom_call.1} parent=1 // pred_region
      %161 = dma.done [#allocation9], 1024
    $region73: #{tpu_custom_call.1} parent=1 // pred_fallthru
      _
    // Predicated region
    $region74: #{tpu_custom_call.1} parent=1 // pred_check
      _
    $region75: #{tpu_custom_call.1} parent=1 // pred_check_branch
      %163 = sbr.rel (0) target = $region77
    $region76: #{tpu_custom_call.1} parent=1 // pred_region
      %164 = dma.done [#allocation12], 8192
    $region77: #{tpu_custom_call.1} parent=1 // pred_fallthru
      _
    // Predicated region
    $region78: #{tpu_custom_call.1} parent=1 // pred_check
      _
    $region79: #{tpu_custom_call.1} parent=1 // pred_check_branch
      %166 = sbr.rel (0) target = $region81
    $region80: #{tpu_custom_call.1} parent=1 // pred_region
      %167 = dma.done [#allocation12], 128
    $region81: #{tpu_custom_call.1} parent=1 // pred_fallthru
      _
    // Predicated region
    $region82: #{tpu_custom_call.1} parent=1 // pred_check
      _
    $region83: #{tpu_custom_call.1} parent=1 // pred_check_branch
      %169 = sbr.rel (0) target = $region85
    $region84: #{tpu_custom_call.1} parent=1 // pred_region
      %170 = dma.done [#allocation15], 8192
    $region85: #{tpu_custom_call.1} parent=1 // pred_fallthru
      _
    // Predicated region
    $region86: #{tpu_custom_call.1} parent=1 // pred_check
      _
    $region87: #{tpu_custom_call.1} parent=1 // pred_check_branch
      %172 = sbr.rel (0) target = $region89
    $region88: #{tpu_custom_call.1} parent=1 // pred_region
      %173 = dma.done [#allocation15], 1024
    $region89: #{tpu_custom_call.1} parent=1 // pred_fallthru
      _
    // Predicated region
    $region90: #{tpu_custom_call.1} parent=1 // pred_check
      _
    $region91: #{tpu_custom_call.1} parent=1 // pred_check_branch
      %175 = sbr.rel (0) target = $region93
    $region92: #{tpu_custom_call.1} parent=1 // pred_region
      %176 = dma.done [#allocation18], 1024
    $region93: #{tpu_custom_call.1} parent=1 // pred_fallthru
      _
    %v178 = vld [vmem:[#allocation2] sm:$0xff]
    %v179 = vld [vmem:[%s12] sm:$0xff]
    %v180 = vld [vmem:[%s12 + $0x8] sm:$0x3]
    %v181 = vpack.c.bf16 %v178, %v178
    %v182 = vld [vmem:[#allocation5] sm:$0xf]
    %v183 = vld [vmem:[#allocation5 + $0x4] sm:$0xf]
    %v184 = vld [vmem:[#allocation5 + $0x8] sm:$0xf]
    %v185 = vld [vmem:[#allocation5 + $0xc] sm:$0xf]
    %v186 = vld [vmem:[#allocation5 + $0x10] sm:$0xf]
    %v187 = vld [vmem:[#allocation5 + $0x14] sm:$0xf]
    %v188 = vld [vmem:[#allocation5 + $0x18] sm:$0xf]
    %v189 = vld [vmem:[#allocation5 + $0x1c] sm:$0xf]
    %v190 = vld [vmem:[#allocation5 + $0x20] sm:$0xf]
    %v191 = vld [vmem:[#allocation5 + $0x24] sm:$0xf]
    %v192 = vld [vmem:[#allocation5 + $0x28] sm:$0xf]
    %v193 = vld [vmem:[#allocation5 + $0x2c] sm:$0xf]
    %v194 = vld [vmem:[#allocation5 + $0x30] sm:$0xf]
    %v195 = vld [vmem:[#allocation5 + $0x34] sm:$0xf]
    %v196 = vld [vmem:[#allocation5 + $0x38] sm:$0xf]
    %v197 = vld [vmem:[#allocation5 + $0x3c] sm:$0xf]
    %v198 = vlaneseq
    %v199 = vshrl.u32 %v198, 7
    %v200 = vsub.s32 0, %v199
    %v201 = vrot.slane %v179, %v200
    %v218 = vunpack.c.l.b16 %v182
    %v219 = vunpack.c.l.b16 %v183
    %v220 = vunpack.c.l.b16 %v184
    %v221 = vunpack.c.l.b16 %v185
    %v222 = vunpack.c.l.b16 %v186
    %v223 = vunpack.c.l.b16 %v187
    %v224 = vunpack.c.l.b16 %v188
    %v225 = vunpack.c.l.b16 %v189
    %v226 = vunpack.c.l.b16 %v190
    %v227 = vunpack.c.l.b16 %v191
    %v228 = vunpack.c.l.b16 %v192
    %v229 = vunpack.c.l.b16 %v193
    %v230 = vunpack.c.l.b16 %v194
    %v231 = vunpack.c.l.b16 %v195
    %v232 = vunpack.c.l.b16 %v196
    %v233 = vunpack.c.l.b16 %v197
    %v234 = vpack.c.b16 %v219, %v218
    %v235 = vpack.c.b16 %v221, %v220
    %v236 = vpack.c.b16 %v223, %v222
    %v237 = vpack.c.b16 %v225, %v224
    %v238 = vpack.c.b16 %v227, %v226
    %v239 = vpack.c.b16 %v229, %v228
    %v240 = vpack.c.b16 %v231, %v230
    %v241 = vpack.c.b16 %v233, %v232
    %250 = vmatprep.subr.bf16.mxu0 0
    %251 = vmatpush1.bf16.msra.mxu0 %v241
    %252 = vmatprep.subr.bf16.mxu0 0
    %253 = vmatpush1.bf16.msra.mxu0 %v240
    %254 = vmatprep.subr.bf16.mxu0 0
    %255 = vmatpush1.bf16.msra.mxu0 %v239
    %256 = vmatprep.subr.bf16.mxu0 0
    %257 = vmatpush1.bf16.msra.mxu0 %v238
    %258 = vmatprep.subr.bf16.mxu0 0
    %259 = vmatpush1.bf16.msra.mxu0 %v237
    %260 = vmatprep.subr.bf16.mxu0 0
    %261 = vmatpush1.bf16.msra.mxu0 %v236
    %262 = vmatprep.subr.bf16.mxu0 0
    %263 = vmatpush1.bf16.msra.mxu0 %v235
    %264 = vmatprep.subr.bf16.mxu0 0
    %265 = vmatpush1.bf16.msra.mxu0 %v234
    %266 = vmatprep.subr.bf16.mxu0 0
    %267 = vmatpush2.bf16.msra.mxu0 0
    %268 = vmatprep.subr.bf16.mxu0 0
    %269 = vmatpush2.bf16.msra.mxu0 0
    %270 = vmatprep.subr.bf16.mxu0 0
    %271 = vmatpush2.bf16.msra.mxu0 0
    %272 = vmatprep.subr.bf16.mxu0 0
    %273 = vmatpush2.bf16.msra.mxu0 0
    %274 = vmatprep.subr.bf16.mxu0 0
    %275 = vmatpush2.bf16.msra.mxu0 0
    %276 = vmatprep.subr.bf16.mxu0 0
    %277 = vmatpush2.bf16.msra.mxu0 0
    %278 = vmatprep.subr.bf16.mxu0 0
    %279 = vmatpush2.bf16.msra.mxu0 0
    %280 = vmatprep.subr.bf16.mxu0 0
    %281 = vmatpush2.bf16.msra.mxu0 0
    %282 = vmatprep.mubr.bf16.mxu0 0
    %283 = vmatmul.mubr.bf16.gmra.mxu0 %v181
    %v284 = vpop.f32.mrf.mxu0
    %v285 = vadd.f32 %v201, %v284
    %v286 = vpop.f32.mrf.mxu0
    %v287 = vpop.f32.mrf.mxu0
    %v288 = vpop.f32.mrf.mxu0
    %289 = vdwg.mxu0
    %v290 = vmax.f32 %v285, 0.0
    %v291 = vpack.c.bf16 %v290, %v290
    %v292 = vld [vmem:[#allocation7] sm:$0xf]
    %v293 = vld [vmem:[#allocation7 + $0x4] sm:$0xf]
    %v294 = vld [vmem:[#allocation7 + $0x8] sm:$0xf]
    %v295 = vld [vmem:[#allocation7 + $0xc] sm:$0xf]
    %v296 = vld [vmem:[#allocation7 + $0x10] sm:$0xf]
    %v297 = vld [vmem:[#allocation7 + $0x14] sm:$0xf]
    %v298 = vld [vmem:[#allocation7 + $0x18] sm:$0xf]
    %v299 = vld [vmem:[#allocation7 + $0x1c] sm:$0xf]
    %v300 = vld [vmem:[#allocation7 + $0x20] sm:$0xf]
    %v301 = vld [vmem:[#allocation7 + $0x24] sm:$0xf]
    %v302 = vld [vmem:[#allocation7 + $0x28] sm:$0xf]
    %v303 = vld [vmem:[#allocation7 + $0x2c] sm:$0xf]
    %v304 = vld [vmem:[#allocation7 + $0x30] sm:$0xf]
    %v305 = vld [vmem:[#allocation7 + $0x34] sm:$0xf]
    %v306 = vld [vmem:[#allocation7 + $0x38] sm:$0xf]
    %v307 = vld [vmem:[#allocation7 + $0x3c] sm:$0xf]
    %v308 = vlaneseq
    %v309 = vshrl.u32 %v308, 7
    %v310 = vsub.s32 1, %v309
    %v311 = vrot.slane %v179, %v310
    %v328 = vunpack.c.l.b16 %v292
    %v329 = vunpack.c.l.b16 %v293
    %v330 = vunpack.c.l.b16 %v294
    %v331 = vunpack.c.l.b16 %v295
    %v332 = vunpack.c.l.b16 %v296
    %v333 = vunpack.c.l.b16 %v297
    %v334 = vunpack.c.l.b16 %v298
    %v335 = vunpack.c.l.b16 %v299
    %v336 = vunpack.c.l.b16 %v300
    %v337 = vunpack.c.l.b16 %v301
    %v338 = vunpack.c.l.b16 %v302
    %v339 = vunpack.c.l.b16 %v303
    %v340 = vunpack.c.l.b16 %v304
    %v341 = vunpack.c.l.b16 %v305
    %v342 = vunpack.c.l.b16 %v306
    %v343 = vunpack.c.l.b16 %v307
    %v344 = vpack.c.b16 %v329, %v328
    %v345 = vpack.c.b16 %v331, %v330
    %v346 = vpack.c.b16 %v333, %v332
    %v347 = vpack.c.b16 %v335, %v334
    %v348 = vpack.c.b16 %v337, %v336
    %v349 = vpack.c.b16 %v339, %v338
    %v350 = vpack.c.b16 %v341, %v340
    %v351 = vpack.c.b16 %v343, %v342
    %360 = vmatprep.subr.bf16.mxu0 0
    %361 = vmatpush1.bf16.msra.mxu0 %v351
    %362 = vmatprep.subr.bf16.mxu0 0
    %363 = vmatpush1.bf16.msra.mxu0 %v350
    %364 = vmatprep.subr.bf16.mxu0 0
    %365 = vmatpush1.bf16.msra.mxu0 %v349
    %366 = vmatprep.subr.bf16.mxu0 0
    %367 = vmatpush1.bf16.msra.mxu0 %v348
    %368 = vmatprep.subr.bf16.mxu0 0
    %369 = vmatpush1.bf16.msra.mxu0 %v347
    %370 = vmatprep.subr.bf16.mxu0 0
    %371 = vmatpush1.bf16.msra.mxu0 %v346
    %372 = vmatprep.subr.bf16.mxu0 0
    %373 = vmatpush1.bf16.msra.mxu0 %v345
    %374 = vmatprep.subr.bf16.mxu0 0
    %375 = vmatpush1.bf16.msra.mxu0 %v344
    %376 = vmatprep.subr.bf16.mxu0 0
    %377 = vmatpush2.bf16.msra.mxu0 0
    %378 = vmatprep.subr.bf16.mxu0 0
    %379 = vmatpush2.bf16.msra.mxu0 0
    %380 = vmatprep.subr.bf16.mxu0 0
    %381 = vmatpush2.bf16.msra.mxu0 0
    %382 = vmatprep.subr.bf16.mxu0 0
    %383 = vmatpush2.bf16.msra.mxu0 0
    %384 = vmatprep.subr.bf16.mxu0 0
    %385 = vmatpush2.bf16.msra.mxu0 0
    %386 = vmatprep.subr.bf16.mxu0 0
    %387 = vmatpush2.bf16.msra.mxu0 0
    %388 = vmatprep.subr.bf16.mxu0 0
    %389 = vmatpush2.bf16.msra.mxu0 0
    %390 = vmatprep.subr.bf16.mxu0 0
    %391 = vmatpush2.bf16.msra.mxu0 0
    %392 = vmatprep.mubr.bf16.mxu0 0
    %393 = vmatmul.mubr.bf16.gmra.mxu0 %v291
    %v394 = vpop.f32.mrf.mxu0
    %v395 = vadd.f32 %v311, %v394
    %v396 = vpop.f32.mrf.mxu0
    %v397 = vpop.f32.mrf.mxu0
    %v398 = vpop.f32.mrf.mxu0
    %399 = vdwg.mxu0
    %v400 = vld [vmem:[%s1] sm:$0x1]
    %v402 = vlaneseq
    %v403 = vshrl.u32 %v402, 7
    %v404 = vsub.s32 0, %v403
    %v405 = vrot.slane %v400, %v404
    %v407 = vadd.f32 %v395, %v405
    %v408 = vpack.c.bf16 %v407, %v407
    %v409 = vld [vmem:[#allocation8] sm:$0xff]
    %v410 = vld [vmem:[#allocation8 + $0x8] sm:$0xf]
    %v411 = vld [vmem:[#allocation8 + $0xc] sm:$0xff]
    %v412 = vld [vmem:[#allocation8 + $0x14] sm:$0xf]
    %v413 = vld [vmem:[#allocation8 + $0x18] sm:$0xff]
    %v414 = vld [vmem:[#allocation8 + $0x20] sm:$0xf]
    %v415 = vld [vmem:[#allocation8 + $0x24] sm:$0xff]
    %v416 = vld [vmem:[#allocation8 + $0x2c] sm:$0xf]
    %v417 = vld [vmem:[#allocation8 + $0x30] sm:$0xff]
    %v418 = vld [vmem:[#allocation8 + $0x38] sm:$0xf]
    %v419 = vld [vmem:[#allocation8 + $0x3c] sm:$0xff]
    %v420 = vld [vmem:[#allocation8 + $0x44] sm:$0xf]
    %v421 = vld [vmem:[#allocation8 + $0x48] sm:$0xff]
    %v422 = vld [vmem:[#allocation8 + $0x50] sm:$0xf]
    %v423 = vld [vmem:[#allocation8 + $0x54] sm:$0xff]
    %v424 = vld [vmem:[#allocation8 + $0x5c] sm:$0xf]
    %v425 = vld [vmem:[#allocation8 + $0x60] sm:$0xff]
    %v426 = vld [vmem:[#allocation8 + $0x68] sm:$0xf]
    %v427 = vld [vmem:[#allocation8 + $0x6c] sm:$0xff]
    %v428 = vld [vmem:[#allocation8 + $0x74] sm:$0xf]
    %v429 = vld [vmem:[#allocation8 + $0x78] sm:$0xff]
    %v430 = vld [vmem:[#allocation8 + $0x80] sm:$0xf]
    %v431 = vld [vmem:[#allocation8 + $0x84] sm:$0xff]
    %v432 = vld [vmem:[#allocation8 + $0x8c] sm:$0xf]
    %v433 = vld [vmem:[#allocation8 + $0x90] sm:$0xff]
    %v434 = vld [vmem:[#allocation8 + $0x98] sm:$0xf]
    %v435 = vld [vmem:[#allocation8 + $0x9c] sm:$0xff]
    %v436 = vld [vmem:[#allocation8 + $0xa4] sm:$0xf]
    %v437 = vld [vmem:[#allocation8 + $0xa8] sm:$0xff]
    %v438 = vld [vmem:[#allocation8 + $0xb0] sm:$0xf]
    %v439 = vld [vmem:[#allocation8 + $0xb4] sm:$0xff]
    %v440 = vld [vmem:[#allocation8 + $0xbc] sm:$0xf]
    %v441 = vld [vmem:[%s5] sm:$0x7]
    %v443 = vlaneseq
    %v444 = vshrl.u32 %v443, 7
    %v445 = vsub.s32 0, %v444
    %v446 = vrot.slane %v441, %v445
    %v447 = vlaneseq
    %v448 = vshrl.u32 %v447, 7
    %v449 = vsub.s32 1, %v448
    %v450 = vrot.slane %v441, %v449
    %v451 = vlaneseq
    %v452 = vshrl.u32 %v451, 7
    %v453 = vsub.s32 2, %v452
    %v454 = vrot.slane %v441, %v453
    %v490 = vunpack.c.l.b16 %v409
    %v491 = vunpack.c.h.b16 %v409
    %v492 = vunpack.c.l.b16 %v410
    %v493 = vunpack.c.l.b16 %v411
    %v494 = vunpack.c.h.b16 %v411
    %v495 = vunpack.c.l.b16 %v412
    %v496 = vunpack.c.l.b16 %v413
    %v497 = vunpack.c.h.b16 %v413
    %v498 = vunpack.c.l.b16 %v414
    %v499 = vunpack.c.l.b16 %v415
    %v500 = vunpack.c.h.b16 %v415
    %v501 = vunpack.c.l.b16 %v416
    %v502 = vunpack.c.l.b16 %v417
    %v503 = vunpack.c.h.b16 %v417
    %v504 = vunpack.c.l.b16 %v418
    %v505 = vunpack.c.l.b16 %v419
    %v506 = vunpack.c.h.b16 %v419
    %v507 = vunpack.c.l.b16 %v420
    %v508 = vunpack.c.l.b16 %v421
    %v509 = vunpack.c.h.b16 %v421
    %v510 = vunpack.c.l.b16 %v422
    %v511 = vunpack.c.l.b16 %v423
    %v512 = vunpack.c.h.b16 %v423
    %v513 = vunpack.c.l.b16 %v424
    %v514 = vunpack.c.l.b16 %v425
    %v515 = vunpack.c.h.b16 %v425
    %v516 = vunpack.c.l.b16 %v426
    %v517 = vunpack.c.l.b16 %v427
    %v518 = vunpack.c.h.b16 %v427
    %v519 = vunpack.c.l.b16 %v428
    %v520 = vunpack.c.l.b16 %v429
    %v521 = vunpack.c.h.b16 %v429
    %v522 = vunpack.c.l.b16 %v430
    %v523 = vunpack.c.l.b16 %v431
    %v524 = vunpack.c.h.b16 %v431
    %v525 = vunpack.c.l.b16 %v432
    %v526 = vunpack.c.l.b16 %v433
    %v527 = vunpack.c.h.b16 %v433
    %v528 = vunpack.c.l.b16 %v434
    %v529 = vunpack.c.l.b16 %v435
    %v530 = vunpack.c.h.b16 %v435
    %v531 = vunpack.c.l.b16 %v436
    %v532 = vunpack.c.l.b16 %v437
    %v533 = vunpack.c.h.b16 %v437
    %v534 = vunpack.c.l.b16 %v438
    %v535 = vunpack.c.l.b16 %v439
    %v536 = vunpack.c.h.b16 %v439
    %v537 = vunpack.c.l.b16 %v440
    %v538 = vpack.c.b16 %v493, %v490
    %v539 = vpack.c.b16 %v494, %v491
    %v540 = vpack.c.b16 %v495, %v492
    %v541 = vpack.c.b16 %v499, %v496
    %v542 = vpack.c.b16 %v500, %v497
    %v543 = vpack.c.b16 %v501, %v498
    %v544 = vpack.c.b16 %v505, %v502
    %v545 = vpack.c.b16 %v506, %v503
    %v546 = vpack.c.b16 %v507, %v504
    %v547 = vpack.c.b16 %v511, %v508
    %v548 = vpack.c.b16 %v512, %v509
    %v549 = vpack.c.b16 %v513, %v510
    %v550 = vpack.c.b16 %v517, %v514
    %v551 = vpack.c.b16 %v518, %v515
    %v552 = vpack.c.b16 %v519, %v516
    %v553 = vpack.c.b16 %v523, %v520
    %v554 = vpack.c.b16 %v524, %v521
    %v555 = vpack.c.b16 %v525, %v522
    %v556 = vpack.c.b16 %v529, %v526
    %v557 = vpack.c.b16 %v530, %v527
    %v558 = vpack.c.b16 %v531, %v528
    %v559 = vpack.c.b16 %v535, %v532
    %v560 = vpack.c.b16 %v536, %v533
    %v561 = vpack.c.b16 %v537, %v534
    %586 = vmatprep.subr.bf16.mxu0 %v560
    %587 = vmatpush1.bf16.msra.mxu0 %v559
    %588 = vmatprep.subr.bf16.mxu0 %v557
    %589 = vmatpush1.bf16.msra.mxu0 %v556
    %590 = vmatprep.subr.bf16.mxu0 %v554
    %591 = vmatpush1.bf16.msra.mxu0 %v553
    %592 = vmatprep.subr.bf16.mxu0 %v551
    %593 = vmatpush1.bf16.msra.mxu0 %v550
    %594 = vmatprep.subr.bf16.mxu0 %v548
    %595 = vmatpush1.bf16.msra.mxu0 %v547
    %596 = vmatprep.subr.bf16.mxu0 %v545
    %597 = vmatpush1.bf16.msra.mxu0 %v544
    %598 = vmatprep.subr.bf16.mxu0 %v542
    %599 = vmatpush1.bf16.msra.mxu0 %v541
    %600 = vmatprep.subr.bf16.mxu0 %v539
    %601 = vmatpush1.bf16.msra.mxu0 %v538
    %602 = vmatprep.subr.bf16.mxu0 0
    %603 = vmatpush2.bf16.msra.mxu0 0
    %604 = vmatprep.subr.bf16.mxu0 0
    %605 = vmatpush2.bf16.msra.mxu0 0
    %606 = vmatprep.subr.bf16.mxu0 0
    %607 = vmatpush2.bf16.msra.mxu0 0
    %608 = vmatprep.subr.bf16.mxu0 0
    %609 = vmatpush2.bf16.msra.mxu0 0
    %610 = vmatprep.subr.bf16.mxu0 0
    %611 = vmatpush2.bf16.msra.mxu0 0
    %612 = vmatprep.subr.bf16.mxu0 0
    %613 = vmatpush2.bf16.msra.mxu0 0
    %614 = vmatprep.subr.bf16.mxu0 0
    %615 = vmatpush2.bf16.msra.mxu0 0
    %616 = vmatprep.subr.bf16.mxu0 0
    %617 = vmatpush2.bf16.msra.mxu0 0
    %618 = vmatprep.mubr.bf16.mxu0 0
    %619 = vmatmul.mubr.bf16.gmra.mxu0 %v408
    %v620 = vpop.f32.mrf.mxu0
    %v621 = vadd.f32 %v446, %v620
    %v622 = vpop.f32.mrf.mxu0
    %v623 = vadd.f32 %v450, %v622
    %v624 = vpop.f32.mrf.mxu0
    %v625 = vpop.f32.mrf.mxu0
    %626 = vdwg.mxu0
    %627 = vmatprep.subr.bf16.mxu0 0
    %628 = vmatpush1.bf16.msra.mxu0 %v561
    %629 = vmatprep.subr.bf16.mxu0 0
    %630 = vmatpush1.bf16.msra.mxu0 %v558
    %631 = vmatprep.subr.bf16.mxu0 0
    %632 = vmatpush1.bf16.msra.mxu0 %v555
    %633 = vmatprep.subr.bf16.mxu0 0
    %634 = vmatpush1.bf16.msra.mxu0 %v552
    %635 = vmatprep.subr.bf16.mxu0 0
    %636 = vmatpush1.bf16.msra.mxu0 %v549
    %637 = vmatprep.subr.bf16.mxu0 0
    %638 = vmatpush1.bf16.msra.mxu0 %v546
    %639 = vmatprep.subr.bf16.mxu0 0
    %640 = vmatpush1.bf16.msra.mxu0 %v543
    %641 = vmatprep.subr.bf16.mxu0 0
    %642 = vmatpush1.bf16.msra.mxu0 %v540
    %643 = vmatprep.subr.bf16.mxu0 0
    %644 = vmatpush2.bf16.msra.mxu0 0
    %645 = vmatprep.subr.bf16.mxu0 0
    %646 = vmatpush2.bf16.msra.mxu0 0
    %647 = vmatprep.subr.bf16.mxu0 0
    %648 = vmatpush2.bf16.msra.mxu0 0
    %649 = vmatprep.subr.bf16.mxu0 0
    %650 = vmatpush2.bf16.msra.mxu0 0
    %651 = vmatprep.subr.bf16.mxu0 0
    %652 = vmatpush2.bf16.msra.mxu0 0
    %653 = vmatprep.subr.bf16.mxu0 0
    %654 = vmatpush2.bf16.msra.mxu0 0
    %655 = vmatprep.subr.bf16.mxu0 0
    %656 = vmatpush2.bf16.msra.mxu0 0
    %657 = vmatprep.subr.bf16.mxu0 0
    %658 = vmatpush2.bf16.msra.mxu0 0
    %659 = vmatprep.mubr.bf16.mxu0 0
    %660 = vmatmul.mubr.bf16.gmra.mxu0 %v408
    %v661 = vpop.f32.mrf.mxu0
    %v662 = vadd.f32 %v454, %v661
    %v663 = vpop.f32.mrf.mxu0
    %v664 = vpop.f32.mrf.mxu0
    %v665 = vpop.f32.mrf.mxu0
    %666 = vdwg.mxu0
    %v667 = vld [vmem:[#allocation10] sm:$0xf]
    %v668 = vld [vmem:[#allocation10 + $0x4] sm:$0xf]
    %v669 = vld [vmem:[#allocation10 + $0x8] sm:$0xf]
    %v670 = vld [vmem:[#allocation10 + $0xc] sm:$0xf]
    %v671 = vld [vmem:[#allocation10 + $0x10] sm:$0xf]
    %v672 = vld [vmem:[#allocation10 + $0x14] sm:$0xf]
    %v673 = vld [vmem:[#allocation10 + $0x18] sm:$0xf]
    %v674 = vld [vmem:[#allocation10 + $0x1c] sm:$0xf]
    %v675 = vld [vmem:[#allocation10 + $0x20] sm:$0xf]
    %v676 = vld [vmem:[#allocation10 + $0x24] sm:$0xf]
    %v677 = vld [vmem:[#allocation10 + $0x28] sm:$0xf]
    %v678 = vld [vmem:[#allocation10 + $0x2c] sm:$0xf]
    %v679 = vld [vmem:[#allocation10 + $0x30] sm:$0xf]
    %v680 = vld [vmem:[#allocation10 + $0x34] sm:$0xf]
    %v681 = vld [vmem:[#allocation10 + $0x38] sm:$0xf]
    %v682 = vld [vmem:[#allocation10 + $0x3c] sm:$0xf]
    %v683 = vpack.c.bf16 %v621, %v621
    %v684 = vpack.c.bf16 %v623, %v623
    %v685 = vpack.c.bf16 %v662, %v662
    %v687 = vshrl.u32 %v683, 16
    %v689 = vrot.slane %v687, 3
    %vm690 = vcmask 130048
    %v692 = vsel %vm690, %v689, 0
    %v695 = vsel %vm690, %v684, 0
    %697 = vmatprep.subr.bf16.mxu0 0
    %698 = vmatpush1.bf16.xpose.msra.mxu0 0
    %699 = vmatprep.subr.bf16.mxu0 0
    %700 = vmatpush1.bf16.xpose.msra.mxu0 0
    %701 = vmatprep.subr.bf16.mxu0 0
    %702 = vmatpush1.bf16.xpose.msra.mxu0 0
    %703 = vmatprep.subr.bf16.mxu0 0
    %704 = vmatpush1.bf16.xpose.msra.mxu0 0
    %705 = vmatprep.subr.bf16.mxu0 0
    %706 = vmatpush1.bf16.xpose.msra.mxu0 0
    %707 = vmatprep.subr.bf16.mxu0 0
    %708 = vmatpush1.bf16.xpose.msra.mxu0 0
    %709 = vmatprep.subr.bf16.mxu0 0
    %710 = vmatpush1.bf16.xpose.msra.mxu0 0
    %711 = vmatprep.subr.bf16.mxu0 0
    %712 = vmatpush1.bf16.xpose.msra.mxu0 %v695
    %713 = vmatprep.subr.bf16.mxu0 0
    %714 = vmatpush2.bf16.xpose.msra.mxu0 0
    %715 = vmatprep.subr.bf16.mxu0 0
    %716 = vmatpush2.bf16.xpose.msra.mxu0 0
    %717 = vmatprep.subr.bf16.mxu0 0
    %718 = vmatpush2.bf16.xpose.msra.mxu0 0
    %719 = vmatprep.subr.bf16.mxu0 0
    %720 = vmatpush2.bf16.xpose.msra.mxu0 0
    %721 = vmatprep.subr.bf16.mxu0 0
    %722 = vmatpush2.bf16.xpose.msra.mxu0 0
    %723 = vmatprep.subr.bf16.mxu0 0
    %724 = vmatpush2.bf16.xpose.msra.mxu0 0
    %725 = vmatprep.subr.bf16.mxu0 0
    %726 = vmatpush2.bf16.xpose.msra.mxu0 0
    %727 = vmatprep.subr.bf16.mxu0 0
    %728 = vmatpush2.bf16.xpose.msra.mxu0 0
    %729 = vmatprep.mubr.bf16.mxu0 0
    %730 = vmatmul.mubr.bf16.gmra.mxu0 %v692
    %v731 = vpop.f32.mrf.mxu0
    %v732 = vadd.f32 0.0, %v731
    %v733 = vpop.f32.mrf.mxu0
    %v734 = vpop.f32.mrf.mxu0
    %v735 = vpop.f32.mrf.mxu0
    %736 = vdwg.mxu0
    %v737 = vmul.f32 %v732, 0.25
    %vm738 = vcmask 57344
    %v739 = vsel %vm738, %v737, -inf
    %740 = vmax.xlane.f32.xlu0 %v739
    %v741 = vpop.xlane.xlu0 %740
    %v742 = vsub.f32 %v737, %v741
    %v743 = vmul.f32 %v742, 1.442695
    %v744 = vpow.pop %v743
    %v745 = vsel %vm738, %v744, 0.0
    %746 = vadd.xlane.f32.xlu0 %v745
    %v747 = vpop.xlane.xlu0 %746
    %v748 = vrcp.pop %v747
    %v749 = vmul.f32 %v744, %v748
    %v750 = vpack.c.bf16 %v749, %v749
    %vm751 = vcmask 64512
    %v753 = vsel %vm751, %v750, 0
    %vm755 = vcmask 1043456
    %v757 = vsel %vm755, %v685, 0
    %759 = vmatprep.subr.bf16.mxu0 0
    %760 = vmatpush1.bf16.msra.mxu0 0
    %761 = vmatprep.subr.bf16.mxu0 0
    %762 = vmatpush1.bf16.msra.mxu0 0
    %763 = vmatprep.subr.bf16.mxu0 0
    %764 = vmatpush1.bf16.msra.mxu0 0
    %765 = vmatprep.subr.bf16.mxu0 0
    %766 = vmatpush1.bf16.msra.mxu0 0
    %767 = vmatprep.subr.bf16.mxu0 0
    %768 = vmatpush1.bf16.msra.mxu0 0
    %769 = vmatprep.subr.bf16.mxu0 0
    %770 = vmatpush1.bf16.msra.mxu0 0
    %771 = vmatprep.subr.bf16.mxu0 0
    %772 = vmatpush1.bf16.msra.mxu0 0
    %773 = vmatprep.subr.bf16.mxu0 0
    %774 = vmatpush1.bf16.msra.mxu0 %v757
    %775 = vmatprep.subr.bf16.mxu0 0
    %776 = vmatpush2.bf16.msra.mxu0 0
    %777 = vmatprep.subr.bf16.mxu0 0
    %778 = vmatpush2.bf16.msra.mxu0 0
    %779 = vmatprep.subr.bf16.mxu0 0
    %780 = vmatpush2.bf16.msra.mxu0 0
    %781 = vmatprep.subr.bf16.mxu0 0
    %782 = vmatpush2.bf16.msra.mxu0 0
    %783 = vmatprep.subr.bf16.mxu0 0
    %784 = vmatpush2.bf16.msra.mxu0 0
    %785 = vmatprep.subr.bf16.mxu0 0
    %786 = vmatpush2.bf16.msra.mxu0 0
    %787 = vmatprep.subr.bf16.mxu0 0
    %788 = vmatpush2.bf16.msra.mxu0 0
    %789 = vmatprep.subr.bf16.mxu0 0
    %790 = vmatpush2.bf16.msra.mxu0 0
    %791 = vmatprep.mubr.bf16.mxu0 0
    %792 = vmatmul.mubr.bf16.gmra.mxu0 %v753
    %v793 = vpop.f32.mrf.mxu0
    %v794 = vadd.f32 0.0, %v793
    %v795 = vpop.f32.mrf.mxu0
    %v796 = vpop.f32.mrf.mxu0
    %v797 = vpop.f32.mrf.mxu0
    %798 = vdwg.mxu0
    %v799 = vpack.c.bf16 %v794, %v794
    %800 = vrot.lane.b32.xlu0 %v689, 112
    %v801 = vpop.permute.xlu0 %800
    %803 = vrot.lane.b32.xlu0 %v684, 112
    %v804 = vpop.permute.xlu0 %803
    %v806 = vsel %vm690, %v801, 0
    %v809 = vsel %vm690, %v804, 0
    %811 = vmatprep.subr.bf16.mxu0 0
    %812 = vmatpush1.bf16.xpose.msra.mxu0 0
    %813 = vmatprep.subr.bf16.mxu0 0
    %814 = vmatpush1.bf16.xpose.msra.mxu0 0
    %815 = vmatprep.subr.bf16.mxu0 0
    %816 = vmatpush1.bf16.xpose.msra.mxu0 0
    %817 = vmatprep.subr.bf16.mxu0 0
    %818 = vmatpush1.bf16.xpose.msra.mxu0 0
    %819 = vmatprep.subr.bf16.mxu0 0
    %820 = vmatpush1.bf16.xpose.msra.mxu0 0
    %821 = vmatprep.subr.bf16.mxu0 0
    %822 = vmatpush1.bf16.xpose.msra.mxu0 0
    %823 = vmatprep.subr.bf16.mxu0 0
    %824 = vmatpush1.bf16.xpose.msra.mxu0 0
    %825 = vmatprep.subr.bf16.mxu0 0
    %826 = vmatpush1.bf16.xpose.msra.mxu0 %v809
    %827 = vmatprep.subr.bf16.mxu0 0
    %828 = vmatpush2.bf16.xpose.msra.mxu0 0
    %829 = vmatprep.subr.bf16.mxu0 0
    %830 = vmatpush2.bf16.xpose.msra.mxu0 0
    %831 = vmatprep.subr.bf16.mxu0 0
    %832 = vmatpush2.bf16.xpose.msra.mxu0 0
    %833 = vmatprep.subr.bf16.mxu0 0
    %834 = vmatpush2.bf16.xpose.msra.mxu0 0
    %835 = vmatprep.subr.bf16.mxu0 0
    %836 = vmatpush2.bf16.xpose.msra.mxu0 0
    %837 = vmatprep.subr.bf16.mxu0 0
    %838 = vmatpush2.bf16.xpose.msra.mxu0 0
    %839 = vmatprep.subr.bf16.mxu0 0
    %840 = vmatpush2.bf16.xpose.msra.mxu0 0
    %841 = vmatprep.subr.bf16.mxu0 0
    %842 = vmatpush2.bf16.xpose.msra.mxu0 0
    %843 = vmatprep.mubr.bf16.mxu0 0
    %844 = vmatmul.mubr.bf16.gmra.mxu0 %v806
    %v845 = vpop.f32.mrf.mxu0
    %v846 = vadd.f32 0.0, %v845
    %v847 = vpop.f32.mrf.mxu0
    %v848 = vpop.f32.mrf.mxu0
    %v849 = vpop.f32.mrf.mxu0
    %850 = vdwg.mxu0
    %v851 = vmul.f32 %v846, 0.25
    %v852 = vsel %vm738, %v851, -inf
    %853 = vmax.xlane.f32.xlu0 %v852
    %v854 = vpop.xlane.xlu0 %853
    %v855 = vsub.f32 %v851, %v854
    %v856 = vmul.f32 %v855, 1.442695
    %v857 = vpow.pop %v856
    %v858 = vsel %vm738, %v857, 0.0
    %859 = vadd.xlane.f32.xlu0 %v858
    %v860 = vpop.xlane.xlu0 %859
    %v861 = vrcp.pop %v860
    %v862 = vmul.f32 %v857, %v861
    %v863 = vpack.c.bf16 %v862, %v862
    %865 = vrot.lane.b32.xlu0 %v685, 112
    %v866 = vpop.permute.xlu0 %865
    %v868 = vsel %vm751, %v863, 0
    %v871 = vsel %vm755, %v866, 0
    %873 = vmatprep.subr.bf16.mxu0 0
    %874 = vmatpush1.bf16.msra.mxu0 0
    %875 = vmatprep.subr.bf16.mxu0 0
    %876 = vmatpush1.bf16.msra.mxu0 0
    %877 = vmatprep.subr.bf16.mxu0 0
    %878 = vmatpush1.bf16.msra.mxu0 0
    %879 = vmatprep.subr.bf16.mxu0 0
    %880 = vmatpush1.bf16.msra.mxu0 0
    %881 = vmatprep.subr.bf16.mxu0 0
    %882 = vmatpush1.bf16.msra.mxu0 0
    %883 = vmatprep.subr.bf16.mxu0 0
    %884 = vmatpush1.bf16.msra.mxu0 0
    %885 = vmatprep.subr.bf16.mxu0 0
    %886 = vmatpush1.bf16.msra.mxu0 0
    %887 = vmatprep.subr.bf16.mxu0 0
    %888 = vmatpush1.bf16.msra.mxu0 %v871
    %889 = vmatprep.subr.bf16.mxu0 0
    %890 = vmatpush2.bf16.msra.mxu0 0
    %891 = vmatprep.subr.bf16.mxu0 0
    %892 = vmatpush2.bf16.msra.mxu0 0
    %893 = vmatprep.subr.bf16.mxu0 0
    %894 = vmatpush2.bf16.msra.mxu0 0
    %895 = vmatprep.subr.bf16.mxu0 0
    %896 = vmatpush2.bf16.msra.mxu0 0
    %897 = vmatprep.subr.bf16.mxu0 0
    %898 = vmatpush2.bf16.msra.mxu0 0
    %899 = vmatprep.subr.bf16.mxu0 0
    %900 = vmatpush2.bf16.msra.mxu0 0
    %901 = vmatprep.subr.bf16.mxu0 0
    %902 = vmatpush2.bf16.msra.mxu0 0
    %903 = vmatprep.subr.bf16.mxu0 0
    %904 = vmatpush2.bf16.msra.mxu0 0
    %905 = vmatprep.mubr.bf16.mxu0 0
    %906 = vmatmul.mubr.bf16.gmra.mxu0 %v868
    %v907 = vpop.f32.mrf.mxu0
    %v908 = vadd.f32 0.0, %v907
    %v909 = vpop.f32.mrf.mxu0
    %v910 = vpop.f32.mrf.mxu0
    %v911 = vpop.f32.mrf.mxu0
    %912 = vdwg.mxu0
    %v913 = vpack.c.bf16 %v908, %v908
    %v916 = vunpack.c.l.b16 %v669
    %v917 = vunpack.c.l.b16 %v670
    %v918 = vpack.c.b16 %v917, %v916
    %v921 = vsel %vm690, %v913, 0
    %923 = vmatprep.subr.bf16.mxu0 0
    %924 = vmatpush1.bf16.msra.mxu0 0
    %925 = vmatprep.subr.bf16.mxu0 0
    %926 = vmatpush1.bf16.msra.mxu0 0
    %927 = vmatprep.subr.bf16.mxu0 0
    %928 = vmatpush1.bf16.msra.mxu0 0
    %929 = vmatprep.subr.bf16.mxu0 0
    %930 = vmatpush1.bf16.msra.mxu0 0
    %931 = vmatprep.subr.bf16.mxu0 0
    %932 = vmatpush1.bf16.msra.mxu0 0
    %933 = vmatprep.subr.bf16.mxu0 0
    %934 = vmatpush1.bf16.msra.mxu0 0
    %935 = vmatprep.subr.bf16.mxu0 0
    %936 = vmatpush1.bf16.msra.mxu0 0
    %937 = vmatprep.subr.bf16.mxu0 0
    %938 = vmatpush1.bf16.msra.mxu0 %v918
    %939 = vmatprep.subr.bf16.mxu0 0
    %940 = vmatpush2.bf16.msra.mxu0 0
    %941 = vmatprep.subr.bf16.mxu0 0
    %942 = vmatpush2.bf16.msra.mxu0 0
    %943 = vmatprep.subr.bf16.mxu0 0
    %944 = vmatpush2.bf16.msra.mxu0 0
    %945 = vmatprep.subr.bf16.mxu0 0
    %946 = vmatpush2.bf16.msra.mxu0 0
    %947 = vmatprep.subr.bf16.mxu0 0
    %948 = vmatpush2.bf16.msra.mxu0 0
    %949 = vmatprep.subr.bf16.mxu0 0
    %950 = vmatpush2.bf16.msra.mxu0 0
    %951 = vmatprep.subr.bf16.mxu0 0
    %952 = vmatpush2.bf16.msra.mxu0 0
    %953 = vmatprep.subr.bf16.mxu0 0
    %954 = vmatpush2.bf16.msra.mxu0 0
    %955 = vmatprep.mubr.bf16.mxu0 0
    %956 = vmatmul.mubr.bf16.gmra.mxu0 %v921
    %v957 = vpop.f32.mrf.mxu0
    %v958 = vadd.f32 0.0, %v957
    %v959 = vpop.f32.mrf.mxu0
    %v960 = vpop.f32.mrf.mxu0
    %v961 = vpop.f32.mrf.mxu0
    %962 = vdwg.mxu0
    %v965 = vunpack.c.l.b16 %v667
    %v966 = vunpack.c.l.b16 %v668
    %v967 = vpack.c.b16 %v966, %v965
    %v970 = vsel %vm690, %v799, 0
    %972 = vmatprep.subr.bf16.mxu0 0
    %973 = vmatpush1.bf16.msra.mxu0 0
    %974 = vmatprep.subr.bf16.mxu0 0
    %975 = vmatpush1.bf16.msra.mxu0 0
    %976 = vmatprep.subr.bf16.mxu0 0
    %977 = vmatpush1.bf16.msra.mxu0 0
    %978 = vmatprep.subr.bf16.mxu0 0
    %979 = vmatpush1.bf16.msra.mxu0 0
    %980 = vmatprep.subr.bf16.mxu0 0
    %981 = vmatpush1.bf16.msra.mxu0 0
    %982 = vmatprep.subr.bf16.mxu0 0
    %983 = vmatpush1.bf16.msra.mxu0 0
    %984 = vmatprep.subr.bf16.mxu0 0
    %985 = vmatpush1.bf16.msra.mxu0 0
    %986 = vmatprep.subr.bf16.mxu0 0
    %987 = vmatpush1.bf16.msra.mxu0 %v967
    %988 = vmatprep.subr.bf16.mxu0 0
    %989 = vmatpush2.bf16.msra.mxu0 0
    %990 = vmatprep.subr.bf16.mxu0 0
    %991 = vmatpush2.bf16.msra.mxu0 0
    %992 = vmatprep.subr.bf16.mxu0 0
    %993 = vmatpush2.bf16.msra.mxu0 0
    %994 = vmatprep.subr.bf16.mxu0 0
    %995 = vmatpush2.bf16.msra.mxu0 0
    %996 = vmatprep.subr.bf16.mxu0 0
    %997 = vmatpush2.bf16.msra.mxu0 0
    %998 = vmatprep.subr.bf16.mxu0 0
    %999 = vmatpush2.bf16.msra.mxu0 0
    %1000 = vmatprep.subr.bf16.mxu0 0
    %1001 = vmatpush2.bf16.msra.mxu0 0
    %1002 = vmatprep.subr.bf16.mxu0 0
    %1003 = vmatpush2.bf16.msra.mxu0 0
    %1004 = vmatprep.mubr.bf16.mxu0 0
    %1005 = vmatmul.mubr.bf16.gmra.mxu0 %v970
    %v1006 = vpop.f32.mrf.mxu0
    %v1007 = vadd.f32 %v958, %v1006
    %v1008 = vpop.f32.mrf.mxu0
    %v1009 = vpop.f32.mrf.mxu0
    %v1010 = vpop.f32.mrf.mxu0
    %1011 = vdwg.mxu0
    %1012 = vrot.lane.b32.xlu0 %v689, 96
    %v1013 = vpop.permute.xlu0 %1012
    %1014 = vrot.lane.b32.xlu0 %v684, 96
    %v1015 = vpop.permute.xlu0 %1014
    %v1017 = vsel %vm690, %v1013, 0
    %v1020 = vsel %vm690, %v1015, 0
    %1022 = vmatprep.subr.bf16.mxu0 0
    %1023 = vmatpush1.bf16.xpose.msra.mxu0 0
    %1024 = vmatprep.subr.bf16.mxu0 0
    %1025 = vmatpush1.bf16.xpose.msra.mxu0 0
    %1026 = vmatprep.subr.bf16.mxu0 0
    %1027 = vmatpush1.bf16.xpose.msra.mxu0 0
    %1028 = vmatprep.subr.bf16.mxu0 0
    %1029 = vmatpush1.bf16.xpose.msra.mxu0 0
    %1030 = vmatprep.subr.bf16.mxu0 0
    %1031 = vmatpush1.bf16.xpose.msra.mxu0 0
    %1032 = vmatprep.subr.bf16.mxu0 0
    %1033 = vmatpush1.bf16.xpose.msra.mxu0 0
    %1034 = vmatprep.subr.bf16.mxu0 0
    %1035 = vmatpush1.bf16.xpose.msra.mxu0 0
    %1036 = vmatprep.subr.bf16.mxu0 0
    %1037 = vmatpush1.bf16.xpose.msra.mxu0 %v1020
    %1038 = vmatprep.subr.bf16.mxu0 0
    %1039 = vmatpush2.bf16.xpose.msra.mxu0 0
    %1040 = vmatprep.subr.bf16.mxu0 0
    %1041 = vmatpush2.bf16.xpose.msra.mxu0 0
    %1042 = vmatprep.subr.bf16.mxu0 0
    %1043 = vmatpush2.bf16.xpose.msra.mxu0 0
    %1044 = vmatprep.subr.bf16.mxu0 0
    %1045 = vmatpush2.bf16.xpose.msra.mxu0 0
    %1046 = vmatprep.subr.bf16.mxu0 0
    %1047 = vmatpush2.bf16.xpose.msra.mxu0 0
    %1048 = vmatprep.subr.bf16.mxu0 0
    %1049 = vmatpush2.bf16.xpose.msra.mxu0 0
    %1050 = vmatprep.subr.bf16.mxu0 0
    %1051 = vmatpush2.bf16.xpose.msra.mxu0 0
    %1052 = vmatprep.subr.bf16.mxu0 0
    %1053 = vmatpush2.bf16.xpose.msra.mxu0 0
    %1054 = vmatprep.mubr.bf16.mxu0 0
    %1055 = vmatmul.mubr.bf16.gmra.mxu0 %v1017
    %v1056 = vpop.f32.mrf.mxu0
    %v1057 = vadd.f32 0.0, %v1056
    %v1058 = vpop.f32.mrf.mxu0
    %v1059 = vpop.f32.mrf.mxu0
    %v1060 = vpop.f32.mrf.mxu0
    %1061 = vdwg.mxu0
    %v1062 = vmul.f32 %v1057, 0.25
    %v1063 = vsel %vm738, %v1062, -inf
    %1064 = vmax.xlane.f32.xlu0 %v1063
    %v1065 = vpop.xlane.xlu0 %1064
    %v1066 = vsub.f32 %v1062, %v1065
    %v1067 = vmul.f32 %v1066, 1.442695
    %v1068 = vpow.pop %v1067
    %v1069 = vsel %vm738, %v1068, 0.0
    %1070 = vadd.xlane.f32.xlu0 %v1069
    %v1071 = vpop.xlane.xlu0 %1070
    %v1072 = vrcp.pop %v1071
    %v1073 = vmul.f32 %v1068, %v1072
    %v1074 = vpack.c.bf16 %v1073, %v1073
    %1075 = vrot.lane.b32.xlu0 %v685, 96
    %v1076 = vpop.permute.xlu0 %1075
    %v1078 = vsel %vm751, %v1074, 0
    %v1081 = vsel %vm755, %v1076, 0
    %1083 = vmatprep.subr.bf16.mxu0 0
    %1084 = vmatpush1.bf16.msra.mxu0 0
    %1085 = vmatprep.subr.bf16.mxu0 0
    %1086 = vmatpush1.bf16.msra.mxu0 0
    %1087 = vmatprep.subr.bf16.mxu0 0
    %1088 = vmatpush1.bf16.msra.mxu0 0
    %1089 = vmatprep.subr.bf16.mxu0 0
    %1090 = vmatpush1.bf16.msra.mxu0 0
    %1091 = vmatprep.subr.bf16.mxu0 0
    %1092 = vmatpush1.bf16.msra.mxu0 0
    %1093 = vmatprep.subr.bf16.mxu0 0
    %1094 = vmatpush1.bf16.msra.mxu0 0
    %1095 = vmatprep.subr.bf16.mxu0 0
    %1096 = vmatpush1.bf16.msra.mxu0 0
    %1097 = vmatprep.subr.bf16.mxu0 0
    %1098 = vmatpush1.bf16.msra.mxu0 %v1081
    %1099 = vmatprep.subr.bf16.mxu0 0
    %1100 = vmatpush2.bf16.msra.mxu0 0
    %1101 = vmatprep.subr.bf16.mxu0 0
    %1102 = vmatpush2.bf16.msra.mxu0 0
    %1103 = vmatprep.subr.bf16.mxu0 0
    %1104 = vmatpush2.bf16.msra.mxu0 0
    %1105 = vmatprep.subr.bf16.mxu0 0
    %1106 = vmatpush2.bf16.msra.mxu0 0
    %1107 = vmatprep.subr.bf16.mxu0 0
    %1108 = vmatpush2.bf16.msra.mxu0 0
    %1109 = vmatprep.subr.bf16.mxu0 0
    %1110 = vmatpush2.bf16.msra.mxu0 0
    %1111 = vmatprep.subr.bf16.mxu0 0
    %1112 = vmatpush2.bf16.msra.mxu0 0
    %1113 = vmatprep.subr.bf16.mxu0 0
    %1114 = vmatpush2.bf16.msra.mxu0 0
    %1115 = vmatprep.mubr.bf16.mxu0 0
    %1116 = vmatmul.mubr.bf16.gmra.mxu0 %v1078
    %v1117 = vpop.f32.mrf.mxu0
    %v1118 = vadd.f32 0.0, %v1117
    %v1119 = vpop.f32.mrf.mxu0
    %v1120 = vpop.f32.mrf.mxu0
    %v1121 = vpop.f32.mrf.mxu0
    %1122 = vdwg.mxu0
    %v1123 = vpack.c.bf16 %v1118, %v1118
    %v1126 = vunpack.c.l.b16 %v671
    %v1127 = vunpack.c.l.b16 %v672
    %v1128 = vpack.c.b16 %v1127, %v1126
    %v1131 = vsel %vm690, %v1123, 0
    %1133 = vmatprep.subr.bf16.mxu0 0
    %1134 = vmatpush1.bf16.msra.mxu0 0
    %1135 = vmatprep.subr.bf16.mxu0 0
    %1136 = vmatpush1.bf16.msra.mxu0 0
    %1137 = vmatprep.subr.bf16.mxu0 0
    %1138 = vmatpush1.bf16.msra.mxu0 0
    %1139 = vmatprep.subr.bf16.mxu0 0
    %1140 = vmatpush1.bf16.msra.mxu0 0
    %1141 = vmatprep.subr.bf16.mxu0 0
    %1142 = vmatpush1.bf16.msra.mxu0 0
    %1143 = vmatprep.subr.bf16.mxu0 0
    %1144 = vmatpush1.bf16.msra.mxu0 0
    %1145 = vmatprep.subr.bf16.mxu0 0
    %1146 = vmatpush1.bf16.msra.mxu0 0
    %1147 = vmatprep.subr.bf16.mxu0 0
    %1148 = vmatpush1.bf16.msra.mxu0 %v1128
    %1149 = vmatprep.subr.bf16.mxu0 0
    %1150 = vmatpush2.bf16.msra.mxu0 0
    %1151 = vmatprep.subr.bf16.mxu0 0
    %1152 = vmatpush2.bf16.msra.mxu0 0
    %1153 = vmatprep.subr.bf16.mxu0 0
    %1154 = vmatpush2.bf16.msra.mxu0 0
    %1155 = vmatprep.subr.bf16.mxu0 0
    %1156 = vmatpush2.bf16.msra.mxu0 0
    %1157 = vmatprep.subr.bf16.mxu0 0
    %1158 = vmatpush2.bf16.msra.mxu0 0
    %1159 = vmatprep.subr.bf16.mxu0 0
    %1160 = vmatpush2.bf16.msra.mxu0 0
    %1161 = vmatprep.subr.bf16.mxu0 0
    %1162 = vmatpush2.bf16.msra.mxu0 0
    %1163 = vmatprep.subr.bf16.mxu0 0
    %1164 = vmatpush2.bf16.msra.mxu0 0
    %1165 = vmatprep.mubr.bf16.mxu0 0
    %1166 = vmatmul.mubr.bf16.gmra.mxu0 %v1131
    %v1167 = vpop.f32.mrf.mxu0
    %v1168 = vadd.f32 0.0, %v1167
    %v1169 = vpop.f32.mrf.mxu0
    %v1170 = vpop.f32.mrf.mxu0
    %v1171 = vpop.f32.mrf.mxu0
    %1172 = vdwg.mxu0
    %v1173 = vadd.f32 %v1007, %v1168
    %1174 = vrot.lane.b32.xlu0 %v689, 80
    %v1175 = vpop.permute.xlu0 %1174
    %1176 = vrot.lane.b32.xlu0 %v684, 80
    %v1177 = vpop.permute.xlu0 %1176
    %v1179 = vsel %vm690, %v1175, 0
    %v1182 = vsel %vm690, %v1177, 0
    %1184 = vmatprep.subr.bf16.mxu0 0
    %1185 = vmatpush1.bf16.xpose.msra.mxu0 0
    %1186 = vmatprep.subr.bf16.mxu0 0
    %1187 = vmatpush1.bf16.xpose.msra.mxu0 0
    %1188 = vmatprep.subr.bf16.mxu0 0
    %1189 = vmatpush1.bf16.xpose.msra.mxu0 0
    %1190 = vmatprep.subr.bf16.mxu0 0
    %1191 = vmatpush1.bf16.xpose.msra.mxu0 0
    %1192 = vmatprep.subr.bf16.mxu0 0
    %1193 = vmatpush1.bf16.xpose.msra.mxu0 0
    %1194 = vmatprep.subr.bf16.mxu0 0
    %1195 = vmatpush1.bf16.xpose.msra.mxu0 0
    %1196 = vmatprep.subr.bf16.mxu0 0
    %1197 = vmatpush1.bf16.xpose.msra.mxu0 0
    %1198 = vmatprep.subr.bf16.mxu0 0
    %1199 = vmatpush1.bf16.xpose.msra.mxu0 %v1182
    %1200 = vmatprep.subr.bf16.mxu0 0
    %1201 = vmatpush2.bf16.xpose.msra.mxu0 0
    %1202 = vmatprep.subr.bf16.mxu0 0
    %1203 = vmatpush2.bf16.xpose.msra.mxu0 0
    %1204 = vmatprep.subr.bf16.mxu0 0
    %1205 = vmatpush2.bf16.xpose.msra.mxu0 0
    %1206 = vmatprep.subr.bf16.mxu0 0
    %1207 = vmatpush2.bf16.xpose.msra.mxu0 0
    %1208 = vmatprep.subr.bf16.mxu0 0
    %1209 = vmatpush2.bf16.xpose.msra.mxu0 0
    %1210 = vmatprep.subr.bf16.mxu0 0
    %1211 = vmatpush2.bf16.xpose.msra.mxu0 0
    %1212 = vmatprep.subr.bf16.mxu0 0
    %1213 = vmatpush2.bf16.xpose.msra.mxu0 0
    %1214 = vmatprep.subr.bf16.mxu0 0
    %1215 = vmatpush2.bf16.xpose.msra.mxu0 0
    %1216 = vmatprep.mubr.bf16.mxu0 0
    %1217 = vmatmul.mubr.bf16.gmra.mxu0 %v1179
    %v1218 = vpop.f32.mrf.mxu0
    %v1219 = vadd.f32 0.0, %v1218
    %v1220 = vpop.f32.mrf.mxu0
    %v1221 = vpop.f32.mrf.mxu0
    %v1222 = vpop.f32.mrf.mxu0
    %1223 = vdwg.mxu0
    %v1224 = vmul.f32 %v1219, 0.25
    %v1225 = vsel %vm738, %v1224, -inf
    %1226 = vmax.xlane.f32.xlu0 %v1225
    %v1227 = vpop.xlane.xlu0 %1226
    %v1228 = vsub.f32 %v1224, %v1227
    %v1229 = vmul.f32 %v1228, 1.442695
    %v1230 = vpow.pop %v1229
    %v1231 = vsel %vm738, %v1230, 0.0
    %1232 = vadd.xlane.f32.xlu0 %v1231
    %v1233 = vpop.xlane.xlu0 %1232
    %v1234 = vrcp.pop %v1233
    %v1235 = vmul.f32 %v1230, %v1234
    %v1236 = vpack.c.bf16 %v1235, %v1235
    %1237 = vrot.lane.b32.xlu0 %v685, 80
    %v1238 = vpop.permute.xlu0 %1237
    %v1240 = vsel %vm751, %v1236, 0
    %v1243 = vsel %vm755, %v1238, 0
    %1245 = vmatprep.subr.bf16.mxu0 0
    %1246 = vmatpush1.bf16.msra.mxu0 0
    %1247 = vmatprep.subr.bf16.mxu0 0
    %1248 = vmatpush1.bf16.msra.mxu0 0
    %1249 = vmatprep.subr.bf16.mxu0 0
    %1250 = vmatpush1.bf16.msra.mxu0 0
    %1251 = vmatprep.subr.bf16.mxu0 0
    %1252 = vmatpush1.bf16.msra.mxu0 0
    %1253 = vmatprep.subr.bf16.mxu0 0
    %1254 = vmatpush1.bf16.msra.mxu0 0
    %1255 = vmatprep.subr.bf16.mxu0 0
    %1256 = vmatpush1.bf16.msra.mxu0 0
    %1257 = vmatprep.subr.bf16.mxu0 0
    %1258 = vmatpush1.bf16.msra.mxu0 0
    %1259 = vmatprep.subr.bf16.mxu0 0
    %1260 = vmatpush1.bf16.msra.mxu0 %v1243
    %1261 = vmatprep.subr.bf16.mxu0 0
    %1262 = vmatpush2.bf16.msra.mxu0 0
    %1263 = vmatprep.subr.bf16.mxu0 0
    %1264 = vmatpush2.bf16.msra.mxu0 0
    %1265 = vmatprep.subr.bf16.mxu0 0
    %1266 = vmatpush2.bf16.msra.mxu0 0
    %1267 = vmatprep.subr.bf16.mxu0 0
    %1268 = vmatpush2.bf16.msra.mxu0 0
    %1269 = vmatprep.subr.bf16.mxu0 0
    %1270 = vmatpush2.bf16.msra.mxu0 0
    %1271 = vmatprep.subr.bf16.mxu0 0
    %1272 = vmatpush2.bf16.msra.mxu0 0
    %1273 = vmatprep.subr.bf16.mxu0 0
    %1274 = vmatpush2.bf16.msra.mxu0 0
    %1275 = vmatprep.subr.bf16.mxu0 0
    %1276 = vmatpush2.bf16.msra.mxu0 0
    %1277 = vmatprep.mubr.bf16.mxu0 0
    %1278 = vmatmul.mubr.bf16.gmra.mxu0 %v1240
    %v1279 = vpop.f32.mrf.mxu0
    %v1280 = vadd.f32 0.0, %v1279
    %v1281 = vpop.f32.mrf.mxu0
    %v1282 = vpop.f32.mrf.mxu0
    %v1283 = vpop.f32.mrf.mxu0
    %1284 = vdwg.mxu0
    %v1285 = vpack.c.bf16 %v1280, %v1280
    %v1288 = vunpack.c.l.b16 %v673
    %v1289 = vunpack.c.l.b16 %v674
    %v1290 = vpack.c.b16 %v1289, %v1288
    %v1293 = vsel %vm690, %v1285, 0
    %1295 = vmatprep.subr.bf16.mxu0 0
    %1296 = vmatpush1.bf16.msra.mxu0 0
    %1297 = vmatprep.subr.bf16.mxu0 0
    %1298 = vmatpush1.bf16.msra.mxu0 0
    %1299 = vmatprep.subr.bf16.mxu0 0
    %1300 = vmatpush1.bf16.msra.mxu0 0
    %1301 = vmatprep.subr.bf16.mxu0 0
    %1302 = vmatpush1.bf16.msra.mxu0 0
    %1303 = vmatprep.subr.bf16.mxu0 0
    %1304 = vmatpush1.bf16.msra.mxu0 0
    %1305 = vmatprep.subr.bf16.mxu0 0
    %1306 = vmatpush1.bf16.msra.mxu0 0
    %1307 = vmatprep.subr.bf16.mxu0 0
    %1308 = vmatpush1.bf16.msra.mxu0 0
    %1309 = vmatprep.subr.bf16.mxu0 0
    %1310 = vmatpush1.bf16.msra.mxu0 %v1290
    %1311 = vmatprep.subr.bf16.mxu0 0
    %1312 = vmatpush2.bf16.msra.mxu0 0
    %1313 = vmatprep.subr.bf16.mxu0 0
    %1314 = vmatpush2.bf16.msra.mxu0 0
    %1315 = vmatprep.subr.bf16.mxu0 0
    %1316 = vmatpush2.bf16.msra.mxu0 0
    %1317 = vmatprep.subr.bf16.mxu0 0
    %1318 = vmatpush2.bf16.msra.mxu0 0
    %1319 = vmatprep.subr.bf16.mxu0 0
    %1320 = vmatpush2.bf16.msra.mxu0 0
    %1321 = vmatprep.subr.bf16.mxu0 0
    %1322 = vmatpush2.bf16.msra.mxu0 0
    %1323 = vmatprep.subr.bf16.mxu0 0
    %1324 = vmatpush2.bf16.msra.mxu0 0
    %1325 = vmatprep.subr.bf16.mxu0 0
    %1326 = vmatpush2.bf16.msra.mxu0 0
    %1327 = vmatprep.mubr.bf16.mxu0 0
    %1328 = vmatmul.mubr.bf16.gmra.mxu0 %v1293
    %v1329 = vpop.f32.mrf.mxu0
    %v1330 = vadd.f32 0.0, %v1329
    %v1331 = vpop.f32.mrf.mxu0
    %v1332 = vpop.f32.mrf.mxu0
    %v1333 = vpop.f32.mrf.mxu0
    %1334 = vdwg.mxu0
    %v1335 = vadd.f32 %v1173, %v1330
    %1336 = vrot.lane.b32.xlu0 %v689, 64
    %v1337 = vpop.permute.xlu0 %1336
    %1338 = vrot.lane.b32.xlu0 %v684, 64
    %v1339 = vpop.permute.xlu0 %1338
    %v1341 = vsel %vm690, %v1337, 0
    %v1344 = vsel %vm690, %v1339, 0
    %1346 = vmatprep.subr.bf16.mxu0 0
    %1347 = vmatpush1.bf16.xpose.msra.mxu0 0
    %1348 = vmatprep.subr.bf16.mxu0 0
    %1349 = vmatpush1.bf16.xpose.msra.mxu0 0
    %1350 = vmatprep.subr.bf16.mxu0 0
    %1351 = vmatpush1.bf16.xpose.msra.mxu0 0
    %1352 = vmatprep.subr.bf16.mxu0 0
    %1353 = vmatpush1.bf16.xpose.msra.mxu0 0
    %1354 = vmatprep.subr.bf16.mxu0 0
    %1355 = vmatpush1.bf16.xpose.msra.mxu0 0
    %1356 = vmatprep.subr.bf16.mxu0 0
    %1357 = vmatpush1.bf16.xpose.msra.mxu0 0
    %1358 = vmatprep.subr.bf16.mxu0 0
    %1359 = vmatpush1.bf16.xpose.msra.mxu0 0
    %1360 = vmatprep.subr.bf16.mxu0 0
    %1361 = vmatpush1.bf16.xpose.msra.mxu0 %v1344
    %1362 = vmatprep.subr.bf16.mxu0 0
    %1363 = vmatpush2.bf16.xpose.msra.mxu0 0
    %1364 = vmatprep.subr.bf16.mxu0 0
    %1365 = vmatpush2.bf16.xpose.msra.mxu0 0
    %1366 = vmatprep.subr.bf16.mxu0 0
    %1367 = vmatpush2.bf16.xpose.msra.mxu0 0
    %1368 = vmatprep.subr.bf16.mxu0 0
    %1369 = vmatpush2.bf16.xpose.msra.mxu0 0
    %1370 = vmatprep.subr.bf16.mxu0 0
    %1371 = vmatpush2.bf16.xpose.msra.mxu0 0
    %1372 = vmatprep.subr.bf16.mxu0 0
    %1373 = vmatpush2.bf16.xpose.msra.mxu0 0
    %1374 = vmatprep.subr.bf16.mxu0 0
    %1375 = vmatpush2.bf16.xpose.msra.mxu0 0
    %1376 = vmatprep.subr.bf16.mxu0 0
    %1377 = vmatpush2.bf16.xpose.msra.mxu0 0
    %1378 = vmatprep.mubr.bf16.mxu0 0
    %1379 = vmatmul.mubr.bf16.gmra.mxu0 %v1341
    %v1380 = vpop.f32.mrf.mxu0
    %v1381 = vadd.f32 0.0, %v1380
    %v1382 = vpop.f32.mrf.mxu0
    %v1383 = vpop.f32.mrf.mxu0
    %v1384 = vpop.f32.mrf.mxu0
    %1385 = vdwg.mxu0
    %v1386 = vmul.f32 %v1381, 0.25
    %v1387 = vsel %vm738, %v1386, -inf
    %1388 = vmax.xlane.f32.xlu0 %v1387
    %v1389 = vpop.xlane.xlu0 %1388
    %v1390 = vsub.f32 %v1386, %v1389
    %v1391 = vmul.f32 %v1390, 1.442695
    %v1392 = vpow.pop %v1391
    %v1393 = vsel %vm738, %v1392, 0.0
    %1394 = vadd.xlane.f32.xlu0 %v1393
    %v1395 = vpop.xlane.xlu0 %1394
    %v1396 = vrcp.pop %v1395
    %v1397 = vmul.f32 %v1392, %v1396
    %v1398 = vpack.c.bf16 %v1397, %v1397
    %1399 = vrot.lane.b32.xlu0 %v685, 64
    %v1400 = vpop.permute.xlu0 %1399
    %v1402 = vsel %vm751, %v1398, 0
    %v1405 = vsel %vm755, %v1400, 0
    %1407 = vmatprep.subr.bf16.mxu0 0
    %1408 = vmatpush1.bf16.msra.mxu0 0
    %1409 = vmatprep.subr.bf16.mxu0 0
    %1410 = vmatpush1.bf16.msra.mxu0 0
    %1411 = vmatprep.subr.bf16.mxu0 0
    %1412 = vmatpush1.bf16.msra.mxu0 0
    %1413 = vmatprep.subr.bf16.mxu0 0
    %1414 = vmatpush1.bf16.msra.mxu0 0
    %1415 = vmatprep.subr.bf16.mxu0 0
    %1416 = vmatpush1.bf16.msra.mxu0 0
    %1417 = vmatprep.subr.bf16.mxu0 0
    %1418 = vmatpush1.bf16.msra.mxu0 0
    %1419 = vmatprep.subr.bf16.mxu0 0
    %1420 = vmatpush1.bf16.msra.mxu0 0
    %1421 = vmatprep.subr.bf16.mxu0 0
    %1422 = vmatpush1.bf16.msra.mxu0 %v1405
    %1423 = vmatprep.subr.bf16.mxu0 0
    %1424 = vmatpush2.bf16.msra.mxu0 0
    %1425 = vmatprep.subr.bf16.mxu0 0
    %1426 = vmatpush2.bf16.msra.mxu0 0
    %1427 = vmatprep.subr.bf16.mxu0 0
    %1428 = vmatpush2.bf16.msra.mxu0 0
    %1429 = vmatprep.subr.bf16.mxu0 0
    %1430 = vmatpush2.bf16.msra.mxu0 0
    %1431 = vmatprep.subr.bf16.mxu0 0
    %1432 = vmatpush2.bf16.msra.mxu0 0
    %1433 = vmatprep.subr.bf16.mxu0 0
    %1434 = vmatpush2.bf16.msra.mxu0 0
    %1435 = vmatprep.subr.bf16.mxu0 0
    %1436 = vmatpush2.bf16.msra.mxu0 0
    %1437 = vmatprep.subr.bf16.mxu0 0
    %1438 = vmatpush2.bf16.msra.mxu0 0
    %1439 = vmatprep.mubr.bf16.mxu0 0
    %1440 = vmatmul.mubr.bf16.gmra.mxu0 %v1402
    %v1441 = vpop.f32.mrf.mxu0
    %v1442 = vadd.f32 0.0, %v1441
    %v1443 = vpop.f32.mrf.mxu0
    %v1444 = vpop.f32.mrf.mxu0
    %v1445 = vpop.f32.mrf.mxu0
    %1446 = vdwg.mxu0
    %v1447 = vpack.c.bf16 %v1442, %v1442
    %v1450 = vunpack.c.l.b16 %v675
    %v1451 = vunpack.c.l.b16 %v676
    %v1452 = vpack.c.b16 %v1451, %v1450
    %v1455 = vsel %vm690, %v1447, 0
    %1457 = vmatprep.subr.bf16.mxu0 0
    %1458 = vmatpush1.bf16.msra.mxu0 0
    %1459 = vmatprep.subr.bf16.mxu0 0
    %1460 = vmatpush1.bf16.msra.mxu0 0
    %1461 = vmatprep.subr.bf16.mxu0 0
    %1462 = vmatpush1.bf16.msra.mxu0 0
    %1463 = vmatprep.subr.bf16.mxu0 0
    %1464 = vmatpush1.bf16.msra.mxu0 0
    %1465 = vmatprep.subr.bf16.mxu0 0
    %1466 = vmatpush1.bf16.msra.mxu0 0
    %1467 = vmatprep.subr.bf16.mxu0 0
    %1468 = vmatpush1.bf16.msra.mxu0 0
    %1469 = vmatprep.subr.bf16.mxu0 0
    %1470 = vmatpush1.bf16.msra.mxu0 0
    %1471 = vmatprep.subr.bf16.mxu0 0
    %1472 = vmatpush1.bf16.msra.mxu0 %v1452
    %1473 = vmatprep.subr.bf16.mxu0 0
    %1474 = vmatpush2.bf16.msra.mxu0 0
    %1475 = vmatprep.subr.bf16.mxu0 0
    %1476 = vmatpush2.bf16.msra.mxu0 0
    %1477 = vmatprep.subr.bf16.mxu0 0
    %1478 = vmatpush2.bf16.msra.mxu0 0
    %1479 = vmatprep.subr.bf16.mxu0 0
    %1480 = vmatpush2.bf16.msra.mxu0 0
    %1481 = vmatprep.subr.bf16.mxu0 0
    %1482 = vmatpush2.bf16.msra.mxu0 0
    %1483 = vmatprep.subr.bf16.mxu0 0
    %1484 = vmatpush2.bf16.msra.mxu0 0
    %1485 = vmatprep.subr.bf16.mxu0 0
    %1486 = vmatpush2.bf16.msra.mxu0 0
    %1487 = vmatprep.subr.bf16.mxu0 0
    %1488 = vmatpush2.bf16.msra.mxu0 0
    %1489 = vmatprep.mubr.bf16.mxu0 0
    %1490 = vmatmul.mubr.bf16.gmra.mxu0 %v1455
    %v1491 = vpop.f32.mrf.mxu0
    %v1492 = vadd.f32 0.0, %v1491
    %v1493 = vpop.f32.mrf.mxu0
    %v1494 = vpop.f32.mrf.mxu0
    %v1495 = vpop.f32.mrf.mxu0
    %1496 = vdwg.mxu0
    %v1497 = vadd.f32 %v1335, %v1492
    %1498 = vrot.lane.b32.xlu0 %v689, 48
    %v1499 = vpop.permute.xlu0 %1498
    %1500 = vrot.lane.b32.xlu0 %v684, 48
    %v1501 = vpop.permute.xlu0 %1500
    %v1503 = vsel %vm690, %v1499, 0
    %v1506 = vsel %vm690, %v1501, 0
    %1508 = vmatprep.subr.bf16.mxu0 0
    %1509 = vmatpush1.bf16.xpose.msra.mxu0 0
    %1510 = vmatprep.subr.bf16.mxu0 0
    %1511 = vmatpush1.bf16.xpose.msra.mxu0 0
    %1512 = vmatprep.subr.bf16.mxu0 0
    %1513 = vmatpush1.bf16.xpose.msra.mxu0 0
    %1514 = vmatprep.subr.bf16.mxu0 0
    %1515 = vmatpush1.bf16.xpose.msra.mxu0 0
    %1516 = vmatprep.subr.bf16.mxu0 0
    %1517 = vmatpush1.bf16.xpose.msra.mxu0 0
    %1518 = vmatprep.subr.bf16.mxu0 0
    %1519 = vmatpush1.bf16.xpose.msra.mxu0 0
    %1520 = vmatprep.subr.bf16.mxu0 0
    %1521 = vmatpush1.bf16.xpose.msra.mxu0 0
    %1522 = vmatprep.subr.bf16.mxu0 0
    %1523 = vmatpush1.bf16.xpose.msra.mxu0 %v1506
    %1524 = vmatprep.subr.bf16.mxu0 0
    %1525 = vmatpush2.bf16.xpose.msra.mxu0 0
    %1526 = vmatprep.subr.bf16.mxu0 0
    %1527 = vmatpush2.bf16.xpose.msra.mxu0 0
    %1528 = vmatprep.subr.bf16.mxu0 0
    %1529 = vmatpush2.bf16.xpose.msra.mxu0 0
    %1530 = vmatprep.subr.bf16.mxu0 0
    %1531 = vmatpush2.bf16.xpose.msra.mxu0 0
    %1532 = vmatprep.subr.bf16.mxu0 0
    %1533 = vmatpush2.bf16.xpose.msra.mxu0 0
    %1534 = vmatprep.subr.bf16.mxu0 0
    %1535 = vmatpush2.bf16.xpose.msra.mxu0 0
    %1536 = vmatprep.subr.bf16.mxu0 0
    %1537 = vmatpush2.bf16.xpose.msra.mxu0 0
    %1538 = vmatprep.subr.bf16.mxu0 0
    %1539 = vmatpush2.bf16.xpose.msra.mxu0 0
    %1540 = vmatprep.mubr.bf16.mxu0 0
    %1541 = vmatmul.mubr.bf16.gmra.mxu0 %v1503
    %v1542 = vpop.f32.mrf.mxu0
    %v1543 = vadd.f32 0.0, %v1542
    %v1544 = vpop.f32.mrf.mxu0
    %v1545 = vpop.f32.mrf.mxu0
    %v1546 = vpop.f32.mrf.mxu0
    %1547 = vdwg.mxu0
    %v1548 = vmul.f32 %v1543, 0.25
    %v1549 = vsel %vm738, %v1548, -inf
    %1550 = vmax.xlane.f32.xlu0 %v1549
    %v1551 = vpop.xlane.xlu0 %1550
    %v1552 = vsub.f32 %v1548, %v1551
    %v1553 = vmul.f32 %v1552, 1.442695
    %v1554 = vpow.pop %v1553
    %v1555 = vsel %vm738, %v1554, 0.0
    %1556 = vadd.xlane.f32.xlu0 %v1555
    %v1557 = vpop.xlane.xlu0 %1556
    %v1558 = vrcp.pop %v1557
    %v1559 = vmul.f32 %v1554, %v1558
    %v1560 = vpack.c.bf16 %v1559, %v1559
    %1561 = vrot.lane.b32.xlu0 %v685, 48
    %v1562 = vpop.permute.xlu0 %1561
    %v1564 = vsel %vm751, %v1560, 0
    %v1567 = vsel %vm755, %v1562, 0
    %1569 = vmatprep.subr.bf16.mxu0 0
    %1570 = vmatpush1.bf16.msra.mxu0 0
    %1571 = vmatprep.subr.bf16.mxu0 0
    %1572 = vmatpush1.bf16.msra.mxu0 0
    %1573 = vmatprep.subr.bf16.mxu0 0
    %1574 = vmatpush1.bf16.msra.mxu0 0
    %1575 = vmatprep.subr.bf16.mxu0 0
    %1576 = vmatpush1.bf16.msra.mxu0 0
    %1577 = vmatprep.subr.bf16.mxu0 0
    %1578 = vmatpush1.bf16.msra.mxu0 0
    %1579 = vmatprep.subr.bf16.mxu0 0
    %1580 = vmatpush1.bf16.msra.mxu0 0
    %1581 = vmatprep.subr.bf16.mxu0 0
    %1582 = vmatpush1.bf16.msra.mxu0 0
    %1583 = vmatprep.subr.bf16.mxu0 0
    %1584 = vmatpush1.bf16.msra.mxu0 %v1567
    %1585 = vmatprep.subr.bf16.mxu0 0
    %1586 = vmatpush2.bf16.msra.mxu0 0
    %1587 = vmatprep.subr.bf16.mxu0 0
    %1588 = vmatpush2.bf16.msra.mxu0 0
    %1589 = vmatprep.subr.bf16.mxu0 0
    %1590 = vmatpush2.bf16.msra.mxu0 0
    %1591 = vmatprep.subr.bf16.mxu0 0
    %1592 = vmatpush2.bf16.msra.mxu0 0
    %1593 = vmatprep.subr.bf16.mxu0 0
    %1594 = vmatpush2.bf16.msra.mxu0 0
    %1595 = vmatprep.subr.bf16.mxu0 0
    %1596 = vmatpush2.bf16.msra.mxu0 0
    %1597 = vmatprep.subr.bf16.mxu0 0
    %1598 = vmatpush2.bf16.msra.mxu0 0
    %1599 = vmatprep.subr.bf16.mxu0 0
    %1600 = vmatpush2.bf16.msra.mxu0 0
    %1601 = vmatprep.mubr.bf16.mxu0 0
    %1602 = vmatmul.mubr.bf16.gmra.mxu0 %v1564
    %v1603 = vpop.f32.mrf.mxu0
    %v1604 = vadd.f32 0.0, %v1603
    %v1605 = vpop.f32.mrf.mxu0
    %v1606 = vpop.f32.mrf.mxu0
    %v1607 = vpop.f32.mrf.mxu0
    %1608 = vdwg.mxu0
    %v1609 = vpack.c.bf16 %v1604, %v1604
    %v1612 = vunpack.c.l.b16 %v677
    %v1613 = vunpack.c.l.b16 %v678
    %v1614 = vpack.c.b16 %v1613, %v1612
    %v1617 = vsel %vm690, %v1609, 0
    %1619 = vmatprep.subr.bf16.mxu0 0
    %1620 = vmatpush1.bf16.msra.mxu0 0
    %1621 = vmatprep.subr.bf16.mxu0 0
    %1622 = vmatpush1.bf16.msra.mxu0 0
    %1623 = vmatprep.subr.bf16.mxu0 0
    %1624 = vmatpush1.bf16.msra.mxu0 0
    %1625 = vmatprep.subr.bf16.mxu0 0
    %1626 = vmatpush1.bf16.msra.mxu0 0
    %1627 = vmatprep.subr.bf16.mxu0 0
    %1628 = vmatpush1.bf16.msra.mxu0 0
    %1629 = vmatprep.subr.bf16.mxu0 0
    %1630 = vmatpush1.bf16.msra.mxu0 0
    %1631 = vmatprep.subr.bf16.mxu0 0
    %1632 = vmatpush1.bf16.msra.mxu0 0
    %1633 = vmatprep.subr.bf16.mxu0 0
    %1634 = vmatpush1.bf16.msra.mxu0 %v1614
    %1635 = vmatprep.subr.bf16.mxu0 0
    %1636 = vmatpush2.bf16.msra.mxu0 0
    %1637 = vmatprep.subr.bf16.mxu0 0
    %1638 = vmatpush2.bf16.msra.mxu0 0
    %1639 = vmatprep.subr.bf16.mxu0 0
    %1640 = vmatpush2.bf16.msra.mxu0 0
    %1641 = vmatprep.subr.bf16.mxu0 0
    %1642 = vmatpush2.bf16.msra.mxu0 0
    %1643 = vmatprep.subr.bf16.mxu0 0
    %1644 = vmatpush2.bf16.msra.mxu0 0
    %1645 = vmatprep.subr.bf16.mxu0 0
    %1646 = vmatpush2.bf16.msra.mxu0 0
    %1647 = vmatprep.subr.bf16.mxu0 0
    %1648 = vmatpush2.bf16.msra.mxu0 0
    %1649 = vmatprep.subr.bf16.mxu0 0
    %1650 = vmatpush2.bf16.msra.mxu0 0
    %1651 = vmatprep.mubr.bf16.mxu0 0
    %1652 = vmatmul.mubr.bf16.gmra.mxu0 %v1617
    %v1653 = vpop.f32.mrf.mxu0
    %v1654 = vadd.f32 0.0, %v1653
    %v1655 = vpop.f32.mrf.mxu0
    %v1656 = vpop.f32.mrf.mxu0
    %v1657 = vpop.f32.mrf.mxu0
    %1658 = vdwg.mxu0
    %v1659 = vadd.f32 %v1497, %v1654
    %1660 = vrot.lane.b32.xlu0 %v689, 32
    %v1661 = vpop.permute.xlu0 %1660
    %1662 = vrot.lane.b32.xlu0 %v684, 32
    %v1663 = vpop.permute.xlu0 %1662
    %v1665 = vsel %vm690, %v1661, 0
    %v1668 = vsel %vm690, %v1663, 0
    %1670 = vmatprep.subr.bf16.mxu0 0
    %1671 = vmatpush1.bf16.xpose.msra.mxu0 0
    %1672 = vmatprep.subr.bf16.mxu0 0
    %1673 = vmatpush1.bf16.xpose.msra.mxu0 0
    %1674 = vmatprep.subr.bf16.mxu0 0
    %1675 = vmatpush1.bf16.xpose.msra.mxu0 0
    %1676 = vmatprep.subr.bf16.mxu0 0
    %1677 = vmatpush1.bf16.xpose.msra.mxu0 0
    %1678 = vmatprep.subr.bf16.mxu0 0
    %1679 = vmatpush1.bf16.xpose.msra.mxu0 0
    %1680 = vmatprep.subr.bf16.mxu0 0
    %1681 = vmatpush1.bf16.xpose.msra.mxu0 0
    %1682 = vmatprep.subr.bf16.mxu0 0
    %1683 = vmatpush1.bf16.xpose.msra.mxu0 0
    %1684 = vmatprep.subr.bf16.mxu0 0
    %1685 = vmatpush1.bf16.xpose.msra.mxu0 %v1668
    %1686 = vmatprep.subr.bf16.mxu0 0
    %1687 = vmatpush2.bf16.xpose.msra.mxu0 0
    %1688 = vmatprep.subr.bf16.mxu0 0
    %1689 = vmatpush2.bf16.xpose.msra.mxu0 0
    %1690 = vmatprep.subr.bf16.mxu0 0
    %1691 = vmatpush2.bf16.xpose.msra.mxu0 0
    %1692 = vmatprep.subr.bf16.mxu0 0
    %1693 = vmatpush2.bf16.xpose.msra.mxu0 0
    %1694 = vmatprep.subr.bf16.mxu0 0
    %1695 = vmatpush2.bf16.xpose.msra.mxu0 0
    %1696 = vmatprep.subr.bf16.mxu0 0
    %1697 = vmatpush2.bf16.xpose.msra.mxu0 0
    %1698 = vmatprep.subr.bf16.mxu0 0
    %1699 = vmatpush2.bf16.xpose.msra.mxu0 0
    %1700 = vmatprep.subr.bf16.mxu0 0
    %1701 = vmatpush2.bf16.xpose.msra.mxu0 0
    %1702 = vmatprep.mubr.bf16.mxu0 0
    %1703 = vmatmul.mubr.bf16.gmra.mxu0 %v1665
    %v1704 = vpop.f32.mrf.mxu0
    %v1705 = vadd.f32 0.0, %v1704
    %v1706 = vpop.f32.mrf.mxu0
    %v1707 = vpop.f32.mrf.mxu0
    %v1708 = vpop.f32.mrf.mxu0
    %1709 = vdwg.mxu0
    %v1710 = vmul.f32 %v1705, 0.25
    %v1711 = vsel %vm738, %v1710, -inf
    %1712 = vmax.xlane.f32.xlu0 %v1711
    %v1713 = vpop.xlane.xlu0 %1712
    %v1714 = vsub.f32 %v1710, %v1713
    %v1715 = vmul.f32 %v1714, 1.442695
    %v1716 = vpow.pop %v1715
    %v1717 = vsel %vm738, %v1716, 0.0
    %1718 = vadd.xlane.f32.xlu0 %v1717
    %v1719 = vpop.xlane.xlu0 %1718
    %v1720 = vrcp.pop %v1719
    %v1721 = vmul.f32 %v1716, %v1720
    %v1722 = vpack.c.bf16 %v1721, %v1721
    %1723 = vrot.lane.b32.xlu0 %v685, 32
    %v1724 = vpop.permute.xlu0 %1723
    %v1726 = vsel %vm751, %v1722, 0
    %v1729 = vsel %vm755, %v1724, 0
    %1731 = vmatprep.subr.bf16.mxu0 0
    %1732 = vmatpush1.bf16.msra.mxu0 0
    %1733 = vmatprep.subr.bf16.mxu0 0
    %1734 = vmatpush1.bf16.msra.mxu0 0
    %1735 = vmatprep.subr.bf16.mxu0 0
    %1736 = vmatpush1.bf16.msra.mxu0 0
    %1737 = vmatprep.subr.bf16.mxu0 0
    %1738 = vmatpush1.bf16.msra.mxu0 0
    %1739 = vmatprep.subr.bf16.mxu0 0
    %1740 = vmatpush1.bf16.msra.mxu0 0
    %1741 = vmatprep.subr.bf16.mxu0 0
    %1742 = vmatpush1.bf16.msra.mxu0 0
    %1743 = vmatprep.subr.bf16.mxu0 0
    %1744 = vmatpush1.bf16.msra.mxu0 0
    %1745 = vmatprep.subr.bf16.mxu0 0
    %1746 = vmatpush1.bf16.msra.mxu0 %v1729
    %1747 = vmatprep.subr.bf16.mxu0 0
    %1748 = vmatpush2.bf16.msra.mxu0 0
    %1749 = vmatprep.subr.bf16.mxu0 0
    %1750 = vmatpush2.bf16.msra.mxu0 0
    %1751 = vmatprep.subr.bf16.mxu0 0
    %1752 = vmatpush2.bf16.msra.mxu0 0
    %1753 = vmatprep.subr.bf16.mxu0 0
    %1754 = vmatpush2.bf16.msra.mxu0 0
    %1755 = vmatprep.subr.bf16.mxu0 0
    %1756 = vmatpush2.bf16.msra.mxu0 0
    %1757 = vmatprep.subr.bf16.mxu0 0
    %1758 = vmatpush2.bf16.msra.mxu0 0
    %1759 = vmatprep.subr.bf16.mxu0 0
    %1760 = vmatpush2.bf16.msra.mxu0 0
    %1761 = vmatprep.subr.bf16.mxu0 0
    %1762 = vmatpush2.bf16.msra.mxu0 0
    %1763 = vmatprep.mubr.bf16.mxu0 0
    %1764 = vmatmul.mubr.bf16.gmra.mxu0 %v1726
    %v1765 = vpop.f32.mrf.mxu0
    %v1766 = vadd.f32 0.0, %v1765
    %v1767 = vpop.f32.mrf.mxu0
    %v1768 = vpop.f32.mrf.mxu0
    %v1769 = vpop.f32.mrf.mxu0
    %1770 = vdwg.mxu0
    %v1771 = vpack.c.bf16 %v1766, %v1766
    %v1774 = vunpack.c.l.b16 %v679
    %v1775 = vunpack.c.l.b16 %v680
    %v1776 = vpack.c.b16 %v1775, %v1774
    %v1779 = vsel %vm690, %v1771, 0
    %1781 = vmatprep.subr.bf16.mxu0 0
    %1782 = vmatpush1.bf16.msra.mxu0 0
    %1783 = vmatprep.subr.bf16.mxu0 0
    %1784 = vmatpush1.bf16.msra.mxu0 0
    %1785 = vmatprep.subr.bf16.mxu0 0
    %1786 = vmatpush1.bf16.msra.mxu0 0
    %1787 = vmatprep.subr.bf16.mxu0 0
    %1788 = vmatpush1.bf16.msra.mxu0 0
    %1789 = vmatprep.subr.bf16.mxu0 0
    %1790 = vmatpush1.bf16.msra.mxu0 0
    %1791 = vmatprep.subr.bf16.mxu0 0
    %1792 = vmatpush1.bf16.msra.mxu0 0
    %1793 = vmatprep.subr.bf16.mxu0 0
    %1794 = vmatpush1.bf16.msra.mxu0 0
    %1795 = vmatprep.subr.bf16.mxu0 0
    %1796 = vmatpush1.bf16.msra.mxu0 %v1776
    %1797 = vmatprep.subr.bf16.mxu0 0
    %1798 = vmatpush2.bf16.msra.mxu0 0
    %1799 = vmatprep.subr.bf16.mxu0 0
    %1800 = vmatpush2.bf16.msra.mxu0 0
    %1801 = vmatprep.subr.bf16.mxu0 0
    %1802 = vmatpush2.bf16.msra.mxu0 0
    %1803 = vmatprep.subr.bf16.mxu0 0
    %1804 = vmatpush2.bf16.msra.mxu0 0
    %1805 = vmatprep.subr.bf16.mxu0 0
    %1806 = vmatpush2.bf16.msra.mxu0 0
    %1807 = vmatprep.subr.bf16.mxu0 0
    %1808 = vmatpush2.bf16.msra.mxu0 0
    %1809 = vmatprep.subr.bf16.mxu0 0
    %1810 = vmatpush2.bf16.msra.mxu0 0
    %1811 = vmatprep.subr.bf16.mxu0 0
    %1812 = vmatpush2.bf16.msra.mxu0 0
    %1813 = vmatprep.mubr.bf16.mxu0 0
    %1814 = vmatmul.mubr.bf16.gmra.mxu0 %v1779
    %v1815 = vpop.f32.mrf.mxu0
    %v1816 = vadd.f32 0.0, %v1815
    %v1817 = vpop.f32.mrf.mxu0
    %v1818 = vpop.f32.mrf.mxu0
    %v1819 = vpop.f32.mrf.mxu0
    %1820 = vdwg.mxu0
    %v1821 = vadd.f32 %v1659, %v1816
    %1822 = vrot.lane.b32.xlu0 %v689, 16
    %v1823 = vpop.permute.xlu0 %1822
    %1824 = vrot.lane.b32.xlu0 %v684, 16
    %v1825 = vpop.permute.xlu0 %1824
    %v1827 = vsel %vm690, %v1823, 0
    %v1830 = vsel %vm690, %v1825, 0
    %1832 = vmatprep.subr.bf16.mxu0 0
    %1833 = vmatpush1.bf16.xpose.msra.mxu0 0
    %1834 = vmatprep.subr.bf16.mxu0 0
    %1835 = vmatpush1.bf16.xpose.msra.mxu0 0
    %1836 = vmatprep.subr.bf16.mxu0 0
    %1837 = vmatpush1.bf16.xpose.msra.mxu0 0
    %1838 = vmatprep.subr.bf16.mxu0 0
    %1839 = vmatpush1.bf16.xpose.msra.mxu0 0
    %1840 = vmatprep.subr.bf16.mxu0 0
    %1841 = vmatpush1.bf16.xpose.msra.mxu0 0
    %1842 = vmatprep.subr.bf16.mxu0 0
    %1843 = vmatpush1.bf16.xpose.msra.mxu0 0
    %1844 = vmatprep.subr.bf16.mxu0 0
    %1845 = vmatpush1.bf16.xpose.msra.mxu0 0
    %1846 = vmatprep.subr.bf16.mxu0 0
    %1847 = vmatpush1.bf16.xpose.msra.mxu0 %v1830
    %1848 = vmatprep.subr.bf16.mxu0 0
    %1849 = vmatpush2.bf16.xpose.msra.mxu0 0
    %1850 = vmatprep.subr.bf16.mxu0 0
    %1851 = vmatpush2.bf16.xpose.msra.mxu0 0
    %1852 = vmatprep.subr.bf16.mxu0 0
    %1853 = vmatpush2.bf16.xpose.msra.mxu0 0
    %1854 = vmatprep.subr.bf16.mxu0 0
    %1855 = vmatpush2.bf16.xpose.msra.mxu0 0
    %1856 = vmatprep.subr.bf16.mxu0 0
    %1857 = vmatpush2.bf16.xpose.msra.mxu0 0
    %1858 = vmatprep.subr.bf16.mxu0 0
    %1859 = vmatpush2.bf16.xpose.msra.mxu0 0
    %1860 = vmatprep.subr.bf16.mxu0 0
    %1861 = vmatpush2.bf16.xpose.msra.mxu0 0
    %1862 = vmatprep.subr.bf16.mxu0 0
    %1863 = vmatpush2.bf16.xpose.msra.mxu0 0
    %1864 = vmatprep.mubr.bf16.mxu0 0
    %1865 = vmatmul.mubr.bf16.gmra.mxu0 %v1827
    %v1866 = vpop.f32.mrf.mxu0
    %v1867 = vadd.f32 0.0, %v1866
    %v1868 = vpop.f32.mrf.mxu0
    %v1869 = vpop.f32.mrf.mxu0
    %v1870 = vpop.f32.mrf.mxu0
    %1871 = vdwg.mxu0
    %v1872 = vmul.f32 %v1867, 0.25
    %v1873 = vsel %vm738, %v1872, -inf
    %1874 = vmax.xlane.f32.xlu0 %v1873
    %v1875 = vpop.xlane.xlu0 %1874
    %v1876 = vsub.f32 %v1872, %v1875
    %v1877 = vmul.f32 %v1876, 1.442695
    %v1878 = vpow.pop %v1877
    %v1879 = vsel %vm738, %v1878, 0.0
    %1880 = vadd.xlane.f32.xlu0 %v1879
    %v1881 = vpop.xlane.xlu0 %1880
    %v1882 = vrcp.pop %v1881
    %v1883 = vmul.f32 %v1878, %v1882
    %v1884 = vpack.c.bf16 %v1883, %v1883
    %1885 = vrot.lane.b32.xlu0 %v685, 16
    %v1886 = vpop.permute.xlu0 %1885
    %v1888 = vsel %vm751, %v1884, 0
    %v1891 = vsel %vm755, %v1886, 0
    %1893 = vmatprep.subr.bf16.mxu0 0
    %1894 = vmatpush1.bf16.msra.mxu0 0
    %1895 = vmatprep.subr.bf16.mxu0 0
    %1896 = vmatpush1.bf16.msra.mxu0 0
    %1897 = vmatprep.subr.bf16.mxu0 0
    %1898 = vmatpush1.bf16.msra.mxu0 0
    %1899 = vmatprep.subr.bf16.mxu0 0
    %1900 = vmatpush1.bf16.msra.mxu0 0
    %1901 = vmatprep.subr.bf16.mxu0 0
    %1902 = vmatpush1.bf16.msra.mxu0 0
    %1903 = vmatprep.subr.bf16.mxu0 0
    %1904 = vmatpush1.bf16.msra.mxu0 0
    %1905 = vmatprep.subr.bf16.mxu0 0
    %1906 = vmatpush1.bf16.msra.mxu0 0
    %1907 = vmatprep.subr.bf16.mxu0 0
    %1908 = vmatpush1.bf16.msra.mxu0 %v1891
    %1909 = vmatprep.subr.bf16.mxu0 0
    %1910 = vmatpush2.bf16.msra.mxu0 0
    %1911 = vmatprep.subr.bf16.mxu0 0
    %1912 = vmatpush2.bf16.msra.mxu0 0
    %1913 = vmatprep.subr.bf16.mxu0 0
    %1914 = vmatpush2.bf16.msra.mxu0 0
    %1915 = vmatprep.subr.bf16.mxu0 0
    %1916 = vmatpush2.bf16.msra.mxu0 0
    %1917 = vmatprep.subr.bf16.mxu0 0
    %1918 = vmatpush2.bf16.msra.mxu0 0
    %1919 = vmatprep.subr.bf16.mxu0 0
    %1920 = vmatpush2.bf16.msra.mxu0 0
    %1921 = vmatprep.subr.bf16.mxu0 0
    %1922 = vmatpush2.bf16.msra.mxu0 0
    %1923 = vmatprep.subr.bf16.mxu0 0
    %1924 = vmatpush2.bf16.msra.mxu0 0
    %1925 = vmatprep.mubr.bf16.mxu0 0
    %1926 = vmatmul.mubr.bf16.gmra.mxu0 %v1888
    %v1927 = vpop.f32.mrf.mxu0
    %v1928 = vadd.f32 0.0, %v1927
    %v1929 = vpop.f32.mrf.mxu0
    %v1930 = vpop.f32.mrf.mxu0
    %v1931 = vpop.f32.mrf.mxu0
    %1932 = vdwg.mxu0
    %v1933 = vpack.c.bf16 %v1928, %v1928
    %v1936 = vunpack.c.l.b16 %v681
    %v1937 = vunpack.c.l.b16 %v682
    %v1938 = vpack.c.b16 %v1937, %v1936
    %v1941 = vsel %vm690, %v1933, 0
    %1943 = vmatprep.subr.bf16.mxu0 0
    %1944 = vmatpush1.bf16.msra.mxu0 0
    %1945 = vmatprep.subr.bf16.mxu0 0
    %1946 = vmatpush1.bf16.msra.mxu0 0
    %1947 = vmatprep.subr.bf16.mxu0 0
    %1948 = vmatpush1.bf16.msra.mxu0 0
    %1949 = vmatprep.subr.bf16.mxu0 0
    %1950 = vmatpush1.bf16.msra.mxu0 0
    %1951 = vmatprep.subr.bf16.mxu0 0
    %1952 = vmatpush1.bf16.msra.mxu0 0
    %1953 = vmatprep.subr.bf16.mxu0 0
    %1954 = vmatpush1.bf16.msra.mxu0 0
    %1955 = vmatprep.subr.bf16.mxu0 0
    %1956 = vmatpush1.bf16.msra.mxu0 0
    %1957 = vmatprep.subr.bf16.mxu0 0
    %1958 = vmatpush1.bf16.msra.mxu0 %v1938
    %1959 = vmatprep.subr.bf16.mxu0 0
    %1960 = vmatpush2.bf16.msra.mxu0 0
    %1961 = vmatprep.subr.bf16.mxu0 0
    %1962 = vmatpush2.bf16.msra.mxu0 0
    %1963 = vmatprep.subr.bf16.mxu0 0
    %1964 = vmatpush2.bf16.msra.mxu0 0
    %1965 = vmatprep.subr.bf16.mxu0 0
    %1966 = vmatpush2.bf16.msra.mxu0 0
    %1967 = vmatprep.subr.bf16.mxu0 0
    %1968 = vmatpush2.bf16.msra.mxu0 0
    %1969 = vmatprep.subr.bf16.mxu0 0
    %1970 = vmatpush2.bf16.msra.mxu0 0
    %1971 = vmatprep.subr.bf16.mxu0 0
    %1972 = vmatpush2.bf16.msra.mxu0 0
    %1973 = vmatprep.subr.bf16.mxu0 0
    %1974 = vmatpush2.bf16.msra.mxu0 0
    %1975 = vmatprep.mubr.bf16.mxu0 0
    %1976 = vmatmul.mubr.bf16.gmra.mxu0 %v1941
    %v1977 = vpop.f32.mrf.mxu0
    %v1978 = vadd.f32 0.0, %v1977
    %v1979 = vpop.f32.mrf.mxu0
    %v1980 = vpop.f32.mrf.mxu0
    %v1981 = vpop.f32.mrf.mxu0
    %1982 = vdwg.mxu0
    %v1983 = vadd.f32 %v1821, %v1978
    %v1985 = vrot.slane %v179, 2
    %v1987 = vadd.f32 %v1983, %v1985
    %v1989 = vrot.slane %v1987, 1
    %v1991 = vadd.f32 %v407, %v1989
    %vm1992 = vcmask 1047559
    %v1993 = vsel %vm1992, %v1991, 0.0
    %1994 = vadd.xlane.f32.xlu0 %v1993
    %v1995 = vpop.xlane.xlu0 %1994
    %v1996 = vrcp.pop 128.0
    %v1997 = vmul.f32 %v1995, %v1996
    %v1998 = vsub.f32 %v1991, %v1997
    %v1999 = vmul.f32 %v1998, %v1998
    %v2000 = vsel %vm1992, %v1999, 0.0
    %2001 = vadd.xlane.f32.xlu0 %v2000
    %v2002 = vpop.xlane.xlu0 %2001
    %v2003 = vmul.f32 %v2002, %v1996
    %v2004 = vadd.f32 %v2003, 1e-05
    %v2005 = vrsqrt.pop %v2004
    %v2006 = vmul.f32 %v1998, %v2005
    %v2007 = vrot.slane %v179, 4
    %v2009 = vmul.f32 %v2006, %v2007
    %v2010 = vrot.slane %v179, 5
    %v2012 = vadd.f32 %v2009, %v2010
    %v2013 = vpack.c.bf16 %v2012, %v2012
    %v2014 = vld [vmem:[#allocation11] sm:$0xff]
    %v2015 = vld [vmem:[#allocation11 + $0x8] sm:$0xff]
    %v2016 = vld [vmem:[#allocation11 + $0x10] sm:$0xff]
    %v2017 = vld [vmem:[#allocation11 + $0x18] sm:$0xff]
    %v2018 = vld [vmem:[#allocation11 + $0x20] sm:$0xff]
    %v2019 = vld [vmem:[#allocation11 + $0x28] sm:$0xff]
    %v2020 = vld [vmem:[#allocation11 + $0x30] sm:$0xff]
    %v2021 = vld [vmem:[#allocation11 + $0x38] sm:$0xff]
    %v2022 = vld [vmem:[#allocation11 + $0x40] sm:$0xff]
    %v2023 = vld [vmem:[#allocation11 + $0x48] sm:$0xff]
    %v2024 = vld [vmem:[#allocation11 + $0x50] sm:$0xff]
    %v2025 = vld [vmem:[#allocation11 + $0x58] sm:$0xff]
    %v2026 = vld [vmem:[#allocation11 + $0x60] sm:$0xff]
    %v2027 = vld [vmem:[#allocation11 + $0x68] sm:$0xff]
    %v2028 = vld [vmem:[#allocation11 + $0x70] sm:$0xff]
    %v2029 = vld [vmem:[#allocation11 + $0x78] sm:$0xff]
    %v2030 = vld [vmem:[#allocation11 + $0x80] sm:$0xff]
    %v2031 = vld [vmem:[#allocation11 + $0x88] sm:$0xff]
    %v2032 = vld [vmem:[#allocation11 + $0x90] sm:$0xff]
    %v2033 = vld [vmem:[#allocation11 + $0x98] sm:$0xff]
    %v2034 = vld [vmem:[#allocation11 + $0xa0] sm:$0xff]
    %v2035 = vld [vmem:[#allocation11 + $0xa8] sm:$0xff]
    %v2036 = vld [vmem:[#allocation11 + $0xb0] sm:$0xff]
    %v2037 = vld [vmem:[#allocation11 + $0xb8] sm:$0xff]
    %v2038 = vld [vmem:[#allocation11 + $0xc0] sm:$0xff]
    %v2039 = vld [vmem:[#allocation11 + $0xc8] sm:$0xff]
    %v2040 = vld [vmem:[#allocation11 + $0xd0] sm:$0xff]
    %v2041 = vld [vmem:[#allocation11 + $0xd8] sm:$0xff]
    %v2042 = vld [vmem:[#allocation11 + $0xe0] sm:$0xff]
    %v2043 = vld [vmem:[#allocation11 + $0xe8] sm:$0xff]
    %v2044 = vld [vmem:[#allocation11 + $0xf0] sm:$0xff]
    %v2045 = vld [vmem:[#allocation11 + $0xf8] sm:$0xff]
    %v2046 = vld [vmem:[#allocation11 + $0x100] sm:$0xff]
    %v2047 = vld [vmem:[#allocation11 + $0x108] sm:$0xff]
    %v2048 = vld [vmem:[#allocation11 + $0x110] sm:$0xff]
    %v2049 = vld [vmem:[#allocation11 + $0x118] sm:$0xff]
    %v2050 = vld [vmem:[#allocation11 + $0x120] sm:$0xff]
    %v2051 = vld [vmem:[#allocation11 + $0x128] sm:$0xff]
    %v2052 = vld [vmem:[#allocation11 + $0x130] sm:$0xff]
    %v2053 = vld [vmem:[#allocation11 + $0x138] sm:$0xff]
    %v2054 = vld [vmem:[#allocation11 + $0x140] sm:$0xff]
    %v2055 = vld [vmem:[#allocation11 + $0x148] sm:$0xff]
    %v2056 = vld [vmem:[#allocation11 + $0x150] sm:$0xff]
    %v2057 = vld [vmem:[#allocation11 + $0x158] sm:$0xff]
    %v2058 = vld [vmem:[#allocation11 + $0x160] sm:$0xff]
    %v2059 = vld [vmem:[#allocation11 + $0x168] sm:$0xff]
    %v2060 = vld [vmem:[#allocation11 + $0x170] sm:$0xff]
    %v2061 = vld [vmem:[#allocation11 + $0x178] sm:$0xff]
    %v2062 = vld [vmem:[#allocation11 + $0x180] sm:$0xff]
    %v2063 = vld [vmem:[#allocation11 + $0x188] sm:$0xff]
    %v2064 = vld [vmem:[#allocation11 + $0x190] sm:$0xff]
    %v2065 = vld [vmem:[#allocation11 + $0x198] sm:$0xff]
    %v2066 = vld [vmem:[#allocation11 + $0x1a0] sm:$0xff]
    %v2067 = vld [vmem:[#allocation11 + $0x1a8] sm:$0xff]
    %v2068 = vld [vmem:[#allocation11 + $0x1b0] sm:$0xff]
    %v2069 = vld [vmem:[#allocation11 + $0x1b8] sm:$0xff]
    %v2070 = vld [vmem:[#allocation11 + $0x1c0] sm:$0xff]
    %v2071 = vld [vmem:[#allocation11 + $0x1c8] sm:$0xff]
    %v2072 = vld [vmem:[#allocation11 + $0x1d0] sm:$0xff]
    %v2073 = vld [vmem:[#allocation11 + $0x1d8] sm:$0xff]
    %v2074 = vld [vmem:[#allocation11 + $0x1e0] sm:$0xff]
    %v2075 = vld [vmem:[#allocation11 + $0x1e8] sm:$0xff]
    %v2076 = vld [vmem:[#allocation11 + $0x1f0] sm:$0xff]
    %v2077 = vld [vmem:[#allocation11 + $0x1f8] sm:$0xff]
    %v2078 = vld [vmem:[#allocation13] sm:$0xff]
    %v2080 = vshrl.u32 %v2013, 16
    %v2082 = vrot.slane %v2080, 3
    %v2148 = vunpack.c.l.b16 %v2014
    %v2149 = vunpack.c.h.b16 %v2014
    %v2150 = vunpack.c.l.b16 %v2015
    %v2151 = vunpack.c.h.b16 %v2015
    %v2152 = vunpack.c.l.b16 %v2016
    %v2153 = vunpack.c.h.b16 %v2016
    %v2154 = vunpack.c.l.b16 %v2017
    %v2155 = vunpack.c.h.b16 %v2017
    %v2156 = vunpack.c.l.b16 %v2018
    %v2157 = vunpack.c.h.b16 %v2018
    %v2158 = vunpack.c.l.b16 %v2019
    %v2159 = vunpack.c.h.b16 %v2019
    %v2160 = vunpack.c.l.b16 %v2020
    %v2161 = vunpack.c.h.b16 %v2020
    %v2162 = vunpack.c.l.b16 %v2021
    %v2163 = vunpack.c.h.b16 %v2021
    %v2164 = vunpack.c.l.b16 %v2022
    %v2165 = vunpack.c.h.b16 %v2022
    %v2166 = vunpack.c.l.b16 %v2023
    %v2167 = vunpack.c.h.b16 %v2023
    %v2168 = vunpack.c.l.b16 %v2024
    %v2169 = vunpack.c.h.b16 %v2024
    %v2170 = vunpack.c.l.b16 %v2025
    %v2171 = vunpack.c.h.b16 %v2025
    %v2172 = vunpack.c.l.b16 %v2026
    %v2173 = vunpack.c.h.b16 %v2026
    %v2174 = vunpack.c.l.b16 %v2027
    %v2175 = vunpack.c.h.b16 %v2027
    %v2176 = vunpack.c.l.b16 %v2028
    %v2177 = vunpack.c.h.b16 %v2028
    %v2178 = vunpack.c.l.b16 %v2029
    %v2179 = vunpack.c.h.b16 %v2029
    %v2180 = vunpack.c.l.b16 %v2030
    %v2181 = vunpack.c.h.b16 %v2030
    %v2182 = vunpack.c.l.b16 %v2031
    %v2183 = vunpack.c.h.b16 %v2031
    %v2184 = vunpack.c.l.b16 %v2032
    %v2185 = vunpack.c.h.b16 %v2032
    %v2186 = vunpack.c.l.b16 %v2033
    %v2187 = vunpack.c.h.b16 %v2033
    %v2188 = vunpack.c.l.b16 %v2034
    %v2189 = vunpack.c.h.b16 %v2034
    %v2190 = vunpack.c.l.b16 %v2035
    %v2191 = vunpack.c.h.b16 %v2035
    %v2192 = vunpack.c.l.b16 %v2036
    %v2193 = vunpack.c.h.b16 %v2036
    %v2194 = vunpack.c.l.b16 %v2037
    %v2195 = vunpack.c.h.b16 %v2037
    %v2196 = vunpack.c.l.b16 %v2038
    %v2197 = vunpack.c.h.b16 %v2038
    %v2198 = vunpack.c.l.b16 %v2039
    %v2199 = vunpack.c.h.b16 %v2039
    %v2200 = vunpack.c.l.b16 %v2040
    %v2201 = vunpack.c.h.b16 %v2040
    %v2202 = vunpack.c.l.b16 %v2041
    %v2203 = vunpack.c.h.b16 %v2041
    %v2204 = vunpack.c.l.b16 %v2042
    %v2205 = vunpack.c.h.b16 %v2042
    %v2206 = vunpack.c.l.b16 %v2043
    %v2207 = vunpack.c.h.b16 %v2043
    %v2208 = vunpack.c.l.b16 %v2044
    %v2209 = vunpack.c.h.b16 %v2044
    %v2210 = vunpack.c.l.b16 %v2045
    %v2211 = vunpack.c.h.b16 %v2045
    %v2212 = vunpack.c.l.b16 %v2046
    %v2213 = vunpack.c.h.b16 %v2046
    %v2214 = vunpack.c.l.b16 %v2047
    %v2215 = vunpack.c.h.b16 %v2047
    %v2216 = vunpack.c.l.b16 %v2048
    %v2217 = vunpack.c.h.b16 %v2048
    %v2218 = vunpack.c.l.b16 %v2049
    %v2219 = vunpack.c.h.b16 %v2049
    %v2220 = vunpack.c.l.b16 %v2050
    %v2221 = vunpack.c.h.b16 %v2050
    %v2222 = vunpack.c.l.b16 %v2051
    %v2223 = vunpack.c.h.b16 %v2051
    %v2224 = vunpack.c.l.b16 %v2052
    %v2225 = vunpack.c.h.b16 %v2052
    %v2226 = vunpack.c.l.b16 %v2053
    %v2227 = vunpack.c.h.b16 %v2053
    %v2228 = vunpack.c.l.b16 %v2054
    %v2229 = vunpack.c.h.b16 %v2054
    %v2230 = vunpack.c.l.b16 %v2055
    %v2231 = vunpack.c.h.b16 %v2055
    %v2232 = vunpack.c.l.b16 %v2056
    %v2233 = vunpack.c.h.b16 %v2056
    %v2234 = vunpack.c.l.b16 %v2057
    %v2235 = vunpack.c.h.b16 %v2057
    %v2236 = vunpack.c.l.b16 %v2058
    %v2237 = vunpack.c.h.b16 %v2058
    %v2238 = vunpack.c.l.b16 %v2059
    %v2239 = vunpack.c.h.b16 %v2059
    %v2240 = vunpack.c.l.b16 %v2060
    %v2241 = vunpack.c.h.b16 %v2060
    %v2242 = vunpack.c.l.b16 %v2061
    %v2243 = vunpack.c.h.b16 %v2061
    %v2244 = vunpack.c.l.b16 %v2062
    %v2245 = vunpack.c.h.b16 %v2062
    %v2246 = vunpack.c.l.b16 %v2063
    %v2247 = vunpack.c.h.b16 %v2063
    %v2248 = vunpack.c.l.b16 %v2064
    %v2249 = vunpack.c.h.b16 %v2064
    %v2250 = vunpack.c.l.b16 %v2065
    %v2251 = vunpack.c.h.b16 %v2065
    %v2252 = vunpack.c.l.b16 %v2066
    %v2253 = vunpack.c.h.b16 %v2066
    %v2254 = vunpack.c.l.b16 %v2067
    %v2255 = vunpack.c.h.b16 %v2067
    %v2256 = vunpack.c.l.b16 %v2068
    %v2257 = vunpack.c.h.b16 %v2068
    %v2258 = vunpack.c.l.b16 %v2069
    %v2259 = vunpack.c.h.b16 %v2069
    %v2260 = vunpack.c.l.b16 %v2070
    %v2261 = vunpack.c.h.b16 %v2070
    %v2262 = vunpack.c.l.b16 %v2071
    %v2263 = vunpack.c.h.b16 %v2071
    %v2264 = vunpack.c.l.b16 %v2072
    %v2265 = vunpack.c.h.b16 %v2072
    %v2266 = vunpack.c.l.b16 %v2073
    %v2267 = vunpack.c.h.b16 %v2073
    %v2268 = vunpack.c.l.b16 %v2074
    %v2269 = vunpack.c.h.b16 %v2074
    %v2270 = vunpack.c.l.b16 %v2075
    %v2271 = vunpack.c.h.b16 %v2075
    %v2272 = vunpack.c.l.b16 %v2076
    %v2273 = vunpack.c.h.b16 %v2076
    %v2274 = vunpack.c.l.b16 %v2077
    %v2275 = vunpack.c.h.b16 %v2077
    %v2276 = vpack.c.b16 %v2156, %v2148
    %v2277 = vpack.c.b16 %v2157, %v2149
    %v2278 = vpack.c.b16 %v2158, %v2150
    %v2279 = vpack.c.b16 %v2159, %v2151
    %v2280 = vpack.c.b16 %v2160, %v2152
    %v2281 = vpack.c.b16 %v2161, %v2153
    %v2282 = vpack.c.b16 %v2162, %v2154
    %v2283 = vpack.c.b16 %v2163, %v2155
    %v2284 = vpack.c.b16 %v2172, %v2164
    %v2285 = vpack.c.b16 %v2173, %v2165
    %v2286 = vpack.c.b16 %v2174, %v2166
    %v2287 = vpack.c.b16 %v2175, %v2167
    %v2288 = vpack.c.b16 %v2176, %v2168
    %v2289 = vpack.c.b16 %v2177, %v2169
    %v2290 = vpack.c.b16 %v2178, %v2170
    %v2291 = vpack.c.b16 %v2179, %v2171
    %v2292 = vpack.c.b16 %v2188, %v2180
    %v2293 = vpack.c.b16 %v2189, %v2181
    %v2294 = vpack.c.b16 %v2190, %v2182
    %v2295 = vpack.c.b16 %v2191, %v2183
    %v2296 = vpack.c.b16 %v2192, %v2184
    %v2297 = vpack.c.b16 %v2193, %v2185
    %v2298 = vpack.c.b16 %v2194, %v2186
    %v2299 = vpack.c.b16 %v2195, %v2187
    %v2300 = vpack.c.b16 %v2204, %v2196
    %v2301 = vpack.c.b16 %v2205, %v2197
    %v2302 = vpack.c.b16 %v2206, %v2198
    %v2303 = vpack.c.b16 %v2207, %v2199
    %v2304 = vpack.c.b16 %v2208, %v2200
    %v2305 = vpack.c.b16 %v2209, %v2201
    %v2306 = vpack.c.b16 %v2210, %v2202
    %v2307 = vpack.c.b16 %v2211, %v2203
    %v2308 = vpack.c.b16 %v2220, %v2212
    %v2309 = vpack.c.b16 %v2221, %v2213
    %v2310 = vpack.c.b16 %v2222, %v2214
    %v2311 = vpack.c.b16 %v2223, %v2215
    %v2312 = vpack.c.b16 %v2224, %v2216
    %v2313 = vpack.c.b16 %v2225, %v2217
    %v2314 = vpack.c.b16 %v2226, %v2218
    %v2315 = vpack.c.b16 %v2227, %v2219
    %v2316 = vpack.c.b16 %v2236, %v2228
    %v2317 = vpack.c.b16 %v2237, %v2229
    %v2318 = vpack.c.b16 %v2238, %v2230
    %v2319 = vpack.c.b16 %v2239, %v2231
    %v2320 = vpack.c.b16 %v2240, %v2232
    %v2321 = vpack.c.b16 %v2241, %v2233
    %v2322 = vpack.c.b16 %v2242, %v2234
    %v2323 = vpack.c.b16 %v2243, %v2235
    %v2324 = vpack.c.b16 %v2252, %v2244
    %v2325 = vpack.c.b16 %v2253, %v2245
    %v2326 = vpack.c.b16 %v2254, %v2246
    %v2327 = vpack.c.b16 %v2255, %v2247
    %v2328 = vpack.c.b16 %v2256, %v2248
    %v2329 = vpack.c.b16 %v2257, %v2249
    %v2330 = vpack.c.b16 %v2258, %v2250
    %v2331 = vpack.c.b16 %v2259, %v2251
    %v2332 = vpack.c.b16 %v2268, %v2260
    %v2333 = vpack.c.b16 %v2269, %v2261
    %v2334 = vpack.c.b16 %v2270, %v2262
    %v2335 = vpack.c.b16 %v2271, %v2263
    %v2336 = vpack.c.b16 %v2272, %v2264
    %v2337 = vpack.c.b16 %v2273, %v2265
    %v2338 = vpack.c.b16 %v2274, %v2266
    %v2339 = vpack.c.b16 %v2275, %v2267
    %v2405 = vlaneseq
    %v2406 = vshrl.u32 %v2405, 7
    %v2407 = vsub.s32 0, %v2406
    %v2408 = vrot.slane %v2078, %v2407
    %v2409 = vlaneseq
    %v2410 = vshrl.u32 %v2409, 7
    %v2411 = vsub.s32 1, %v2410
    %v2412 = vrot.slane %v2078, %v2411
    %v2413 = vlaneseq
    %v2414 = vshrl.u32 %v2413, 7
    %v2415 = vsub.s32 2, %v2414
    %v2416 = vrot.slane %v2078, %v2415
    %v2417 = vlaneseq
    %v2418 = vshrl.u32 %v2417, 7
    %v2419 = vsub.s32 3, %v2418
    %v2420 = vrot.slane %v2078, %v2419
    %v2421 = vlaneseq
    %v2422 = vshrl.u32 %v2421, 7
    %v2423 = vsub.s32 4, %v2422
    %v2424 = vrot.slane %v2078, %v2423
    %v2425 = vlaneseq
    %v2426 = vshrl.u32 %v2425, 7
    %v2427 = vsub.s32 5, %v2426
    %v2428 = vrot.slane %v2078, %v2427
    %v2429 = vlaneseq
    %v2430 = vshrl.u32 %v2429, 7
    %v2431 = vsub.s32 6, %v2430
    %v2432 = vrot.slane %v2078, %v2431
    %v2433 = vlaneseq
    %v2434 = vshrl.u32 %v2433, 7
    %v2435 = vsub.s32 7, %v2434
    %v2436 = vrot.slane %v2078, %v2435
    %2445 = vmatprep.subr.bf16.mxu0 %v2333
    %2446 = vmatpush1.bf16.msra.mxu0 %v2332
    %2447 = vmatprep.subr.bf16.mxu0 %v2325
    %2448 = vmatpush1.bf16.msra.mxu0 %v2324
    %2449 = vmatprep.subr.bf16.mxu0 %v2317
    %2450 = vmatpush1.bf16.msra.mxu0 %v2316
    %2451 = vmatprep.subr.bf16.mxu0 %v2309
    %2452 = vmatpush1.bf16.msra.mxu0 %v2308
    %2453 = vmatprep.subr.bf16.mxu0 %v2301
    %2454 = vmatpush1.bf16.msra.mxu0 %v2300
    %2455 = vmatprep.subr.bf16.mxu0 %v2293
    %2456 = vmatpush1.bf16.msra.mxu0 %v2292
    %2457 = vmatprep.subr.bf16.mxu0 %v2285
    %2458 = vmatpush1.bf16.msra.mxu0 %v2284
    %2459 = vmatprep.subr.bf16.mxu0 %v2277
    %2460 = vmatpush1.bf16.msra.mxu0 %v2276
    %2461 = vmatprep.subr.bf16.mxu0 0
    %2462 = vmatpush2.bf16.msra.mxu0 0
    %2463 = vmatprep.subr.bf16.mxu0 0
    %2464 = vmatpush2.bf16.msra.mxu0 0
    %2465 = vmatprep.subr.bf16.mxu0 0
    %2466 = vmatpush2.bf16.msra.mxu0 0
    %2467 = vmatprep.subr.bf16.mxu0 0
    %2468 = vmatpush2.bf16.msra.mxu0 0
    %2469 = vmatprep.subr.bf16.mxu0 0
    %2470 = vmatpush2.bf16.msra.mxu0 0
    %2471 = vmatprep.subr.bf16.mxu0 0
    %2472 = vmatpush2.bf16.msra.mxu0 0
    %2473 = vmatprep.subr.bf16.mxu0 0
    %2474 = vmatpush2.bf16.msra.mxu0 0
    %2475 = vmatprep.subr.bf16.mxu0 0
    %2476 = vmatpush2.bf16.msra.mxu0 0
    %2477 = vmatprep.mubr.bf16.mxu0 0
    %2478 = vmatmul.mubr.bf16.gmra.mxu0 %v2082
    %v2479 = vpop.f32.mrf.mxu0
    %v2480 = vadd.f32 %v2408, %v2479
    %v2481 = vpop.f32.mrf.mxu0
    %v2482 = vadd.f32 %v2412, %v2481
    %v2483 = vpop.f32.mrf.mxu0
    %v2484 = vpop.f32.mrf.mxu0
    %2485 = vdwg.mxu0
    %2486 = vmatprep.subr.bf16.mxu0 %v2335
    %2487 = vmatpush1.bf16.msra.mxu0 %v2334
    %2488 = vmatprep.subr.bf16.mxu0 %v2327
    %2489 = vmatpush1.bf16.msra.mxu0 %v2326
    %2490 = vmatprep.subr.bf16.mxu0 %v2319
    %2491 = vmatpush1.bf16.msra.mxu0 %v2318
    %2492 = vmatprep.subr.bf16.mxu0 %v2311
    %2493 = vmatpush1.bf16.msra.mxu0 %v2310
    %2494 = vmatprep.subr.bf16.mxu0 %v2303
    %2495 = vmatpush1.bf16.msra.mxu0 %v2302
    %2496 = vmatprep.subr.bf16.mxu0 %v2295
    %2497 = vmatpush1.bf16.msra.mxu0 %v2294
    %2498 = vmatprep.subr.bf16.mxu0 %v2287
    %2499 = vmatpush1.bf16.msra.mxu0 %v2286
    %2500 = vmatprep.subr.bf16.mxu0 %v2279
    %2501 = vmatpush1.bf16.msra.mxu0 %v2278
    %2502 = vmatprep.subr.bf16.mxu0 0
    %2503 = vmatpush2.bf16.msra.mxu0 0
    %2504 = vmatprep.subr.bf16.mxu0 0
    %2505 = vmatpush2.bf16.msra.mxu0 0
    %2506 = vmatprep.subr.bf16.mxu0 0
    %2507 = vmatpush2.bf16.msra.mxu0 0
    %2508 = vmatprep.subr.bf16.mxu0 0
    %2509 = vmatpush2.bf16.msra.mxu0 0
    %2510 = vmatprep.subr.bf16.mxu0 0
    %2511 = vmatpush2.bf16.msra.mxu0 0
    %2512 = vmatprep.subr.bf16.mxu0 0
    %2513 = vmatpush2.bf16.msra.mxu0 0
    %2514 = vmatprep.subr.bf16.mxu0 0
    %2515 = vmatpush2.bf16.msra.mxu0 0
    %2516 = vmatprep.subr.bf16.mxu0 0
    %2517 = vmatpush2.bf16.msra.mxu0 0
    %2518 = vmatprep.mubr.bf16.mxu0 0
    %2519 = vmatmul.mubr.bf16.gmra.mxu0 %v2082
    %v2520 = vpop.f32.mrf.mxu0
    %v2521 = vadd.f32 %v2416, %v2520
    %v2522 = vpop.f32.mrf.mxu0
    %v2523 = vadd.f32 %v2420, %v2522
    %v2524 = vpop.f32.mrf.mxu0
    %v2525 = vpop.f32.mrf.mxu0
    %2526 = vdwg.mxu0
    %2527 = vmatprep.subr.bf16.mxu0 %v2337
    %2528 = vmatpush1.bf16.msra.mxu0 %v2336
    %2529 = vmatprep.subr.bf16.mxu0 %v2329
    %2530 = vmatpush1.bf16.msra.mxu0 %v2328
    %2531 = vmatprep.subr.bf16.mxu0 %v2321
    %2532 = vmatpush1.bf16.msra.mxu0 %v2320
    %2533 = vmatprep.subr.bf16.mxu0 %v2313
    %2534 = vmatpush1.bf16.msra.mxu0 %v2312
    %2535 = vmatprep.subr.bf16.mxu0 %v2305
    %2536 = vmatpush1.bf16.msra.mxu0 %v2304
    %2537 = vmatprep.subr.bf16.mxu0 %v2297
    %2538 = vmatpush1.bf16.msra.mxu0 %v2296
    %2539 = vmatprep.subr.bf16.mxu0 %v2289
    %2540 = vmatpush1.bf16.msra.mxu0 %v2288
    %2541 = vmatprep.subr.bf16.mxu0 %v2281
    %2542 = vmatpush1.bf16.msra.mxu0 %v2280
    %2543 = vmatprep.subr.bf16.mxu0 0
    %2544 = vmatpush2.bf16.msra.mxu0 0
    %2545 = vmatprep.subr.bf16.mxu0 0
    %2546 = vmatpush2.bf16.msra.mxu0 0
    %2547 = vmatprep.subr.bf16.mxu0 0
    %2548 = vmatpush2.bf16.msra.mxu0 0
    %2549 = vmatprep.subr.bf16.mxu0 0
    %2550 = vmatpush2.bf16.msra.mxu0 0
    %2551 = vmatprep.subr.bf16.mxu0 0
    %2552 = vmatpush2.bf16.msra.mxu0 0
    %2553 = vmatprep.subr.bf16.mxu0 0
    %2554 = vmatpush2.bf16.msra.mxu0 0
    %2555 = vmatprep.subr.bf16.mxu0 0
    %2556 = vmatpush2.bf16.msra.mxu0 0
    %2557 = vmatprep.subr.bf16.mxu0 0
    %2558 = vmatpush2.bf16.msra.mxu0 0
    %2559 = vmatprep.mubr.bf16.mxu0 0
    %2560 = vmatmul.mubr.bf16.gmra.mxu0 %v2082
    %v2561 = vpop.f32.mrf.mxu0
    %v2562 = vadd.f32 %v2424, %v2561
    %v2563 = vpop.f32.mrf.mxu0
    %v2564 = vadd.f32 %v2428, %v2563
    %v2565 = vpop.f32.mrf.mxu0
    %v2566 = vpop.f32.mrf.mxu0
    %2567 = vdwg.mxu0
    %2568 = vmatprep.subr.bf16.mxu0 %v2339
    %2569 = vmatpush1.bf16.msra.mxu0 %v2338
    %2570 = vmatprep.subr.bf16.mxu0 %v2331
    %2571 = vmatpush1.bf16.msra.mxu0 %v2330
    %2572 = vmatprep.subr.bf16.mxu0 %v2323
    %2573 = vmatpush1.bf16.msra.mxu0 %v2322
    %2574 = vmatprep.subr.bf16.mxu0 %v2315
    %2575 = vmatpush1.bf16.msra.mxu0 %v2314
    %2576 = vmatprep.subr.bf16.mxu0 %v2307
    %2577 = vmatpush1.bf16.msra.mxu0 %v2306
    %2578 = vmatprep.subr.bf16.mxu0 %v2299
    %2579 = vmatpush1.bf16.msra.mxu0 %v2298
    %2580 = vmatprep.subr.bf16.mxu0 %v2291
    %2581 = vmatpush1.bf16.msra.mxu0 %v2290
    %2582 = vmatprep.subr.bf16.mxu0 %v2283
    %2583 = vmatpush1.bf16.msra.mxu0 %v2282
    %2584 = vmatprep.subr.bf16.mxu0 0
    %2585 = vmatpush2.bf16.msra.mxu0 0
    %2586 = vmatprep.subr.bf16.mxu0 0
    %2587 = vmatpush2.bf16.msra.mxu0 0
    %2588 = vmatprep.subr.bf16.mxu0 0
    %2589 = vmatpush2.bf16.msra.mxu0 0
    %2590 = vmatprep.subr.bf16.mxu0 0
    %2591 = vmatpush2.bf16.msra.mxu0 0
    %2592 = vmatprep.subr.bf16.mxu0 0
    %2593 = vmatpush2.bf16.msra.mxu0 0
    %2594 = vmatprep.subr.bf16.mxu0 0
    %2595 = vmatpush2.bf16.msra.mxu0 0
    %2596 = vmatprep.subr.bf16.mxu0 0
    %2597 = vmatpush2.bf16.msra.mxu0 0
    %2598 = vmatprep.subr.bf16.mxu0 0
    %2599 = vmatpush2.bf16.msra.mxu0 0
    %2600 = vmatprep.mubr.bf16.mxu0 0
    %2601 = vmatmul.mubr.bf16.gmra.mxu0 %v2082
    %v2602 = vpop.f32.mrf.mxu0
    %v2603 = vadd.f32 %v2432, %v2602
    %v2604 = vpop.f32.mrf.mxu0
    %v2605 = vadd.f32 %v2436, %v2604
    %v2606 = vpop.f32.mrf.mxu0
    %v2607 = vpop.f32.mrf.mxu0
    %2608 = vdwg.mxu0
    %v2609 = vmax.f32 %v2480, 0.0
    %v2610 = vmax.f32 %v2482, 0.0
    %v2611 = vmax.f32 %v2521, 0.0
    %v2612 = vmax.f32 %v2523, 0.0
    %v2613 = vmax.f32 %v2562, 0.0
    %v2614 = vmax.f32 %v2564, 0.0
    %v2615 = vmax.f32 %v2603, 0.0
    %v2616 = vmax.f32 %v2605, 0.0
    %v2617 = vpack.c.bf16 %v2609, %v2609
    %v2618 = vpack.c.bf16 %v2610, %v2610
    %v2619 = vpack.c.bf16 %v2611, %v2611
    %v2620 = vpack.c.bf16 %v2612, %v2612
    %v2621 = vpack.c.bf16 %v2613, %v2613
    %v2622 = vpack.c.bf16 %v2614, %v2614
    %v2623 = vpack.c.bf16 %v2615, %v2615
    %v2624 = vpack.c.bf16 %v2616, %v2616
    %v2625 = vld [vmem:[#allocation14] sm:$0xf]
    %v2626 = vld [vmem:[#allocation14 + $0x4] sm:$0xf]
    %v2627 = vld [vmem:[#allocation14 + $0x8] sm:$0xf]
    %v2628 = vld [vmem:[#allocation14 + $0xc] sm:$0xf]
    %v2629 = vld [vmem:[#allocation14 + $0x10] sm:$0xf]
    %v2630 = vld [vmem:[#allocation14 + $0x14] sm:$0xf]
    %v2631 = vld [vmem:[#allocation14 + $0x18] sm:$0xf]
    %v2632 = vld [vmem:[#allocation14 + $0x1c] sm:$0xf]
    %v2633 = vld [vmem:[#allocation14 + $0x20] sm:$0xf]
    %v2634 = vld [vmem:[#allocation14 + $0x24] sm:$0xf]
    %v2635 = vld [vmem:[#allocation14 + $0x28] sm:$0xf]
    %v2636 = vld [vmem:[#allocation14 + $0x2c] sm:$0xf]
    %v2637 = vld [vmem:[#allocation14 + $0x30] sm:$0xf]
    %v2638 = vld [vmem:[#allocation14 + $0x34] sm:$0xf]
    %v2639 = vld [vmem:[#allocation14 + $0x38] sm:$0xf]
    %v2640 = vld [vmem:[#allocation14 + $0x3c] sm:$0xf]
    %v2641 = vld [vmem:[#allocation14 + $0x40] sm:$0xf]
    %v2642 = vld [vmem:[#allocation14 + $0x44] sm:$0xf]
    %v2643 = vld [vmem:[#allocation14 + $0x48] sm:$0xf]
    %v2644 = vld [vmem:[#allocation14 + $0x4c] sm:$0xf]
    %v2645 = vld [vmem:[#allocation14 + $0x50] sm:$0xf]
    %v2646 = vld [vmem:[#allocation14 + $0x54] sm:$0xf]
    %v2647 = vld [vmem:[#allocation14 + $0x58] sm:$0xf]
    %v2648 = vld [vmem:[#allocation14 + $0x5c] sm:$0xf]
    %v2649 = vld [vmem:[#allocation14 + $0x60] sm:$0xf]
    %v2650 = vld [vmem:[#allocation14 + $0x64] sm:$0xf]
    %v2651 = vld [vmem:[#allocation14 + $0x68] sm:$0xf]
    %v2652 = vld [vmem:[#allocation14 + $0x6c] sm:$0xf]
    %v2653 = vld [vmem:[#allocation14 + $0x70] sm:$0xf]
    %v2654 = vld [vmem:[#allocation14 + $0x74] sm:$0xf]
    %v2655 = vld [vmem:[#allocation14 + $0x78] sm:$0xf]
    %v2656 = vld [vmem:[#allocation14 + $0x7c] sm:$0xf]
    %v2657 = vld [vmem:[#allocation14 + $0x80] sm:$0xf]
    %v2658 = vld [vmem:[#allocation14 + $0x84] sm:$0xf]
    %v2659 = vld [vmem:[#allocation14 + $0x88] sm:$0xf]
    %v2660 = vld [vmem:[#allocation14 + $0x8c] sm:$0xf]
    %v2661 = vld [vmem:[#allocation14 + $0x90] sm:$0xf]
    %v2662 = vld [vmem:[#allocation14 + $0x94] sm:$0xf]
    %v2663 = vld [vmem:[#allocation14 + $0x98] sm:$0xf]
    %v2664 = vld [vmem:[#allocation14 + $0x9c] sm:$0xf]
    %v2665 = vld [vmem:[#allocation14 + $0xa0] sm:$0xf]
    %v2666 = vld [vmem:[#allocation14 + $0xa4] sm:$0xf]
    %v2667 = vld [vmem:[#allocation14 + $0xa8] sm:$0xf]
    %v2668 = vld [vmem:[#allocation14 + $0xac] sm:$0xf]
    %v2669 = vld [vmem:[#allocation14 + $0xb0] sm:$0xf]
    %v2670 = vld [vmem:[#allocation14 + $0xb4] sm:$0xf]
    %v2671 = vld [vmem:[#allocation14 + $0xb8] sm:$0xf]
    %v2672 = vld [vmem:[#allocation14 + $0xbc] sm:$0xf]
    %v2673 = vld [vmem:[#allocation14 + $0xc0] sm:$0xf]
    %v2674 = vld [vmem:[#allocation14 + $0xc4] sm:$0xf]
    %v2675 = vld [vmem:[#allocation14 + $0xc8] sm:$0xf]
    %v2676 = vld [vmem:[#allocation14 + $0xcc] sm:$0xf]
    %v2677 = vld [vmem:[#allocation14 + $0xd0] sm:$0xf]
    %v2678 = vld [vmem:[#allocation14 + $0xd4] sm:$0xf]
    %v2679 = vld [vmem:[#allocation14 + $0xd8] sm:$0xf]
    %v2680 = vld [vmem:[#allocation14 + $0xdc] sm:$0xf]
    %v2681 = vld [vmem:[#allocation14 + $0xe0] sm:$0xf]
    %v2682 = vld [vmem:[#allocation14 + $0xe4] sm:$0xf]
    %v2683 = vld [vmem:[#allocation14 + $0xe8] sm:$0xf]
    %v2684 = vld [vmem:[#allocation14 + $0xec] sm:$0xf]
    %v2685 = vld [vmem:[#allocation14 + $0xf0] sm:$0xf]
    %v2686 = vld [vmem:[#allocation14 + $0xf4] sm:$0xf]
    %v2687 = vld [vmem:[#allocation14 + $0xf8] sm:$0xf]
    %v2688 = vld [vmem:[#allocation14 + $0xfc] sm:$0xf]
    %v2689 = vld [vmem:[#allocation14 + $0x100] sm:$0xf]
    %v2690 = vld [vmem:[#allocation14 + $0x104] sm:$0xf]
    %v2691 = vld [vmem:[#allocation14 + $0x108] sm:$0xf]
    %v2692 = vld [vmem:[#allocation14 + $0x10c] sm:$0xf]
    %v2693 = vld [vmem:[#allocation14 + $0x110] sm:$0xf]
    %v2694 = vld [vmem:[#allocation14 + $0x114] sm:$0xf]
    %v2695 = vld [vmem:[#allocation14 + $0x118] sm:$0xf]
    %v2696 = vld [vmem:[#allocation14 + $0x11c] sm:$0xf]
    %v2697 = vld [vmem:[#allocation14 + $0x120] sm:$0xf]
    %v2698 = vld [vmem:[#allocation14 + $0x124] sm:$0xf]
    %v2699 = vld [vmem:[#allocation14 + $0x128] sm:$0xf]
    %v2700 = vld [vmem:[#allocation14 + $0x12c] sm:$0xf]
    %v2701 = vld [vmem:[#allocation14 + $0x130] sm:$0xf]
    %v2702 = vld [vmem:[#allocation14 + $0x134] sm:$0xf]
    %v2703 = vld [vmem:[#allocation14 + $0x138] sm:$0xf]
    %v2704 = vld [vmem:[#allocation14 + $0x13c] sm:$0xf]
    %v2705 = vld [vmem:[#allocation14 + $0x140] sm:$0xf]
    %v2706 = vld [vmem:[#allocation14 + $0x144] sm:$0xf]
    %v2707 = vld [vmem:[#allocation14 + $0x148] sm:$0xf]
    %v2708 = vld [vmem:[#allocation14 + $0x14c] sm:$0xf]
    %v2709 = vld [vmem:[#allocation14 + $0x150] sm:$0xf]
    %v2710 = vld [vmem:[#allocation14 + $0x154] sm:$0xf]
    %v2711 = vld [vmem:[#allocation14 + $0x158] sm:$0xf]
    %v2712 = vld [vmem:[#allocation14 + $0x15c] sm:$0xf]
    %v2713 = vld [vmem:[#allocation14 + $0x160] sm:$0xf]
    %v2714 = vld [vmem:[#allocation14 + $0x164] sm:$0xf]
    %v2715 = vld [vmem:[#allocation14 + $0x168] sm:$0xf]
    %v2716 = vld [vmem:[#allocation14 + $0x16c] sm:$0xf]
    %v2717 = vld [vmem:[#allocation14 + $0x170] sm:$0xf]
    %v2718 = vld [vmem:[#allocation14 + $0x174] sm:$0xf]
    %v2719 = vld [vmem:[#allocation14 + $0x178] sm:$0xf]
    %v2720 = vld [vmem:[#allocation14 + $0x17c] sm:$0xf]
    %v2721 = vld [vmem:[#allocation14 + $0x180] sm:$0xf]
    %v2722 = vld [vmem:[#allocation14 + $0x184] sm:$0xf]
    %v2723 = vld [vmem:[#allocation14 + $0x188] sm:$0xf]
    %v2724 = vld [vmem:[#allocation14 + $0x18c] sm:$0xf]
    %v2725 = vld [vmem:[#allocation14 + $0x190] sm:$0xf]
    %v2726 = vld [vmem:[#allocation14 + $0x194] sm:$0xf]
    %v2727 = vld [vmem:[#allocation14 + $0x198] sm:$0xf]
    %v2728 = vld [vmem:[#allocation14 + $0x19c] sm:$0xf]
    %v2729 = vld [vmem:[#allocation14 + $0x1a0] sm:$0xf]
    %v2730 = vld [vmem:[#allocation14 + $0x1a4] sm:$0xf]
    %v2731 = vld [vmem:[#allocation14 + $0x1a8] sm:$0xf]
    %v2732 = vld [vmem:[#allocation14 + $0x1ac] sm:$0xf]
    %v2733 = vld [vmem:[#allocation14 + $0x1b0] sm:$0xf]
    %v2734 = vld [vmem:[#allocation14 + $0x1b4] sm:$0xf]
    %v2735 = vld [vmem:[#allocation14 + $0x1b8] sm:$0xf]
    %v2736 = vld [vmem:[#allocation14 + $0x1bc] sm:$0xf]
    %v2737 = vld [vmem:[#allocation14 + $0x1c0] sm:$0xf]
    %v2738 = vld [vmem:[#allocation14 + $0x1c4] sm:$0xf]
    %v2739 = vld [vmem:[#allocation14 + $0x1c8] sm:$0xf]
    %v2740 = vld [vmem:[#allocation14 + $0x1cc] sm:$0xf]
    %v2741 = vld [vmem:[#allocation14 + $0x1d0] sm:$0xf]
    %v2742 = vld [vmem:[#allocation14 + $0x1d4] sm:$0xf]
    %v2743 = vld [vmem:[#allocation14 + $0x1d8] sm:$0xf]
    %v2744 = vld [vmem:[#allocation14 + $0x1dc] sm:$0xf]
    %v2745 = vld [vmem:[#allocation14 + $0x1e0] sm:$0xf]
    %v2746 = vld [vmem:[#allocation14 + $0x1e4] sm:$0xf]
    %v2747 = vld [vmem:[#allocation14 + $0x1e8] sm:$0xf]
    %v2748 = vld [vmem:[#allocation14 + $0x1ec] sm:$0xf]
    %v2749 = vld [vmem:[#allocation14 + $0x1f0] sm:$0xf]
    %v2750 = vld [vmem:[#allocation14 + $0x1f4] sm:$0xf]
    %v2751 = vld [vmem:[#allocation14 + $0x1f8] sm:$0xf]
    %v2752 = vld [vmem:[#allocation14 + $0x1fc] sm:$0xf]
    %v2881 = vunpack.c.l.b16 %v2625
    %v2882 = vunpack.c.l.b16 %v2626
    %v2883 = vunpack.c.l.b16 %v2627
    %v2884 = vunpack.c.l.b16 %v2628
    %v2885 = vunpack.c.l.b16 %v2629
    %v2886 = vunpack.c.l.b16 %v2630
    %v2887 = vunpack.c.l.b16 %v2631
    %v2888 = vunpack.c.l.b16 %v2632
    %v2889 = vunpack.c.l.b16 %v2633
    %v2890 = vunpack.c.l.b16 %v2634
    %v2891 = vunpack.c.l.b16 %v2635
    %v2892 = vunpack.c.l.b16 %v2636
    %v2893 = vunpack.c.l.b16 %v2637
    %v2894 = vunpack.c.l.b16 %v2638
    %v2895 = vunpack.c.l.b16 %v2639
    %v2896 = vunpack.c.l.b16 %v2640
    %v2897 = vunpack.c.l.b16 %v2641
    %v2898 = vunpack.c.l.b16 %v2642
    %v2899 = vunpack.c.l.b16 %v2643
    %v2900 = vunpack.c.l.b16 %v2644
    %v2901 = vunpack.c.l.b16 %v2645
    %v2902 = vunpack.c.l.b16 %v2646
    %v2903 = vunpack.c.l.b16 %v2647
    %v2904 = vunpack.c.l.b16 %v2648
    %v2905 = vunpack.c.l.b16 %v2649
    %v2906 = vunpack.c.l.b16 %v2650
    %v2907 = vunpack.c.l.b16 %v2651
    %v2908 = vunpack.c.l.b16 %v2652
    %v2909 = vunpack.c.l.b16 %v2653
    %v2910 = vunpack.c.l.b16 %v2654
    %v2911 = vunpack.c.l.b16 %v2655
    %v2912 = vunpack.c.l.b16 %v2656
    %v2913 = vunpack.c.l.b16 %v2657
    %v2914 = vunpack.c.l.b16 %v2658
    %v2915 = vunpack.c.l.b16 %v2659
    %v2916 = vunpack.c.l.b16 %v2660
    %v2917 = vunpack.c.l.b16 %v2661
    %v2918 = vunpack.c.l.b16 %v2662
    %v2919 = vunpack.c.l.b16 %v2663
    %v2920 = vunpack.c.l.b16 %v2664
    %v2921 = vunpack.c.l.b16 %v2665
    %v2922 = vunpack.c.l.b16 %v2666
    %v2923 = vunpack.c.l.b16 %v2667
    %v2924 = vunpack.c.l.b16 %v2668
    %v2925 = vunpack.c.l.b16 %v2669
    %v2926 = vunpack.c.l.b16 %v2670
    %v2927 = vunpack.c.l.b16 %v2671
    %v2928 = vunpack.c.l.b16 %v2672
    %v2929 = vunpack.c.l.b16 %v2673
    %v2930 = vunpack.c.l.b16 %v2674
    %v2931 = vunpack.c.l.b16 %v2675
    %v2932 = vunpack.c.l.b16 %v2676
    %v2933 = vunpack.c.l.b16 %v2677
    %v2934 = vunpack.c.l.b16 %v2678
    %v2935 = vunpack.c.l.b16 %v2679
    %v2936 = vunpack.c.l.b16 %v2680
    %v2937 = vunpack.c.l.b16 %v2681
    %v2938 = vunpack.c.l.b16 %v2682
    %v2939 = vunpack.c.l.b16 %v2683
    %v2940 = vunpack.c.l.b16 %v2684
    %v2941 = vunpack.c.l.b16 %v2685
    %v2942 = vunpack.c.l.b16 %v2686
    %v2943 = vunpack.c.l.b16 %v2687
    %v2944 = vunpack.c.l.b16 %v2688
    %v2945 = vunpack.c.l.b16 %v2689
    %v2946 = vunpack.c.l.b16 %v2690
    %v2947 = vunpack.c.l.b16 %v2691
    %v2948 = vunpack.c.l.b16 %v2692
    %v2949 = vunpack.c.l.b16 %v2693
    %v2950 = vunpack.c.l.b16 %v2694
    %v2951 = vunpack.c.l.b16 %v2695
    %v2952 = vunpack.c.l.b16 %v2696
    %v2953 = vunpack.c.l.b16 %v2697
    %v2954 = vunpack.c.l.b16 %v2698
    %v2955 = vunpack.c.l.b16 %v2699
    %v2956 = vunpack.c.l.b16 %v2700
    %v2957 = vunpack.c.l.b16 %v2701
    %v2958 = vunpack.c.l.b16 %v2702
    %v2959 = vunpack.c.l.b16 %v2703
    %v2960 = vunpack.c.l.b16 %v2704
    %v2961 = vunpack.c.l.b16 %v2705
    %v2962 = vunpack.c.l.b16 %v2706
    %v2963 = vunpack.c.l.b16 %v2707
    %v2964 = vunpack.c.l.b16 %v2708
    %v2965 = vunpack.c.l.b16 %v2709
    %v2966 = vunpack.c.l.b16 %v2710
    %v2967 = vunpack.c.l.b16 %v2711
    %v2968 = vunpack.c.l.b16 %v2712
    %v2969 = vunpack.c.l.b16 %v2713
    %v2970 = vunpack.c.l.b16 %v2714
    %v2971 = vunpack.c.l.b16 %v2715
    %v2972 = vunpack.c.l.b16 %v2716
    %v2973 = vunpack.c.l.b16 %v2717
    %v2974 = vunpack.c.l.b16 %v2718
    %v2975 = vunpack.c.l.b16 %v2719
    %v2976 = vunpack.c.l.b16 %v2720
    %v2977 = vunpack.c.l.b16 %v2721
    %v2978 = vunpack.c.l.b16 %v2722
    %v2979 = vunpack.c.l.b16 %v2723
    %v2980 = vunpack.c.l.b16 %v2724
    %v2981 = vunpack.c.l.b16 %v2725
    %v2982 = vunpack.c.l.b16 %v2726
    %v2983 = vunpack.c.l.b16 %v2727
    %v2984 = vunpack.c.l.b16 %v2728
    %v2985 = vunpack.c.l.b16 %v2729
    %v2986 = vunpack.c.l.b16 %v2730
    %v2987 = vunpack.c.l.b16 %v2731
    %v2988 = vunpack.c.l.b16 %v2732
    %v2989 = vunpack.c.l.b16 %v2733
    %v2990 = vunpack.c.l.b16 %v2734
    %v2991 = vunpack.c.l.b16 %v2735
    %v2992 = vunpack.c.l.b16 %v2736
    %v2993 = vunpack.c.l.b16 %v2737
    %v2994 = vunpack.c.l.b16 %v2738
    %v2995 = vunpack.c.l.b16 %v2739
    %v2996 = vunpack.c.l.b16 %v2740
    %v2997 = vunpack.c.l.b16 %v2741
    %v2998 = vunpack.c.l.b16 %v2742
    %v2999 = vunpack.c.l.b16 %v2743
    %v3000 = vunpack.c.l.b16 %v2744
    %v3001 = vunpack.c.l.b16 %v2745
    %v3002 = vunpack.c.l.b16 %v2746
    %v3003 = vunpack.c.l.b16 %v2747
    %v3004 = vunpack.c.l.b16 %v2748
    %v3005 = vunpack.c.l.b16 %v2749
    %v3006 = vunpack.c.l.b16 %v2750
    %v3007 = vunpack.c.l.b16 %v2751
    %v3008 = vunpack.c.l.b16 %v2752
    %v3009 = vpack.c.b16 %v2882, %v2881
    %v3010 = vpack.c.b16 %v2884, %v2883
    %v3011 = vpack.c.b16 %v2886, %v2885
    %v3012 = vpack.c.b16 %v2888, %v2887
    %v3013 = vpack.c.b16 %v2890, %v2889
    %v3014 = vpack.c.b16 %v2892, %v2891
    %v3015 = vpack.c.b16 %v2894, %v2893
    %v3016 = vpack.c.b16 %v2896, %v2895
    %v3017 = vpack.c.b16 %v2898, %v2897
    %v3018 = vpack.c.b16 %v2900, %v2899
    %v3019 = vpack.c.b16 %v2902, %v2901
    %v3020 = vpack.c.b16 %v2904, %v2903
    %v3021 = vpack.c.b16 %v2906, %v2905
    %v3022 = vpack.c.b16 %v2908, %v2907
    %v3023 = vpack.c.b16 %v2910, %v2909
    %v3024 = vpack.c.b16 %v2912, %v2911
    %v3025 = vpack.c.b16 %v2914, %v2913
    %v3026 = vpack.c.b16 %v2916, %v2915
    %v3027 = vpack.c.b16 %v2918, %v2917
    %v3028 = vpack.c.b16 %v2920, %v2919
    %v3029 = vpack.c.b16 %v2922, %v2921
    %v3030 = vpack.c.b16 %v2924, %v2923
    %v3031 = vpack.c.b16 %v2926, %v2925
    %v3032 = vpack.c.b16 %v2928, %v2927
    %v3033 = vpack.c.b16 %v2930, %v2929
    %v3034 = vpack.c.b16 %v2932, %v2931
    %v3035 = vpack.c.b16 %v2934, %v2933
    %v3036 = vpack.c.b16 %v2936, %v2935
    %v3037 = vpack.c.b16 %v2938, %v2937
    %v3038 = vpack.c.b16 %v2940, %v2939
    %v3039 = vpack.c.b16 %v2942, %v2941
    %v3040 = vpack.c.b16 %v2944, %v2943
    %v3041 = vpack.c.b16 %v2946, %v2945
    %v3042 = vpack.c.b16 %v2948, %v2947
    %v3043 = vpack.c.b16 %v2950, %v2949
    %v3044 = vpack.c.b16 %v2952, %v2951
    %v3045 = vpack.c.b16 %v2954, %v2953
    %v3046 = vpack.c.b16 %v2956, %v2955
    %v3047 = vpack.c.b16 %v2958, %v2957
    %v3048 = vpack.c.b16 %v2960, %v2959
    %v3049 = vpack.c.b16 %v2962, %v2961
    %v3050 = vpack.c.b16 %v2964, %v2963
    %v3051 = vpack.c.b16 %v2966, %v2965
    %v3052 = vpack.c.b16 %v2968, %v2967
    %v3053 = vpack.c.b16 %v2970, %v2969
    %v3054 = vpack.c.b16 %v2972, %v2971
    %v3055 = vpack.c.b16 %v2974, %v2973
    %v3056 = vpack.c.b16 %v2976, %v2975
    %v3057 = vpack.c.b16 %v2978, %v2977
    %v3058 = vpack.c.b16 %v2980, %v2979
    %v3059 = vpack.c.b16 %v2982, %v2981
    %v3060 = vpack.c.b16 %v2984, %v2983
    %v3061 = vpack.c.b16 %v2986, %v2985
    %v3062 = vpack.c.b16 %v2988, %v2987
    %v3063 = vpack.c.b16 %v2990, %v2989
    %v3064 = vpack.c.b16 %v2992, %v2991
    %v3065 = vpack.c.b16 %v2994, %v2993
    %v3066 = vpack.c.b16 %v2996, %v2995
    %v3067 = vpack.c.b16 %v2998, %v2997
    %v3068 = vpack.c.b16 %v3000, %v2999
    %v3069 = vpack.c.b16 %v3002, %v3001
    %v3070 = vpack.c.b16 %v3004, %v3003
    %v3071 = vpack.c.b16 %v3006, %v3005
    %v3072 = vpack.c.b16 %v3008, %v3007
    %3137 = vmatprep.subr.bf16.mxu0 0
    %3138 = vmatpush1.bf16.msra.mxu0 %v3016
    %3139 = vmatprep.subr.bf16.mxu0 0
    %3140 = vmatpush1.bf16.msra.mxu0 %v3015
    %3141 = vmatprep.subr.bf16.mxu0 0
    %3142 = vmatpush1.bf16.msra.mxu0 %v3014
    %3143 = vmatprep.subr.bf16.mxu0 0
    %3144 = vmatpush1.bf16.msra.mxu0 %v3013
    %3145 = vmatprep.subr.bf16.mxu0 0
    %3146 = vmatpush1.bf16.msra.mxu0 %v3012
    %3147 = vmatprep.subr.bf16.mxu0 0
    %3148 = vmatpush1.bf16.msra.mxu0 %v3011
    %3149 = vmatprep.subr.bf16.mxu0 0
    %3150 = vmatpush1.bf16.msra.mxu0 %v3010
    %3151 = vmatprep.subr.bf16.mxu0 0
    %3152 = vmatpush1.bf16.msra.mxu0 %v3009
    %3153 = vmatprep.subr.bf16.mxu0 0
    %3154 = vmatpush2.bf16.msra.mxu0 %v3024
    %3155 = vmatprep.subr.bf16.mxu0 0
    %3156 = vmatpush2.bf16.msra.mxu0 %v3023
    %3157 = vmatprep.subr.bf16.mxu0 0
    %3158 = vmatpush2.bf16.msra.mxu0 %v3022
    %3159 = vmatprep.subr.bf16.mxu0 0
    %3160 = vmatpush2.bf16.msra.mxu0 %v3021
    %3161 = vmatprep.subr.bf16.mxu0 0
    %3162 = vmatpush2.bf16.msra.mxu0 %v3020
    %3163 = vmatprep.subr.bf16.mxu0 0
    %3164 = vmatpush2.bf16.msra.mxu0 %v3019
    %3165 = vmatprep.subr.bf16.mxu0 0
    %3166 = vmatpush2.bf16.msra.mxu0 %v3018
    %3167 = vmatprep.subr.bf16.mxu0 0
    %3168 = vmatpush2.bf16.msra.mxu0 %v3017
    %3169 = vmatprep.mubr.bf16.mxu0 %v2618
    %3170 = vmatmul.mubr.bf16.gmra.mxu0 %v2617
    %v3171 = vpop.f32.mrf.mxu0
    %v3172 = vadd.f32 %v2010, %v3171
    %v3173 = vpop.f32.mrf.mxu0
    %v3174 = vpop.f32.mrf.mxu0
    %v3175 = vpop.f32.mrf.mxu0
    %3176 = vdwg.mxu0
    %3177 = vmatprep.subr.bf16.mxu0 0
    %3178 = vmatpush1.bf16.msra.mxu0 %v3032
    %3179 = vmatprep.subr.bf16.mxu0 0
    %3180 = vmatpush1.bf16.msra.mxu0 %v3031
    %3181 = vmatprep.subr.bf16.mxu0 0
    %3182 = vmatpush1.bf16.msra.mxu0 %v3030
    %3183 = vmatprep.subr.bf16.mxu0 0
    %3184 = vmatpush1.bf16.msra.mxu0 %v3029
    %3185 = vmatprep.subr.bf16.mxu0 0
    %3186 = vmatpush1.bf16.msra.mxu0 %v3028
    %3187 = vmatprep.subr.bf16.mxu0 0
    %3188 = vmatpush1.bf16.msra.mxu0 %v3027
    %3189 = vmatprep.subr.bf16.mxu0 0
    %3190 = vmatpush1.bf16.msra.mxu0 %v3026
    %3191 = vmatprep.subr.bf16.mxu0 0
    %3192 = vmatpush1.bf16.msra.mxu0 %v3025
    %3193 = vmatprep.subr.bf16.mxu0 0
    %3194 = vmatpush2.bf16.msra.mxu0 %v3040
    %3195 = vmatprep.subr.bf16.mxu0 0
    %3196 = vmatpush2.bf16.msra.mxu0 %v3039
    %3197 = vmatprep.subr.bf16.mxu0 0
    %3198 = vmatpush2.bf16.msra.mxu0 %v3038
    %3199 = vmatprep.subr.bf16.mxu0 0
    %3200 = vmatpush2.bf16.msra.mxu0 %v3037
    %3201 = vmatprep.subr.bf16.mxu0 0
    %3202 = vmatpush2.bf16.msra.mxu0 %v3036
    %3203 = vmatprep.subr.bf16.mxu0 0
    %3204 = vmatpush2.bf16.msra.mxu0 %v3035
    %3205 = vmatprep.subr.bf16.mxu0 0
    %3206 = vmatpush2.bf16.msra.mxu0 %v3034
    %3207 = vmatprep.subr.bf16.mxu0 0
    %3208 = vmatpush2.bf16.msra.mxu0 %v3033
    %3209 = vmatprep.mubr.bf16.mxu0 %v2620
    %3210 = vmatmul.mubr.bf16.gmra.mxu0 %v2619
    %v3211 = vpop.f32.mrf.mxu0
    %v3212 = vadd.f32 %v3172, %v3211
    %v3213 = vpop.f32.mrf.mxu0
    %v3214 = vpop.f32.mrf.mxu0
    %v3215 = vpop.f32.mrf.mxu0
    %3216 = vdwg.mxu0
    %3217 = vmatprep.subr.bf16.mxu0 0
    %3218 = vmatpush1.bf16.msra.mxu0 %v3048
    %3219 = vmatprep.subr.bf16.mxu0 0
    %3220 = vmatpush1.bf16.msra.mxu0 %v3047
    %3221 = vmatprep.subr.bf16.mxu0 0
    %3222 = vmatpush1.bf16.msra.mxu0 %v3046
    %3223 = vmatprep.subr.bf16.mxu0 0
    %3224 = vmatpush1.bf16.msra.mxu0 %v3045
    %3225 = vmatprep.subr.bf16.mxu0 0
    %3226 = vmatpush1.bf16.msra.mxu0 %v3044
    %3227 = vmatprep.subr.bf16.mxu0 0
    %3228 = vmatpush1.bf16.msra.mxu0 %v3043
    %3229 = vmatprep.subr.bf16.mxu0 0
    %3230 = vmatpush1.bf16.msra.mxu0 %v3042
    %3231 = vmatprep.subr.bf16.mxu0 0
    %3232 = vmatpush1.bf16.msra.mxu0 %v3041
    %3233 = vmatprep.subr.bf16.mxu0 0
    %3234 = vmatpush2.bf16.msra.mxu0 %v3056
    %3235 = vmatprep.subr.bf16.mxu0 0
    %3236 = vmatpush2.bf16.msra.mxu0 %v3055
    %3237 = vmatprep.subr.bf16.mxu0 0
    %3238 = vmatpush2.bf16.msra.mxu0 %v3054
    %3239 = vmatprep.subr.bf16.mxu0 0
    %3240 = vmatpush2.bf16.msra.mxu0 %v3053
    %3241 = vmatprep.subr.bf16.mxu0 0
    %3242 = vmatpush2.bf16.msra.mxu0 %v3052
    %3243 = vmatprep.subr.bf16.mxu0 0
    %3244 = vmatpush2.bf16.msra.mxu0 %v3051
    %3245 = vmatprep.subr.bf16.mxu0 0
    %3246 = vmatpush2.bf16.msra.mxu0 %v3050
    %3247 = vmatprep.subr.bf16.mxu0 0
    %3248 = vmatpush2.bf16.msra.mxu0 %v3049
    %3249 = vmatprep.mubr.bf16.mxu0 %v2622
    %3250 = vmatmul.mubr.bf16.gmra.mxu0 %v2621
    %v3251 = vpop.f32.mrf.mxu0
    %v3252 = vadd.f32 %v3212, %v3251
    %v3253 = vpop.f32.mrf.mxu0
    %v3254 = vpop.f32.mrf.mxu0
    %v3255 = vpop.f32.mrf.mxu0
    %3256 = vdwg.mxu0
    %3257 = vmatprep.subr.bf16.mxu0 0
    %3258 = vmatpush1.bf16.msra.mxu0 %v3064
    %3259 = vmatprep.subr.bf16.mxu0 0
    %3260 = vmatpush1.bf16.msra.mxu0 %v3063
    %3261 = vmatprep.subr.bf16.mxu0 0
    %3262 = vmatpush1.bf16.msra.mxu0 %v3062
    %3263 = vmatprep.subr.bf16.mxu0 0
    %3264 = vmatpush1.bf16.msra.mxu0 %v3061
    %3265 = vmatprep.subr.bf16.mxu0 0
    %3266 = vmatpush1.bf16.msra.mxu0 %v3060
    %3267 = vmatprep.subr.bf16.mxu0 0
    %3268 = vmatpush1.bf16.msra.mxu0 %v3059
    %3269 = vmatprep.subr.bf16.mxu0 0
    %3270 = vmatpush1.bf16.msra.mxu0 %v3058
    %3271 = vmatprep.subr.bf16.mxu0 0
    %3272 = vmatpush1.bf16.msra.mxu0 %v3057
    %3273 = vmatprep.subr.bf16.mxu0 0
    %3274 = vmatpush2.bf16.msra.mxu0 %v3072
    %3275 = vmatprep.subr.bf16.mxu0 0
    %3276 = vmatpush2.bf16.msra.mxu0 %v3071
    %3277 = vmatprep.subr.bf16.mxu0 0
    %3278 = vmatpush2.bf16.msra.mxu0 %v3070
    %3279 = vmatprep.subr.bf16.mxu0 0
    %3280 = vmatpush2.bf16.msra.mxu0 %v3069
    %3281 = vmatprep.subr.bf16.mxu0 0
    %3282 = vmatpush2.bf16.msra.mxu0 %v3068
    %3283 = vmatprep.subr.bf16.mxu0 0
    %3284 = vmatpush2.bf16.msra.mxu0 %v3067
    %3285 = vmatprep.subr.bf16.mxu0 0
    %3286 = vmatpush2.bf16.msra.mxu0 %v3066
    %3287 = vmatprep.subr.bf16.mxu0 0
    %3288 = vmatpush2.bf16.msra.mxu0 %v3065
    %3289 = vmatprep.mubr.bf16.mxu0 %v2624
    %3290 = vmatmul.mubr.bf16.gmra.mxu0 %v2623
    %v3291 = vpop.f32.mrf.mxu0
    %v3292 = vadd.f32 %v3252, %v3291
    %v3293 = vpop.f32.mrf.mxu0
    %v3294 = vpop.f32.mrf.mxu0
    %v3295 = vpop.f32.mrf.mxu0
    %3296 = vdwg.mxu0
    %v3298 = vrot.slane %v3292, 1
    %v3300 = vadd.f32 %v2012, %v3298
    %v3301 = vsel %vm1992, %v3300, 0.0
    %3302 = vadd.xlane.f32.xlu0 %v3301
    %v3303 = vpop.xlane.xlu0 %3302
    %v3304 = vmul.f32 %v3303, %v1996
    %v3305 = vsub.f32 %v3300, %v3304
    %v3306 = vmul.f32 %v3305, %v3305
    %v3307 = vsel %vm1992, %v3306, 0.0
    %3308 = vadd.xlane.f32.xlu0 %v3307
    %v3309 = vpop.xlane.xlu0 %3308
    %v3310 = vmul.f32 %v3309, %v1996
    %v3311 = vadd.f32 %v3310, 1e-05
    %v3312 = vrsqrt.pop %v3311
    %v3313 = vmul.f32 %v3305, %v3312
    %v3314 = vrot.slane %v179, 7
    %v3316 = vmul.f32 %v3313, %v3314
    %v3317 = vadd.f32 %v3316, %v179
    %v3318 = vpack.c.bf16 %v3317, %v3317
    %v3319 = vld [vmem:[#allocation16] sm:$0xf]
    %v3320 = vld [vmem:[#allocation16 + $0x4] sm:$0xf]
    %v3321 = vld [vmem:[#allocation16 + $0x8] sm:$0xf]
    %v3322 = vld [vmem:[#allocation16 + $0xc] sm:$0xf]
    %v3323 = vld [vmem:[#allocation16 + $0x10] sm:$0xf]
    %v3324 = vld [vmem:[#allocation16 + $0x14] sm:$0xf]
    %v3325 = vld [vmem:[#allocation16 + $0x18] sm:$0xf]
    %v3326 = vld [vmem:[#allocation16 + $0x1c] sm:$0xf]
    %v3327 = vld [vmem:[#allocation16 + $0x20] sm:$0xf]
    %v3328 = vld [vmem:[#allocation16 + $0x24] sm:$0xf]
    %v3329 = vld [vmem:[#allocation16 + $0x28] sm:$0xf]
    %v3330 = vld [vmem:[#allocation16 + $0x2c] sm:$0xf]
    %v3331 = vld [vmem:[#allocation16 + $0x30] sm:$0xf]
    %v3332 = vld [vmem:[#allocation16 + $0x34] sm:$0xf]
    %v3333 = vld [vmem:[#allocation16 + $0x38] sm:$0xf]
    %v3334 = vld [vmem:[#allocation16 + $0x3c] sm:$0xf]
    %v3336 = vshrl.u32 %v3318, 16
    %v3338 = vrot.slane %v3336, 3
    %v3356 = vunpack.c.l.b16 %v3319
    %v3357 = vunpack.c.l.b16 %v3320
    %v3358 = vunpack.c.l.b16 %v3321
    %v3359 = vunpack.c.l.b16 %v3322
    %v3360 = vunpack.c.l.b16 %v3323
    %v3361 = vunpack.c.l.b16 %v3324
    %v3362 = vunpack.c.l.b16 %v3325
    %v3363 = vunpack.c.l.b16 %v3326
    %v3364 = vunpack.c.l.b16 %v3327
    %v3365 = vunpack.c.l.b16 %v3328
    %v3366 = vunpack.c.l.b16 %v3329
    %v3367 = vunpack.c.l.b16 %v3330
    %v3368 = vunpack.c.l.b16 %v3331
    %v3369 = vunpack.c.l.b16 %v3332
    %v3370 = vunpack.c.l.b16 %v3333
    %v3371 = vunpack.c.l.b16 %v3334
    %v3372 = vpack.c.b16 %v3357, %v3356
    %v3373 = vpack.c.b16 %v3359, %v3358
    %v3374 = vpack.c.b16 %v3361, %v3360
    %v3375 = vpack.c.b16 %v3363, %v3362
    %v3376 = vpack.c.b16 %v3365, %v3364
    %v3377 = vpack.c.b16 %v3367, %v3366
    %v3378 = vpack.c.b16 %v3369, %v3368
    %v3379 = vpack.c.b16 %v3371, %v3370
    %3388 = vmatprep.subr.bf16.mxu0 0
    %3389 = vmatpush1.bf16.msra.mxu0 %v3379
    %3390 = vmatprep.subr.bf16.mxu0 0
    %3391 = vmatpush1.bf16.msra.mxu0 %v3378
    %3392 = vmatprep.subr.bf16.mxu0 0
    %3393 = vmatpush1.bf16.msra.mxu0 %v3377
    %3394 = vmatprep.subr.bf16.mxu0 0
    %3395 = vmatpush1.bf16.msra.mxu0 %v3376
    %3396 = vmatprep.subr.bf16.mxu0 0
    %3397 = vmatpush1.bf16.msra.mxu0 %v3375
    %3398 = vmatprep.subr.bf16.mxu0 0
    %3399 = vmatpush1.bf16.msra.mxu0 %v3374
    %3400 = vmatprep.subr.bf16.mxu0 0
    %3401 = vmatpush1.bf16.msra.mxu0 %v3373
    %3402 = vmatprep.subr.bf16.mxu0 0
    %3403 = vmatpush1.bf16.msra.mxu0 %v3372
    %3404 = vmatprep.subr.bf16.mxu0 0
    %3405 = vmatpush2.bf16.msra.mxu0 0
    %3406 = vmatprep.subr.bf16.mxu0 0
    %3407 = vmatpush2.bf16.msra.mxu0 0
    %3408 = vmatprep.subr.bf16.mxu0 0
    %3409 = vmatpush2.bf16.msra.mxu0 0
    %3410 = vmatprep.subr.bf16.mxu0 0
    %3411 = vmatpush2.bf16.msra.mxu0 0
    %3412 = vmatprep.subr.bf16.mxu0 0
    %3413 = vmatpush2.bf16.msra.mxu0 0
    %3414 = vmatprep.subr.bf16.mxu0 0
    %3415 = vmatpush2.bf16.msra.mxu0 0
    %3416 = vmatprep.subr.bf16.mxu0 0
    %3417 = vmatpush2.bf16.msra.mxu0 0
    %3418 = vmatprep.subr.bf16.mxu0 0
    %3419 = vmatpush2.bf16.msra.mxu0 0
    %3420 = vmatprep.mubr.bf16.mxu0 0
    %3421 = vmatmul.mubr.bf16.gmra.mxu0 %v3338
    %v3422 = vpop.f32.mrf.mxu0
    %v3423 = vadd.f32 %v180, %v3422
    %v3424 = vpop.f32.mrf.mxu0
    %v3425 = vpop.f32.mrf.mxu0
    %v3426 = vpop.f32.mrf.mxu0
    %3427 = vdwg.mxu0
    %v3428 = vmax.f32 %v3423, 0.0
    %v3429 = vpack.c.bf16 %v3428, %v3428
    %v3430 = vld [vmem:[#allocation17] sm:$0xf]
    %v3431 = vld [vmem:[#allocation17 + $0x4] sm:$0xf]
    %v3432 = vld [vmem:[#allocation17 + $0x8] sm:$0xf]
    %v3433 = vld [vmem:[#allocation17 + $0xc] sm:$0xf]
    %v3434 = vld [vmem:[#allocation17 + $0x10] sm:$0xf]
    %v3435 = vld [vmem:[#allocation17 + $0x14] sm:$0xf]
    %v3436 = vld [vmem:[#allocation17 + $0x18] sm:$0xf]
    %v3437 = vld [vmem:[#allocation17 + $0x1c] sm:$0xf]
    %v3438 = vld [vmem:[#allocation17 + $0x20] sm:$0xf]
    %v3439 = vld [vmem:[#allocation17 + $0x24] sm:$0xf]
    %v3440 = vld [vmem:[#allocation17 + $0x28] sm:$0xf]
    %v3441 = vld [vmem:[#allocation17 + $0x2c] sm:$0xf]
    %v3442 = vld [vmem:[#allocation17 + $0x30] sm:$0xf]
    %v3443 = vld [vmem:[#allocation17 + $0x34] sm:$0xf]
    %v3444 = vld [vmem:[#allocation17 + $0x38] sm:$0xf]
    %v3445 = vld [vmem:[#allocation17 + $0x3c] sm:$0xf]
    %v3462 = vunpack.c.l.b16 %v3430
    %v3463 = vunpack.c.l.b16 %v3431
    %v3464 = vunpack.c.l.b16 %v3432
    %v3465 = vunpack.c.l.b16 %v3433
    %v3466 = vunpack.c.l.b16 %v3434
    %v3467 = vunpack.c.l.b16 %v3435
    %v3468 = vunpack.c.l.b16 %v3436
    %v3469 = vunpack.c.l.b16 %v3437
    %v3470 = vunpack.c.l.b16 %v3438
    %v3471 = vunpack.c.l.b16 %v3439
    %v3472 = vunpack.c.l.b16 %v3440
    %v3473 = vunpack.c.l.b16 %v3441
    %v3474 = vunpack.c.l.b16 %v3442
    %v3475 = vunpack.c.l.b16 %v3443
    %v3476 = vunpack.c.l.b16 %v3444
    %v3477 = vunpack.c.l.b16 %v3445
    %v3478 = vpack.c.b16 %v3463, %v3462
    %v3479 = vpack.c.b16 %v3465, %v3464
    %v3480 = vpack.c.b16 %v3467, %v3466
    %v3481 = vpack.c.b16 %v3469, %v3468
    %v3482 = vpack.c.b16 %v3471, %v3470
    %v3483 = vpack.c.b16 %v3473, %v3472
    %v3484 = vpack.c.b16 %v3475, %v3474
    %v3485 = vpack.c.b16 %v3477, %v3476
    %v3495 = vrot.slane %v180, 1
    %3497 = vmatprep.subr.bf16.mxu0 0
    %3498 = vmatpush1.bf16.msra.mxu0 %v3485
    %3499 = vmatprep.subr.bf16.mxu0 0
    %3500 = vmatpush1.bf16.msra.mxu0 %v3484
    %3501 = vmatprep.subr.bf16.mxu0 0
    %3502 = vmatpush1.bf16.msra.mxu0 %v3483
    %3503 = vmatprep.subr.bf16.mxu0 0
    %3504 = vmatpush1.bf16.msra.mxu0 %v3482
    %3505 = vmatprep.subr.bf16.mxu0 0
    %3506 = vmatpush1.bf16.msra.mxu0 %v3481
    %3507 = vmatprep.subr.bf16.mxu0 0
    %3508 = vmatpush1.bf16.msra.mxu0 %v3480
    %3509 = vmatprep.subr.bf16.mxu0 0
    %3510 = vmatpush1.bf16.msra.mxu0 %v3479
    %3511 = vmatprep.subr.bf16.mxu0 0
    %3512 = vmatpush1.bf16.msra.mxu0 %v3478
    %3513 = vmatprep.subr.bf16.mxu0 0
    %3514 = vmatpush2.bf16.msra.mxu0 0
    %3515 = vmatprep.subr.bf16.mxu0 0
    %3516 = vmatpush2.bf16.msra.mxu0 0
    %3517 = vmatprep.subr.bf16.mxu0 0
    %3518 = vmatpush2.bf16.msra.mxu0 0
    %3519 = vmatprep.subr.bf16.mxu0 0
    %3520 = vmatpush2.bf16.msra.mxu0 0
    %3521 = vmatprep.subr.bf16.mxu0 0
    %3522 = vmatpush2.bf16.msra.mxu0 0
    %3523 = vmatprep.subr.bf16.mxu0 0
    %3524 = vmatpush2.bf16.msra.mxu0 0
    %3525 = vmatprep.subr.bf16.mxu0 0
    %3526 = vmatpush2.bf16.msra.mxu0 0
    %3527 = vmatprep.subr.bf16.mxu0 0
    %3528 = vmatpush2.bf16.msra.mxu0 0
    %3529 = vmatprep.mubr.bf16.mxu0 0
    %3530 = vmatmul.mubr.bf16.gmra.mxu0 %v3429
    %v3531 = vpop.f32.mrf.mxu0
    %v3532 = vadd.f32 %v3495, %v3531
    %v3533 = vpop.f32.mrf.mxu0
    %v3534 = vpop.f32.mrf.mxu0
    %v3535 = vpop.f32.mrf.mxu0
    %3536 = vdwg.mxu0
    %3537 = vst [vmem:[#allocation19] sm:$0x1] %v3532
    // Predicated region
    $region94: #{tpu_custom_call.1} parent=1 // pred_check
      _
    $region95: #{tpu_custom_call.1} parent=1 // pred_check_branch
      %3539 = sbr.rel (0) target = $region97
    $region96: #{tpu_custom_call.1} parent=1 // pred_region
      %s3541 = ssub.s32 16, 16
      %3542 = vsyncadd [#allocation4], %s3541
      %s3544 = sshll.u32 [#allocation19], 4
      %s3545 = int_to_ptr.vmem [resolvable:$true] %s3544
      %3547 = dma.vmem_to_hbm [thread:$0]  %s3545, 16, %s13, [#allocation4]
    $region97: #{tpu_custom_call.1} parent=1 // pred_fallthru
      _
    // Predicated region
    $region98: #{tpu_custom_call.1} parent=1 // pred_check
      _
    $region99: #{tpu_custom_call.1} parent=1 // pred_check_branch
      %3549 = sbr.rel (0) target = $region101
    $region100: #{tpu_custom_call.1} parent=1 // pred_region
      %3550 = dma.done [#allocation4], 16
    $region101: #{tpu_custom_call.1} parent=1 // pred_fallthru
      _
    %3551 = vsyncpa [#allocation3], 1
    %3552 = vsyncpa [#allocation6], 1
    %3553 = vsyncpa [#allocation9], 1
    %3554 = vsyncpa [#allocation12], 1
    %3555 = vsyncpa [#allocation15], 1
    %3556 = vsyncpa [#allocation18], 1
    %3557 = vsyncpa [#allocation4], 1

</llo_original>
